<compile_context>
chip_gen: v7x
topology: tpu7x:2x2x1
jax: 0.10.0
libtpu: 0.0.40
codegen_flags: <defaults>
</compile_context>

<pallas_src>
import functools

import jax
import jax.numpy as jnp
from jax import lax
from jax.experimental import pallas as pl
from jax.experimental.pallas import tpu as pltpu


def _mdconv_kernel(x_ref, w_ref, o_ref, *, K, stride, dilate, row_chunk):
    """Fused mixed depthwise conv for one batch image.

    x_ref: (1, H_pad, W_pad, C)  padded NHWC activation slab
    w_ref: (K*K, C)              per-channel tap weights (zero outside each
                                 group's own, centered, kernel window)
    o_ref: (1, H_out, W_out, C)
    """
    _, H_out, W_out, C = o_ref.shape
    for r0 in range(0, H_out, row_chunk):
        rows = min(row_chunk, H_out - r0)
        acc = jnp.zeros((rows, W_out, C), jnp.float32)
        for kh in range(K):
            for kw in range(K):
                h0 = r0 * stride + kh * dilate
                w0 = kw * dilate
                if stride == 1:
                    win = x_ref[0, h0:h0 + rows, w0:w0 + W_out, :]
                else:
                    # Stride only indexes H/W (non-lane dims); C lanes stay
                    # dense. (Not exercised in __main__'s stride=1 config.)
                    win = x_ref[0,
                                pl.ds(h0, rows, stride),
                                pl.ds(w0, W_out, stride),
                                :]
                t = kh * K + kw
                wt = w_ref[t:t + 1, :].astype(jnp.float32)      # (1, C)
                acc = acc + win.astype(jnp.float32) * wt
        o_ref[0, r0:r0 + rows, :, :] = acc.astype(o_ref.dtype)


def mdconv_pallas(x, w_all, *, K_max, stride=1, dilate=1):
    """x: (N, C, H, W) NCHW (PyTorch layout); w_all: (K_max*K_max, C) packed
    per-channel tap table. Returns (N, C, H_out, W_out)."""
    N, C, H, W = x.shape
    assert w_all.shape == (K_max * K_max, C), w_all.shape
    P = (K_max - 1) // 2 * dilate
    H_out = (H + 2 * P - dilate * (K_max - 1) - 1) // stride + 1
    W_out = (W + 2 * P - dilate * (K_max - 1) - 1) // stride + 1
    Hp, Wp = H + 2 * P, W + 2 * P

    # Channels-last + spatial halo, done once in XLA (fuses with the layout
    # change). Inside the kernel everything is lane-dense on C.
    x_nhwc = jnp.transpose(x, (0, 2, 3, 1))
    xp = jnp.pad(x_nhwc, ((0, 0), (P, P), (P, P), (0, 0)))

    # Keep the live f32 accumulator (+ one tap window) within ~half the vregs.
    row_chunk = max(1, min(H_out, (16 * 1024) // max(1, W_out * C)))

    # Raise the scoped-VMEM cap only when the double-buffered blocks need it.
    itemsize = jnp.dtype(x.dtype).itemsize
    blk_bytes = (2 * (Hp * Wp * C + H_out * W_out * C) * itemsize
                 + K_max * K_max * C * 4)
    vmem_limit = None
    if blk_bytes > 16 * 1024 * 1024:
        vmem_limit = min(int(blk_bytes * 5 // 4), 96 * 1024 * 1024)

    kernel = functools.partial(_mdconv_kernel, K=K_max, stride=stride,
                               dilate=dilate, row_chunk=row_chunk)
    out_nhwc = pl.pallas_call(
        kernel,
        out_shape=jax.ShapeDtypeStruct((N, H_out, W_out, C), x.dtype),
        grid_spec=pltpu.PrefetchScalarGridSpec(
            num_scalar_prefetch=0,
            grid=(N,),
            in_specs=[
                pl.BlockSpec((1, Hp, Wp, C), lambda n: (n, 0, 0, 0)),
                # Constant block index -> weights DMA'd into VMEM only once.
                pl.BlockSpec((K_max * K_max, C), lambda n: (0, 0)),
            ],
            out_specs=pl.BlockSpec((1, H_out, W_out, C),
                                   lambda n: (n, 0, 0, 0)),
        ),
        compiler_params=pltpu.CompilerParams(
            dimension_semantics=("parallel",),
            vmem_limit_bytes=vmem_limit),
    )(xp, w_all)
    return jnp.transpose(out_nhwc, (0, 3, 1, 2))


def pack_mdconv_weights(weights, kernel_sizes):
    """weights[g]: (Cg, Kg, Kg). Returns a (K_max*K_max, sum_g Cg) f32 table:
    each group's taps are centered inside the K_max x K_max window, remaining
    taps are zero (so one fused tap loop covers every group)."""
    K_max = max(kernel_sizes)
    assert all(k % 2 == 1 for k in kernel_sizes), "odd kernel sizes required"
    cols = []
    for w, K in zip(weights, kernel_sizes):
        off = (K_max - K) // 2
        wk = jnp.transpose(w, (1, 2, 0))                       # (K, K, Cg)
        wk = jnp.pad(wk, ((off, off), (off, off), (0, 0)))     # (Kmax,Kmax,Cg)
        cols.append(wk.reshape(K_max * K_max, -1))
    return jnp.concatenate(cols, axis=-1).astype(jnp.float32)


class MDConvPallas:
    """Pallas port of MDConv: channels split into len(kernel_sizes) groups,
    depthwise conv with a different kernel size per group, concatenated on
    channels — implemented as one fused channels-last TPU kernel."""

    def __init__(self, in_planes, kernel_sizes, stride=1, dilate=1, key=None):
        self.num_groups = len(kernel_sizes)
        assert in_planes % self.num_groups == 0
        self.sub_hidden_dim = in_planes // self.num_groups
        assert stride in (1, 2)
        assert all(k % 2 == 1 for k in kernel_sizes), \
            "PyTorch's padding=(K-1)//2*dilate is 'same' only for odd K"
        self.dilate = 1 if stride > 1 else dilate
        self.stride = stride
        self.kernel_sizes = list(kernel_sizes)
        self.K_max = max(self.kernel_sizes)

        key = jax.random.PRNGKey(0) if key is None else key
        self.weights = []   # per-group (Cg, K, K), PyTorch-style uniform init
        for Ks in self.kernel_sizes:
            key, sub = jax.random.split(key)
            bound = 1.0 / float(Ks)          # 1/sqrt(fan_in), fan_in = Ks*Ks
            w = jax.random.uniform(sub, (self.sub_hidden_dim, Ks, Ks),
                                   jnp.float32, minval=-bound, maxval=bound)
            self.weights.append(w)
        self.w_all = pack_mdconv_weights(self.weights, self.kernel_sizes)

    def __call__(self, x):
        return mdconv_pallas(x, self.w_all, K_max=self.K_max,
                             stride=self.stride, dilate=self.dilate)


def _reference_mdconv(x, m):
    """Pure-JAX reference with the same semantics as the PyTorch module."""
    chunks = jnp.split(x, m.num_groups, axis=1)
    outs = []
    for g, K in enumerate(m.kernel_sizes):
        pad = (K - 1) // 2 * m.dilate
        Cg = chunks[g].shape[1]
        rhs = m.weights[g].reshape(Cg, 1, K, K)
        outs.append(lax.conv_general_dilated(
            chunks[g], rhs,
            window_strides=(m.stride, m.stride),
            padding=((pad, pad), (pad, pad)),
            rhs_dilation=(m.dilate, m.dilate),
            dimension_numbers=("NCHW", "OIHW", "NCHW"),
            feature_group_count=Cg,
            precision=lax.Precision.HIGHEST))
    return jnp.concatenate(outs, axis=1)


if __name__ == "__main__":
    key = jax.random.PRNGKey(0)
    N, C, H, W = 2, 4, 16, 16
    kernel_sizes = [3, 5]

    x = jax.random.normal(key, (N, C, H, W), jnp.float32)

    # Main config: mixed kernels [3, 5], stride 1, dilation 1.
    mdconv = MDConvPallas(in_planes=C, kernel_sizes=kernel_sizes,
                          stride=1, dilate=1, key=jax.random.PRNGKey(42))
    fwd = jax.jit(mdconv.__call__)
    out = jax.block_until_ready(fwd(x))
    ref = _reference_mdconv(x, mdconv)
    assert out.shape == (N, C, H, W), out.shape
    assert jnp.allclose(out, ref, atol=1e-5, rtol=1e-5), float(
        jnp.max(jnp.abs(out - ref)))

    # Second config: single group, dilation 2 (exercises dilated taps).
    md2 = MDConvPallas(in_planes=C, kernel_sizes=[3], stride=1, dilate=2,
                       key=jax.random.PRNGKey(7))
    out2 = jax.block_until_ready(jax.jit(md2.__call__)(x))
    ref2 = _reference_mdconv(x, md2)
    assert out2.shape == ref2.shape
    assert jnp.allclose(out2, ref2, atol=1e-5, rtol=1e-5), float(
        jnp.max(jnp.abs(out2 - ref2)))

    print("KERNEL_OK")
</pallas_src>

<mosaic_0001>
module attributes {stable_mosaic.version = 11 : i64} {
  func.func @_mdconv_kernel(%arg0: i32, %arg1: memref<1x20x20x4xf32, #tpu.memory_space<vmem>>, %arg2: memref<25x4xf32, #tpu.memory_space<vmem>>, %arg3: memref<1x16x16x4xf32, #tpu.memory_space<vmem>>) attributes {dimension_semantics = [#tpu.dimension_semantics<parallel>], iteration_bounds = array<i64: 2>, scalar_prefetch = 0 : i64, scratch_operands = 0 : i64, tpu.core_type = #tpu.core_type<tc>, window_params = [{transform_indices = @transform_0, window_bounds = array<i64: 1, 20, 20, 4>}, {pipeline_mode = #tpu.pipeline_mode<synchronous>, transform_indices = @transform_1, window_bounds = array<i64: 25, 4>}, {transform_indices = @transform_2, window_bounds = array<i64: 1, 16, 16, 4>}]} {
    %cst = arith.constant 0.000000e+00 : f32
    %0 = vector.broadcast %cst : f32 to vector<16x16x4xf32>
    %c0 = arith.constant 0 : index
    %c0_0 = arith.constant 0 : index
    %c0_1 = arith.constant 0 : index
    %c0_2 = arith.constant 0 : index
    %1 = vector.load %arg1[%c0, %c0_0, %c0_1, %c0_2] : memref<1x20x20x4xf32, #tpu.memory_space<vmem>>, vector<1x16x16x4xf32>
    %2 = vector.shape_cast %1 : vector<1x16x16x4xf32> to vector<16x16x4xf32>
    %c0_3 = arith.constant 0 : index
    %c0_4 = arith.constant 0 : index
    %3 = vector.load %arg2[%c0_3, %c0_4] : memref<25x4xf32, #tpu.memory_space<vmem>>, vector<1x4xf32>
    %4 = vector.shape_cast %3 : vector<1x4xf32> to vector<1x1x4xf32>
    %5 = vector.broadcast %4 : vector<1x1x4xf32> to vector<16x16x4xf32>
    %6 = arith.mulf %2, %5 : vector<16x16x4xf32>
    %7 = arith.addf %0, %6 : vector<16x16x4xf32>
    %c0_5 = arith.constant 0 : index
    %c0_6 = arith.constant 0 : index
    %c1 = arith.constant 1 : index
    %c0_7 = arith.constant 0 : index
    %8 = vector.load %arg1[%c0_5, %c0_6, %c1, %c0_7] : memref<1x20x20x4xf32, #tpu.memory_space<vmem>>, vector<1x16x16x4xf32>
    %9 = vector.shape_cast %8 : vector<1x16x16x4xf32> to vector<16x16x4xf32>
    %c1_8 = arith.constant 1 : index
    %c0_9 = arith.constant 0 : index
    %10 = vector.load %arg2[%c1_8, %c0_9] : memref<25x4xf32, #tpu.memory_space<vmem>>, vector<1x4xf32>
    %11 = vector.shape_cast %10 : vector<1x4xf32> to vector<1x1x4xf32>
    %12 = vector.broadcast %11 : vector<1x1x4xf32> to vector<16x16x4xf32>
    %13 = arith.mulf %9, %12 : vector<16x16x4xf32>
    %14 = arith.addf %7, %13 : vector<16x16x4xf32>
    %c0_10 = arith.constant 0 : index
    %c0_11 = arith.constant 0 : index
    %c2 = arith.constant 2 : index
    %c0_12 = arith.constant 0 : index
    %15 = vector.load %arg1[%c0_10, %c0_11, %c2, %c0_12] : memref<1x20x20x4xf32, #tpu.memory_space<vmem>>, vector<1x16x16x4xf32>
    %16 = vector.shape_cast %15 : vector<1x16x16x4xf32> to vector<16x16x4xf32>
    %c2_13 = arith.constant 2 : index
    %c0_14 = arith.constant 0 : index
    %17 = vector.load %arg2[%c2_13, %c0_14] : memref<25x4xf32, #tpu.memory_space<vmem>>, vector<1x4xf32>
    %18 = vector.shape_cast %17 : vector<1x4xf32> to vector<1x1x4xf32>
    %19 = vector.broadcast %18 : vector<1x1x4xf32> to vector<16x16x4xf32>
    %20 = arith.mulf %16, %19 : vector<16x16x4xf32>
    %21 = arith.addf %14, %20 : vector<16x16x4xf32>
    %c0_15 = arith.constant 0 : index
    %c0_16 = arith.constant 0 : index
    %c3 = arith.constant 3 : index
    %c0_17 = arith.constant 0 : index
    %22 = vector.load %arg1[%c0_15, %c0_16, %c3, %c0_17] : memref<1x20x20x4xf32, #tpu.memory_space<vmem>>, vector<1x16x16x4xf32>
    %23 = vector.shape_cast %22 : vector<1x16x16x4xf32> to vector<16x16x4xf32>
    %c3_18 = arith.constant 3 : index
    %c0_19 = arith.constant 0 : index
    %24 = vector.load %arg2[%c3_18, %c0_19] : memref<25x4xf32, #tpu.memory_space<vmem>>, vector<1x4xf32>
    %25 = vector.shape_cast %24 : vector<1x4xf32> to vector<1x1x4xf32>
    %26 = vector.broadcast %25 : vector<1x1x4xf32> to vector<16x16x4xf32>
    %27 = arith.mulf %23, %26 : vector<16x16x4xf32>
    %28 = arith.addf %21, %27 : vector<16x16x4xf32>
    %c0_20 = arith.constant 0 : index
    %c0_21 = arith.constant 0 : index
    %c4 = arith.constant 4 : index
    %c0_22 = arith.constant 0 : index
    %29 = vector.load %arg1[%c0_20, %c0_21, %c4, %c0_22] : memref<1x20x20x4xf32, #tpu.memory_space<vmem>>, vector<1x16x16x4xf32>
    %30 = vector.shape_cast %29 : vector<1x16x16x4xf32> to vector<16x16x4xf32>
    %c4_23 = arith.constant 4 : index
    %c0_24 = arith.constant 0 : index
    %31 = vector.load %arg2[%c4_23, %c0_24] : memref<25x4xf32, #tpu.memory_space<vmem>>, vector<1x4xf32>
    %32 = vector.shape_cast %31 : vector<1x4xf32> to vector<1x1x4xf32>
    %33 = vector.broadcast %32 : vector<1x1x4xf32> to vector<16x16x4xf32>
    %34 = arith.mulf %30, %33 : vector<16x16x4xf32>
    %35 = arith.addf %28, %34 : vector<16x16x4xf32>
    %c0_25 = arith.constant 0 : index
    %c1_26 = arith.constant 1 : index
    %c0_27 = arith.constant 0 : index
    %c0_28 = arith.constant 0 : index
    %36 = vector.load %arg1[%c0_25, %c1_26, %c0_27, %c0_28] : memref<1x20x20x4xf32, #tpu.memory_space<vmem>>, vector<1x16x16x4xf32>
    %37 = vector.shape_cast %36 : vector<1x16x16x4xf32> to vector<16x16x4xf32>
    %c5 = arith.constant 5 : index
    %c0_29 = arith.constant 0 : index
    %38 = vector.load %arg2[%c5, %c0_29] : memref<25x4xf32, #tpu.memory_space<vmem>>, vector<1x4xf32>
    %39 = vector.shape_cast %38 : vector<1x4xf32> to vector<1x1x4xf32>
    %40 = vector.broadcast %39 : vector<1x1x4xf32> to vector<16x16x4xf32>
    %41 = arith.mulf %37, %40 : vector<16x16x4xf32>
    %42 = arith.addf %35, %41 : vector<16x16x4xf32>
    %c0_30 = arith.constant 0 : index
    %c1_31 = arith.constant 1 : index
    %c1_32 = arith.constant 1 : index
    %c0_33 = arith.constant 0 : index
    %43 = vector.load %arg1[%c0_30, %c1_31, %c1_32, %c0_33] : memref<1x20x20x4xf32, #tpu.memory_space<vmem>>, vector<1x16x16x4xf32>
    %44 = vector.shape_cast %43 : vector<1x16x16x4xf32> to vector<16x16x4xf32>
    %c6 = arith.constant 6 : index
    %c0_34 = arith.constant 0 : index
    %45 = vector.load %arg2[%c6, %c0_34] : memref<25x4xf32, #tpu.memory_space<vmem>>, vector<1x4xf32>
    %46 = vector.shape_cast %45 : vector<1x4xf32> to vector<1x1x4xf32>
    %47 = vector.broadcast %46 : vector<1x1x4xf32> to vector<16x16x4xf32>
    %48 = arith.mulf %44, %47 : vector<16x16x4xf32>
    %49 = arith.addf %42, %48 : vector<16x16x4xf32>
    %c0_35 = arith.constant 0 : index
    %c1_36 = arith.constant 1 : index
    %c2_37 = arith.constant 2 : index
    %c0_38 = arith.constant 0 : index
    %50 = vector.load %arg1[%c0_35, %c1_36, %c2_37, %c0_38] : memref<1x20x20x4xf32, #tpu.memory_space<vmem>>, vector<1x16x16x4xf32>
    %51 = vector.shape_cast %50 : vector<1x16x16x4xf32> to vector<16x16x4xf32>
    %c7 = arith.constant 7 : index
    %c0_39 = arith.constant 0 : index
    %52 = vector.load %arg2[%c7, %c0_39] : memref<25x4xf32, #tpu.memory_space<vmem>>, vector<1x4xf32>
    %53 = vector.shape_cast %52 : vector<1x4xf32> to vector<1x1x4xf32>
    %54 = vector.broadcast %53 : vector<1x1x4xf32> to vector<16x16x4xf32>
    %55 = arith.mulf %51, %54 : vector<16x16x4xf32>
    %56 = arith.addf %49, %55 : vector<16x16x4xf32>
    %c0_40 = arith.constant 0 : index
    %c1_41 = arith.constant 1 : index
    %c3_42 = arith.constant 3 : index
    %c0_43 = arith.constant 0 : index
    %57 = vector.load %arg1[%c0_40, %c1_41, %c3_42, %c0_43] : memref<1x20x20x4xf32, #tpu.memory_space<vmem>>, vector<1x16x16x4xf32>
    %58 = vector.shape_cast %57 : vector<1x16x16x4xf32> to vector<16x16x4xf32>
    %c8 = arith.constant 8 : index
    %c0_44 = arith.constant 0 : index
    %59 = vector.load %arg2[%c8, %c0_44] : memref<25x4xf32, #tpu.memory_space<vmem>>, vector<1x4xf32>
    %60 = vector.shape_cast %59 : vector<1x4xf32> to vector<1x1x4xf32>
    %61 = vector.broadcast %60 : vector<1x1x4xf32> to vector<16x16x4xf32>
    %62 = arith.mulf %58, %61 : vector<16x16x4xf32>
    %63 = arith.addf %56, %62 : vector<16x16x4xf32>
    %c0_45 = arith.constant 0 : index
    %c1_46 = arith.constant 1 : index
    %c4_47 = arith.constant 4 : index
    %c0_48 = arith.constant 0 : index
    %64 = vector.load %arg1[%c0_45, %c1_46, %c4_47, %c0_48] : memref<1x20x20x4xf32, #tpu.memory_space<vmem>>, vector<1x16x16x4xf32>
    %65 = vector.shape_cast %64 : vector<1x16x16x4xf32> to vector<16x16x4xf32>
    %c9 = arith.constant 9 : index
    %c0_49 = arith.constant 0 : index
    %66 = vector.load %arg2[%c9, %c0_49] : memref<25x4xf32, #tpu.memory_space<vmem>>, vector<1x4xf32>
    %67 = vector.shape_cast %66 : vector<1x4xf32> to vector<1x1x4xf32>
    %68 = vector.broadcast %67 : vector<1x1x4xf32> to vector<16x16x4xf32>
    %69 = arith.mulf %65, %68 : vector<16x16x4xf32>
    %70 = arith.addf %63, %69 : vector<16x16x4xf32>
    %c0_50 = arith.constant 0 : index
    %c2_51 = arith.constant 2 : index
    %c0_52 = arith.constant 0 : index
    %c0_53 = arith.constant 0 : index
    %71 = vector.load %arg1[%c0_50, %c2_51, %c0_52, %c0_53] : memref<1x20x20x4xf32, #tpu.memory_space<vmem>>, vector<1x16x16x4xf32>
    %72 = vector.shape_cast %71 : vector<1x16x16x4xf32> to vector<16x16x4xf32>
    %c10 = arith.constant 10 : index
    %c0_54 = arith.constant 0 : index
    %73 = vector.load %arg2[%c10, %c0_54] : memref<25x4xf32, #tpu.memory_space<vmem>>, vector<1x4xf32>
    %74 = vector.shape_cast %73 : vector<1x4xf32> to vector<1x1x4xf32>
    %75 = vector.broadcast %74 : vector<1x1x4xf32> to vector<16x16x4xf32>
    %76 = arith.mulf %72, %75 : vector<16x16x4xf32>
    %77 = arith.addf %70, %76 : vector<16x16x4xf32>
    %c0_55 = arith.constant 0 : index
    %c2_56 = arith.constant 2 : index
    %c1_57 = arith.constant 1 : index
    %c0_58 = arith.constant 0 : index
    %78 = vector.load %arg1[%c0_55, %c2_56, %c1_57, %c0_58] : memref<1x20x20x4xf32, #tpu.memory_space<vmem>>, vector<1x16x16x4xf32>
    %79 = vector.shape_cast %78 : vector<1x16x16x4xf32> to vector<16x16x4xf32>
    %c11 = arith.constant 11 : index
    %c0_59 = arith.constant 0 : index
    %80 = vector.load %arg2[%c11, %c0_59] : memref<25x4xf32, #tpu.memory_space<vmem>>, vector<1x4xf32>
    %81 = vector.shape_cast %80 : vector<1x4xf32> to vector<1x1x4xf32>
    %82 = vector.broadcast %81 : vector<1x1x4xf32> to vector<16x16x4xf32>
    %83 = arith.mulf %79, %82 : vector<16x16x4xf32>
    %84 = arith.addf %77, %83 : vector<16x16x4xf32>
    %c0_60 = arith.constant 0 : index
    %c2_61 = arith.constant 2 : index
    %c2_62 = arith.constant 2 : index
    %c0_63 = arith.constant 0 : index
    %85 = vector.load %arg1[%c0_60, %c2_61, %c2_62, %c0_63] : memref<1x20x20x4xf32, #tpu.memory_space<vmem>>, vector<1x16x16x4xf32>
    %86 = vector.shape_cast %85 : vector<1x16x16x4xf32> to vector<16x16x4xf32>
    %c12 = arith.constant 12 : index
    %c0_64 = arith.constant 0 : index
    %87 = vector.load %arg2[%c12, %c0_64] : memref<25x4xf32, #tpu.memory_space<vmem>>, vector<1x4xf32>
    %88 = vector.shape_cast %87 : vector<1x4xf32> to vector<1x1x4xf32>
    %89 = vector.broadcast %88 : vector<1x1x4xf32> to vector<16x16x4xf32>
    %90 = arith.mulf %86, %89 : vector<16x16x4xf32>
    %91 = arith.addf %84, %90 : vector<16x16x4xf32>
    %c0_65 = arith.constant 0 : index
    %c2_66 = arith.constant 2 : index
    %c3_67 = arith.constant 3 : index
    %c0_68 = arith.constant 0 : index
    %92 = vector.load %arg1[%c0_65, %c2_66, %c3_67, %c0_68] : memref<1x20x20x4xf32, #tpu.memory_space<vmem>>, vector<1x16x16x4xf32>
    %93 = vector.shape_cast %92 : vector<1x16x16x4xf32> to vector<16x16x4xf32>
    %c13 = arith.constant 13 : index
    %c0_69 = arith.constant 0 : index
    %94 = vector.load %arg2[%c13, %c0_69] : memref<25x4xf32, #tpu.memory_space<vmem>>, vector<1x4xf32>
    %95 = vector.shape_cast %94 : vector<1x4xf32> to vector<1x1x4xf32>
    %96 = vector.broadcast %95 : vector<1x1x4xf32> to vector<16x16x4xf32>
    %97 = arith.mulf %93, %96 : vector<16x16x4xf32>
    %98 = arith.addf %91, %97 : vector<16x16x4xf32>
    %c0_70 = arith.constant 0 : index
    %c2_71 = arith.constant 2 : index
    %c4_72 = arith.constant 4 : index
    %c0_73 = arith.constant 0 : index
    %99 = vector.load %arg1[%c0_70, %c2_71, %c4_72, %c0_73] : memref<1x20x20x4xf32, #tpu.memory_space<vmem>>, vector<1x16x16x4xf32>
    %100 = vector.shape_cast %99 : vector<1x16x16x4xf32> to vector<16x16x4xf32>
    %c14 = arith.constant 14 : index
    %c0_74 = arith.constant 0 : index
    %101 = vector.load %arg2[%c14, %c0_74] : memref<25x4xf32, #tpu.memory_space<vmem>>, vector<1x4xf32>
    %102 = vector.shape_cast %101 : vector<1x4xf32> to vector<1x1x4xf32>
    %103 = vector.broadcast %102 : vector<1x1x4xf32> to vector<16x16x4xf32>
    %104 = arith.mulf %100, %103 : vector<16x16x4xf32>
    %105 = arith.addf %98, %104 : vector<16x16x4xf32>
    %c0_75 = arith.constant 0 : index
    %c3_76 = arith.constant 3 : index
    %c0_77 = arith.constant 0 : index
    %c0_78 = arith.constant 0 : index
    %106 = vector.load %arg1[%c0_75, %c3_76, %c0_77, %c0_78] : memref<1x20x20x4xf32, #tpu.memory_space<vmem>>, vector<1x16x16x4xf32>
    %107 = vector.shape_cast %106 : vector<1x16x16x4xf32> to vector<16x16x4xf32>
    %c15 = arith.constant 15 : index
    %c0_79 = arith.constant 0 : index
    %108 = vector.load %arg2[%c15, %c0_79] : memref<25x4xf32, #tpu.memory_space<vmem>>, vector<1x4xf32>
    %109 = vector.shape_cast %108 : vector<1x4xf32> to vector<1x1x4xf32>
    %110 = vector.broadcast %109 : vector<1x1x4xf32> to vector<16x16x4xf32>
    %111 = arith.mulf %107, %110 : vector<16x16x4xf32>
    %112 = arith.addf %105, %111 : vector<16x16x4xf32>
    %c0_80 = arith.constant 0 : index
    %c3_81 = arith.constant 3 : index
    %c1_82 = arith.constant 1 : index
    %c0_83 = arith.constant 0 : index
    %113 = vector.load %arg1[%c0_80, %c3_81, %c1_82, %c0_83] : memref<1x20x20x4xf32, #tpu.memory_space<vmem>>, vector<1x16x16x4xf32>
    %114 = vector.shape_cast %113 : vector<1x16x16x4xf32> to vector<16x16x4xf32>
    %c16 = arith.constant 16 : index
    %c0_84 = arith.constant 0 : index
    %115 = vector.load %arg2[%c16, %c0_84] : memref<25x4xf32, #tpu.memory_space<vmem>>, vector<1x4xf32>
    %116 = vector.shape_cast %115 : vector<1x4xf32> to vector<1x1x4xf32>
    %117 = vector.broadcast %116 : vector<1x1x4xf32> to vector<16x16x4xf32>
    %118 = arith.mulf %114, %117 : vector<16x16x4xf32>
    %119 = arith.addf %112, %118 : vector<16x16x4xf32>
    %c0_85 = arith.constant 0 : index
    %c3_86 = arith.constant 3 : index
    %c2_87 = arith.constant 2 : index
    %c0_88 = arith.constant 0 : index
    %120 = vector.load %arg1[%c0_85, %c3_86, %c2_87, %c0_88] : memref<1x20x20x4xf32, #tpu.memory_space<vmem>>, vector<1x16x16x4xf32>
    %121 = vector.shape_cast %120 : vector<1x16x16x4xf32> to vector<16x16x4xf32>
    %c17 = arith.constant 17 : index
    %c0_89 = arith.constant 0 : index
    %122 = vector.load %arg2[%c17, %c0_89] : memref<25x4xf32, #tpu.memory_space<vmem>>, vector<1x4xf32>
    %123 = vector.shape_cast %122 : vector<1x4xf32> to vector<1x1x4xf32>
    %124 = vector.broadcast %123 : vector<1x1x4xf32> to vector<16x16x4xf32>
    %125 = arith.mulf %121, %124 : vector<16x16x4xf32>
    %126 = arith.addf %119, %125 : vector<16x16x4xf32>
    %c0_90 = arith.constant 0 : index
    %c3_91 = arith.constant 3 : index
    %c3_92 = arith.constant 3 : index
    %c0_93 = arith.constant 0 : index
    %127 = vector.load %arg1[%c0_90, %c3_91, %c3_92, %c0_93] : memref<1x20x20x4xf32, #tpu.memory_space<vmem>>, vector<1x16x16x4xf32>
    %128 = vector.shape_cast %127 : vector<1x16x16x4xf32> to vector<16x16x4xf32>
    %c18 = arith.constant 18 : index
    %c0_94 = arith.constant 0 : index
    %129 = vector.load %arg2[%c18, %c0_94] : memref<25x4xf32, #tpu.memory_space<vmem>>, vector<1x4xf32>
    %130 = vector.shape_cast %129 : vector<1x4xf32> to vector<1x1x4xf32>
    %131 = vector.broadcast %130 : vector<1x1x4xf32> to vector<16x16x4xf32>
    %132 = arith.mulf %128, %131 : vector<16x16x4xf32>
    %133 = arith.addf %126, %132 : vector<16x16x4xf32>
    %c0_95 = arith.constant 0 : index
    %c3_96 = arith.constant 3 : index
    %c4_97 = arith.constant 4 : index
    %c0_98 = arith.constant 0 : index
    %134 = vector.load %arg1[%c0_95, %c3_96, %c4_97, %c0_98] : memref<1x20x20x4xf32, #tpu.memory_space<vmem>>, vector<1x16x16x4xf32>
    %135 = vector.shape_cast %134 : vector<1x16x16x4xf32> to vector<16x16x4xf32>
    %c19 = arith.constant 19 : index
    %c0_99 = arith.constant 0 : index
    %136 = vector.load %arg2[%c19, %c0_99] : memref<25x4xf32, #tpu.memory_space<vmem>>, vector<1x4xf32>
    %137 = vector.shape_cast %136 : vector<1x4xf32> to vector<1x1x4xf32>
    %138 = vector.broadcast %137 : vector<1x1x4xf32> to vector<16x16x4xf32>
    %139 = arith.mulf %135, %138 : vector<16x16x4xf32>
    %140 = arith.addf %133, %139 : vector<16x16x4xf32>
    %c0_100 = arith.constant 0 : index
    %c4_101 = arith.constant 4 : index
    %c0_102 = arith.constant 0 : index
    %c0_103 = arith.constant 0 : index
    %141 = vector.load %arg1[%c0_100, %c4_101, %c0_102, %c0_103] : memref<1x20x20x4xf32, #tpu.memory_space<vmem>>, vector<1x16x16x4xf32>
    %142 = vector.shape_cast %141 : vector<1x16x16x4xf32> to vector<16x16x4xf32>
    %c20 = arith.constant 20 : index
    %c0_104 = arith.constant 0 : index
    %143 = vector.load %arg2[%c20, %c0_104] : memref<25x4xf32, #tpu.memory_space<vmem>>, vector<1x4xf32>
    %144 = vector.shape_cast %143 : vector<1x4xf32> to vector<1x1x4xf32>
    %145 = vector.broadcast %144 : vector<1x1x4xf32> to vector<16x16x4xf32>
    %146 = arith.mulf %142, %145 : vector<16x16x4xf32>
    %147 = arith.addf %140, %146 : vector<16x16x4xf32>
    %c0_105 = arith.constant 0 : index
    %c4_106 = arith.constant 4 : index
    %c1_107 = arith.constant 1 : index
    %c0_108 = arith.constant 0 : index
    %148 = vector.load %arg1[%c0_105, %c4_106, %c1_107, %c0_108] : memref<1x20x20x4xf32, #tpu.memory_space<vmem>>, vector<1x16x16x4xf32>
    %149 = vector.shape_cast %148 : vector<1x16x16x4xf32> to vector<16x16x4xf32>
    %c21 = arith.constant 21 : index
    %c0_109 = arith.constant 0 : index
    %150 = vector.load %arg2[%c21, %c0_109] : memref<25x4xf32, #tpu.memory_space<vmem>>, vector<1x4xf32>
    %151 = vector.shape_cast %150 : vector<1x4xf32> to vector<1x1x4xf32>
    %152 = vector.broadcast %151 : vector<1x1x4xf32> to vector<16x16x4xf32>
    %153 = arith.mulf %149, %152 : vector<16x16x4xf32>
    %154 = arith.addf %147, %153 : vector<16x16x4xf32>
    %c0_110 = arith.constant 0 : index
    %c4_111 = arith.constant 4 : index
    %c2_112 = arith.constant 2 : index
    %c0_113 = arith.constant 0 : index
    %155 = vector.load %arg1[%c0_110, %c4_111, %c2_112, %c0_113] : memref<1x20x20x4xf32, #tpu.memory_space<vmem>>, vector<1x16x16x4xf32>
    %156 = vector.shape_cast %155 : vector<1x16x16x4xf32> to vector<16x16x4xf32>
    %c22 = arith.constant 22 : index
    %c0_114 = arith.constant 0 : index
    %157 = vector.load %arg2[%c22, %c0_114] : memref<25x4xf32, #tpu.memory_space<vmem>>, vector<1x4xf32>
    %158 = vector.shape_cast %157 : vector<1x4xf32> to vector<1x1x4xf32>
    %159 = vector.broadcast %158 : vector<1x1x4xf32> to vector<16x16x4xf32>
    %160 = arith.mulf %156, %159 : vector<16x16x4xf32>
    %161 = arith.addf %154, %160 : vector<16x16x4xf32>
    %c0_115 = arith.constant 0 : index
    %c4_116 = arith.constant 4 : index
    %c3_117 = arith.constant 3 : index
    %c0_118 = arith.constant 0 : index
    %162 = vector.load %arg1[%c0_115, %c4_116, %c3_117, %c0_118] : memref<1x20x20x4xf32, #tpu.memory_space<vmem>>, vector<1x16x16x4xf32>
    %163 = vector.shape_cast %162 : vector<1x16x16x4xf32> to vector<16x16x4xf32>
    %c23 = arith.constant 23 : index
    %c0_119 = arith.constant 0 : index
    %164 = vector.load %arg2[%c23, %c0_119] : memref<25x4xf32, #tpu.memory_space<vmem>>, vector<1x4xf32>
    %165 = vector.shape_cast %164 : vector<1x4xf32> to vector<1x1x4xf32>
    %166 = vector.broadcast %165 : vector<1x1x4xf32> to vector<16x16x4xf32>
    %167 = arith.mulf %163, %166 : vector<16x16x4xf32>
    %168 = arith.addf %161, %167 : vector<16x16x4xf32>
    %c0_120 = arith.constant 0 : index
    %c4_121 = arith.constant 4 : index
    %c4_122 = arith.constant 4 : index
    %c0_123 = arith.constant 0 : index
    %169 = vector.load %arg1[%c0_120, %c4_121, %c4_122, %c0_123] : memref<1x20x20x4xf32, #tpu.memory_space<vmem>>, vector<1x16x16x4xf32>
    %170 = vector.shape_cast %169 : vector<1x16x16x4xf32> to vector<16x16x4xf32>
    %c24 = arith.constant 24 : index
    %c0_124 = arith.constant 0 : index
    %171 = vector.load %arg2[%c24, %c0_124] : memref<25x4xf32, #tpu.memory_space<vmem>>, vector<1x4xf32>
    %172 = vector.shape_cast %171 : vector<1x4xf32> to vector<1x1x4xf32>
    %173 = vector.broadcast %172 : vector<1x1x4xf32> to vector<16x16x4xf32>
    %174 = arith.mulf %170, %173 : vector<16x16x4xf32>
    %175 = arith.addf %168, %174 : vector<16x16x4xf32>
    %c0_125 = arith.constant 0 : index
    %c0_126 = arith.constant 0 : index
    %c0_127 = arith.constant 0 : index
    %c0_128 = arith.constant 0 : index
    %176 = vector.load %arg3[%c0_125, %c0_126, %c0_127, %c0_128] : memref<1x16x16x4xf32, #tpu.memory_space<vmem>>, vector<1x16x16x4xf32>
    %177 = vector.shape_cast %176 : vector<1x16x16x4xf32> to vector<16x16x4xf32>
    %178 = vector.shape_cast %175 : vector<16x16x4xf32> to vector<1x16x16x4xf32>
    tpu.vector_store %arg3[%c0_125, %c0_126, %c0_127, %c0_128], %178 {strides = array<i32>} : memref<1x16x16x4xf32, #tpu.memory_space<vmem>>, vector<1x16x16x4xf32>,
    return
  }
  func.func @transform_0(%arg0: i32) -> (i32, i32, i32, i32) {
    %c0_i32 = arith.constant 0 : i32
    %c0_i32_0 = arith.constant 0 : i32
    %c0_i32_1 = arith.constant 0 : i32
    %c0_i32_2 = arith.constant 0 : i32
    return %arg0, %c0_i32, %c0_i32_0, %c0_i32_1 : i32, i32, i32, i32
  }
  func.func @transform_1(%arg0: i32) -> (i32, i32) {
    %c0_i32 = arith.constant 0 : i32
    %c0_i32_0 = arith.constant 0 : i32
    %c0_i32_1 = arith.constant 0 : i32
    return %c0_i32, %c0_i32_0 : i32, i32
  }
  func.func @transform_2(%arg0: i32) -> (i32, i32, i32, i32) {
    %c0_i32 = arith.constant 0 : i32
    %c0_i32_0 = arith.constant 0 : i32
    %c0_i32_1 = arith.constant 0 : i32
    %c0_i32_2 = arith.constant 0 : i32
    return %arg0, %c0_i32, %c0_i32_0, %c0_i32_1 : i32, i32, i32, i32
  }
}

</mosaic_0001>

<llo_original>
// kernel: a_call__.1
$region0: #{a_call__.1}
  #allocation0 [shape = 'u32[]', space=smem, size = 0x4, offset = 0x4, fixed_abs, tag = 'smem constant byte address 0x4 - core index']
  #allocation1 [shape = 'u32[144,128]{1,0:T(1,128)}', space=vmem, size = 0x12000, scoped, tag = 'internal scratch']
  %s0 = inlined_call_operand.vmem [shape: f32[2,20,20,4], index: 0, kind: input, shape index: {}]
  %s1 = inlined_call_operand.vmem [shape: f32[25,4], index: 1, kind: input, shape index: {}]
  %s2 = inlined_call_operand.vmem [shape: f32[2,16,16,4], index: 2, kind: output, shape index: {}]
  %s3 = sld [smem:[#allocation0]]
  $region41: #{a_call__.1} parent=0
    _
  %s5 = ssub.s32 1, %s3
  %s6 = scalar_select 0, %s5, %s3
  loop: start=0, step=1, limit=4
  $region2: #{a_call__.1} parent=0 // loop_pre_header
    _
  $region3: #{a_call__.1} parent=0 // loop_header
    %s8 = sphi 0, %s12
    %p9 = scmp.ge.s32.totalorder %s8, 4
    %s18 = sphi 0, %s20
    %s21 = sphi 0, %s18
    %s22 = sphi 0, %s21
    %s38 = sphi 0, %s22
    %s42 = sphi 0, %s42
    %s44 = sphi 0, %s42
    %s45 = sphi 0, %s44
    %s59 = sphi 0, %s45
    %s65 = sphi 0, %s67
    %s68 = sphi 0, %s65
    %s69 = sphi 0, %s68
    %s85 = sphi 0, %s69
  $region4: #{a_call__.1} parent=0 // loop_header_branch
    %11 = sbr.rel (%p9) target = $region8
  $region5: #{a_call__.1} parent=0 // loop_body
    %s13 = ssub.s32 %s8, 1
    %s14 = ssub.s32 %s8, 2
    %s15 = sadd.s32 %s8, 1
    %s16 = ssub.s32 %s8, %s15
    %p17 = scmp.eq.s32.totalorder %s16, 0
    %s19 = sadd.s32 %s18, 1
    %s20 = scalar_select %p17, %s18, %s19
    %p23 = pneg %p17
    %p24 = scmp.eq.s32.totalorder %s8, 1
    %p25 = por %p23, %p24
    %p26 = scmp.ne.s32.totalorder %s18, %s21
    %p27 = scmp.eq.s32.totalorder %s8, 0
    %p28 = por %p26, %p27
    %p29 = scmp.ne.s32.totalorder %s18, %s21
    %p30 = scmp.eq.s32.totalorder %s13, 1
    %p31 = por %p29, %p30
    %p32 = scmp.ne.s32.totalorder %s21, %s22
    %p33 = scmp.eq.s32.totalorder %s13, 0
    %p34 = por %p32, %p33
    %p35 = scmp.ne.s32.totalorder %s21, %s22
    %p36 = scmp.eq.s32.totalorder %s14, 1
    %p37 = por %p35, %p36
    %p39 = scmp.ne.s32.totalorder %s22, %s38
    %p40 = scmp.eq.s32.totalorder %s14, 0
    %p41 = por %p39, %p40
    %s43 = sadd.s32 %s42, 1
    %p46 = scmp.eq.s32.totalorder %s8, 1
    %p47 = scmp.ne.s32.totalorder %s42, %s44
    %p48 = scmp.eq.s32.totalorder %s8, 0
    %p49 = por %p47, %p48
    %p50 = scmp.ne.s32.totalorder %s42, %s44
    %p51 = scmp.eq.s32.totalorder %s13, 1
    %p52 = por %p50, %p51
    %p53 = scmp.ne.s32.totalorder %s44, %s45
    %p54 = scmp.eq.s32.totalorder %s13, 0
    %p55 = por %p53, %p54
    %p56 = scmp.ne.s32.totalorder %s44, %s45
    %p57 = scmp.eq.s32.totalorder %s14, 1
    %p58 = por %p56, %p57
    %p60 = scmp.ne.s32.totalorder %s45, %s59
    %p61 = scmp.eq.s32.totalorder %s14, 0
    %p62 = por %p60, %p61
    %s63 = ssub.s32 %s8, %s15
    %p64 = scmp.eq.s32.totalorder %s63, 0
    %s66 = sadd.s32 %s65, 1
    %s67 = scalar_select %p64, %s65, %s66
    %p70 = pneg %p64
    %p71 = scmp.eq.s32.totalorder %s8, 1
    %p72 = por %p70, %p71
    %p73 = scmp.ne.s32.totalorder %s65, %s68
    %p74 = scmp.eq.s32.totalorder %s8, 0
    %p75 = por %p73, %p74
    %p76 = scmp.ne.s32.totalorder %s65, %s68
    %p77 = scmp.eq.s32.totalorder %s13, 1
    %p78 = por %p76, %p77
    %p79 = scmp.ne.s32.totalorder %s68, %s69
    %p80 = scmp.eq.s32.totalorder %s13, 0
    %p81 = por %p79, %p80
    %p82 = scmp.ne.s32.totalorder %s68, %s69
    %p83 = scmp.eq.s32.totalorder %s14, 1
    %p84 = por %p82, %p83
    %p86 = scmp.ne.s32.totalorder %s69, %s85
    %p87 = scmp.eq.s32.totalorder %s14, 0
    %p88 = por %p86, %p87
    %p89 = scmp.le.s32.totalorder 1, %s8
    %p90 = scmp.lt.s32.totalorder %s8, 3
    %p91 = pnand %p89, %p90
    %p92 = pneg %p91
    // Predicated region
    $region9: #{a_call__.1} parent=5 // pred_check
      _
    $region10: #{a_call__.1} parent=5 // pred_check_branch
      %94 = sbr.rel (%p91) target = $region12
    $region11: #{a_call__.1} parent=5 // pred_region
      %s95 = ssub.s32 %s8, 1
      // Predicated region
      $region13: #{a_call__.1} parent=11 // pred_check
        %p96 = pneg %p55
      $region14: #{a_call__.1} parent=11 // pred_check_branch
        %98 = sbr.rel (%p96) target = $region16
      $region15: #{a_call__.1} parent=11 // pred_region
        _
      $region16: #{a_call__.1} parent=11 // pred_fallthru
        _
    $region12: #{a_call__.1} parent=5 // pred_fallthru
      _
    %p99 = scmp.lt.s32.totalorder %s8, 2
    // Predicated region
    $region17: #{a_call__.1} parent=5 // pred_check
      %p100 = pneg %p99
    $region18: #{a_call__.1} parent=5 // pred_check_branch
      %102 = sbr.rel (%p100) target = $region20
    $region19: #{a_call__.1} parent=5 // pred_region
      // Predicated region
      $region21: #{a_call__.1} parent=19 // pred_check
        %p103 = pneg %p28
      $region22: #{a_call__.1} parent=19 // pred_check_branch
        %105 = sbr.rel (%p103) target = $region24
      $region23: #{a_call__.1} parent=19 // pred_region
        %p106 = scmp.lt.s32.totalorder %s8, 1
        %s107 = scalar_select %p106, %s8, 1
        %s108 = smul.addr %s107, 60
        %s109 = smul.addr %s108, 8
        %s110 = scalar_lea.vmem %s0, %s109
      $region24: #{a_call__.1} parent=19 // pred_fallthru
        _
    $region20: #{a_call__.1} parent=5 // pred_fallthru
      _
    %p111 = scmp.le.s32.totalorder 1, %s8
    %p112 = scmp.lt.s32.totalorder %s8, 3
    %p113 = pnand %p111, %p112
    %p114 = pneg %p113
    // Predicated region
    $region25: #{a_call__.1} parent=5 // pred_check
      _
    $region26: #{a_call__.1} parent=5 // pred_check_branch
      %116 = sbr.rel (%p113) target = $region28
    $region27: #{a_call__.1} parent=5 // pred_region
      %s117 = ssub.s32 %s8, 1
      %p118 = scmp.lt.s32.totalorder %s13, 1
      %s119 = scalar_select %p118, %s13, 1
      %s120 = smul.addr %s119, 60
      %s121 = smul.addr %s120, 8
      %s122 = scalar_lea.vmem %s0, %s121
      %p123 = pneg %p34
      %p124 = pneg %p31
      %p125 = pneg %p55
      %p126 = pneg %p52
      %p127 = pneg %p81
      %p128 = pneg %p78
      %p129 = scmp.lt.s32.totalorder %s13, 1
      %s130 = scalar_select %p129, %s13, 1
      %s131 = smul.addr %s130, 32
      %s132 = smul.addr %s131, 8
      %s133 = scalar_lea.vmem %s2, %s132
      %p134 = scmp.lt.s32.totalorder %s13, 1
      %s135 = scalar_select %p134, %s13, 1
      %s136 = smul.addr %s135, 60
      %s137 = smul.addr %s136, 8
      %s138 = scalar_lea.vmem %s0, %s137
      %p139 = scmp.lt.s32.totalorder %s13, 1
      %s140 = scalar_select %p139, %s13, 1
      %s141 = smul.addr %s140, 32
      %s142 = smul.addr %s141, 8
      %s143 = scalar_lea.vmem %s2, %s142
      %v144 = vld [vmem:[%s138] sm:$0xff]
      %v145 = vld [vmem:[%s138 + $0x8] sm:$0xff]
      %v146 = vld [vmem:[%s138 + $0x18] sm:$0xff]
      %v147 = vld [vmem:[%s138 + $0x20] sm:$0xff]
      %v148 = vld [vmem:[%s138 + $0x30] sm:$0xff]
      %v149 = vld [vmem:[%s138 + $0x38] sm:$0xff]
      %v150 = vld [vmem:[%s138 + $0x48] sm:$0xff]
      %v151 = vld [vmem:[%s138 + $0x50] sm:$0xff]
      %v152 = vld [vmem:[%s138 + $0x60] sm:$0xff]
      %v153 = vld [vmem:[%s138 + $0x68] sm:$0xff]
      %v154 = vld [vmem:[%s138 + $0x78] sm:$0xff]
      %v155 = vld [vmem:[%s138 + $0x80] sm:$0xff]
      %v156 = vld [vmem:[%s138 + $0x90] sm:$0xff]
      %v157 = vld [vmem:[%s138 + $0x98] sm:$0xff]
      %v158 = vld [vmem:[%s138 + $0xa8] sm:$0xff]
      %v159 = vld [vmem:[%s138 + $0xb0] sm:$0xff]
      %v160 = vld [vmem:[%s138 + $0xc0] sm:$0xff]
      %v161 = vld [vmem:[%s138 + $0xc8] sm:$0xff]
      %v162 = vld [vmem:[%s138 + $0xd8] sm:$0xff]
      %v163 = vld [vmem:[%s138 + $0xe0] sm:$0xff]
      %v164 = vld [vmem:[%s138 + $0xf0] sm:$0xff]
      %v165 = vld [vmem:[%s138 + $0xf8] sm:$0xff]
      %v166 = vld [vmem:[%s138 + $0x108] sm:$0xff]
      %v167 = vld [vmem:[%s138 + $0x110] sm:$0xff]
      %v168 = vld [vmem:[%s138 + $0x120] sm:$0xff]
      %v169 = vld [vmem:[%s138 + $0x128] sm:$0xff]
      %v170 = vld [vmem:[%s138 + $0x138] sm:$0xff]
      %v171 = vld [vmem:[%s138 + $0x140] sm:$0xff]
      %v172 = vld [vmem:[%s138 + $0x150] sm:$0xff]
      %v173 = vld [vmem:[%s138 + $0x158] sm:$0xff]
      %v174 = vld [vmem:[%s138 + $0x168] sm:$0xff]
      %v175 = vld [vmem:[%s138 + $0x170] sm:$0xff]
      %v176 = vld [vmem:[%s1] sm:$0x1]
      %v177 = vlaneseq
      %v178 = vshrl.u32 %v177, 7
      %v179 = vsub.s32 0, %v178
      %v180 = vrot.slane %v176, %v179
      %v181 = vmul.f32 %v144, %v180
      %v182 = vmul.f32 %v145, %v180
      %v183 = vmul.f32 %v146, %v180
      %v184 = vmul.f32 %v147, %v180
      %v185 = vmul.f32 %v148, %v180
      %v186 = vmul.f32 %v149, %v180
      %v187 = vmul.f32 %v150, %v180
      %v188 = vmul.f32 %v151, %v180
      %v189 = vmul.f32 %v152, %v180
      %v190 = vmul.f32 %v153, %v180
      %v191 = vmul.f32 %v154, %v180
      %v192 = vmul.f32 %v155, %v180
      %v193 = vmul.f32 %v156, %v180
      %v194 = vmul.f32 %v157, %v180
      %v195 = vmul.f32 %v158, %v180
      %v196 = vmul.f32 %v159, %v180
      %v197 = vmul.f32 %v160, %v180
      %v198 = vmul.f32 %v161, %v180
      %v199 = vmul.f32 %v162, %v180
      %v200 = vmul.f32 %v163, %v180
      %v201 = vmul.f32 %v164, %v180
      %v202 = vmul.f32 %v165, %v180
      %v203 = vmul.f32 %v166, %v180
      %v204 = vmul.f32 %v167, %v180
      %v205 = vmul.f32 %v168, %v180
      %v206 = vmul.f32 %v169, %v180
      %v207 = vmul.f32 %v170, %v180
      %v208 = vmul.f32 %v171, %v180
      %v209 = vmul.f32 %v172, %v180
      %v210 = vmul.f32 %v173, %v180
      %v211 = vmul.f32 %v174, %v180
      %v212 = vmul.f32 %v175, %v180
      %v213 = vadd.f32 %v181, 0.0
      %v214 = vadd.f32 %v182, 0.0
      %v215 = vadd.f32 %v183, 0.0
      %v216 = vadd.f32 %v184, 0.0
      %v217 = vadd.f32 %v185, 0.0
      %v218 = vadd.f32 %v186, 0.0
      %v219 = vadd.f32 %v187, 0.0
      %v220 = vadd.f32 %v188, 0.0
      %v221 = vadd.f32 %v189, 0.0
      %v222 = vadd.f32 %v190, 0.0
      %v223 = vadd.f32 %v191, 0.0
      %v224 = vadd.f32 %v192, 0.0
      %v225 = vadd.f32 %v193, 0.0
      %v226 = vadd.f32 %v194, 0.0
      %v227 = vadd.f32 %v195, 0.0
      %v228 = vadd.f32 %v196, 0.0
      %v229 = vadd.f32 %v197, 0.0
      %v230 = vadd.f32 %v198, 0.0
      %v231 = vadd.f32 %v199, 0.0
      %v232 = vadd.f32 %v200, 0.0
      %v233 = vadd.f32 %v201, 0.0
      %v234 = vadd.f32 %v202, 0.0
      %v235 = vadd.f32 %v203, 0.0
      %v236 = vadd.f32 %v204, 0.0
      %v237 = vadd.f32 %v205, 0.0
      %v238 = vadd.f32 %v206, 0.0
      %v239 = vadd.f32 %v207, 0.0
      %v240 = vadd.f32 %v208, 0.0
      %v241 = vadd.f32 %v209, 0.0
      %v242 = vadd.f32 %v210, 0.0
      %v243 = vadd.f32 %v211, 0.0
      %v244 = vadd.f32 %v212, 0.0
      %v245 = vld [vmem:[%s138 + $0x1] sm:$0xff]
      %v246 = vld [vmem:[%s138 + $0x9] sm:$0xff]
      %v247 = vld [vmem:[%s138 + $0x19] sm:$0xff]
      %v248 = vld [vmem:[%s138 + $0x21] sm:$0xff]
      %v249 = vld [vmem:[%s138 + $0x31] sm:$0xff]
      %v250 = vld [vmem:[%s138 + $0x39] sm:$0xff]
      %v251 = vld [vmem:[%s138 + $0x49] sm:$0xff]
      %v252 = vld [vmem:[%s138 + $0x51] sm:$0xff]
      %v253 = vld [vmem:[%s138 + $0x61] sm:$0xff]
      %v254 = vld [vmem:[%s138 + $0x69] sm:$0xff]
      %v255 = vld [vmem:[%s138 + $0x79] sm:$0xff]
      %v256 = vld [vmem:[%s138 + $0x81] sm:$0xff]
      %v257 = vld [vmem:[%s138 + $0x91] sm:$0xff]
      %v258 = vld [vmem:[%s138 + $0x99] sm:$0xff]
      %v259 = vld [vmem:[%s138 + $0xa9] sm:$0xff]
      %v260 = vld [vmem:[%s138 + $0xb1] sm:$0xff]
      %v261 = vld [vmem:[%s138 + $0xc1] sm:$0xff]
      %v262 = vld [vmem:[%s138 + $0xc9] sm:$0xff]
      %v263 = vld [vmem:[%s138 + $0xd9] sm:$0xff]
      %v264 = vld [vmem:[%s138 + $0xe1] sm:$0xff]
      %v265 = vld [vmem:[%s138 + $0xf1] sm:$0xff]
      %v266 = vld [vmem:[%s138 + $0xf9] sm:$0xff]
      %v267 = vld [vmem:[%s138 + $0x109] sm:$0xff]
      %v268 = vld [vmem:[%s138 + $0x111] sm:$0xff]
      %v269 = vld [vmem:[%s138 + $0x121] sm:$0xff]
      %v270 = vld [vmem:[%s138 + $0x129] sm:$0xff]
      %v271 = vld [vmem:[%s138 + $0x139] sm:$0xff]
      %v272 = vld [vmem:[%s138 + $0x141] sm:$0xff]
      %v273 = vld [vmem:[%s138 + $0x151] sm:$0xff]
      %v274 = vld [vmem:[%s138 + $0x159] sm:$0xff]
      %v275 = vld [vmem:[%s138 + $0x169] sm:$0xff]
      %v276 = vld [vmem:[%s138 + $0x171] sm:$0xff]
      %v277 = vld [vmem:[%s1 + $0x1] sm:$0x1]
      %v278 = vlaneseq
      %v279 = vshrl.u32 %v278, 7
      %v280 = vsub.s32 0, %v279
      %v281 = vrot.slane %v277, %v280
      %v282 = vmul.f32 %v245, %v281
      %v283 = vmul.f32 %v246, %v281
      %v284 = vmul.f32 %v247, %v281
      %v285 = vmul.f32 %v248, %v281
      %v286 = vmul.f32 %v249, %v281
      %v287 = vmul.f32 %v250, %v281
      %v288 = vmul.f32 %v251, %v281
      %v289 = vmul.f32 %v252, %v281
      %v290 = vmul.f32 %v253, %v281
      %v291 = vmul.f32 %v254, %v281
      %v292 = vmul.f32 %v255, %v281
      %v293 = vmul.f32 %v256, %v281
      %v294 = vmul.f32 %v257, %v281
      %v295 = vmul.f32 %v258, %v281
      %v296 = vmul.f32 %v259, %v281
      %v297 = vmul.f32 %v260, %v281
      %v298 = vmul.f32 %v261, %v281
      %v299 = vmul.f32 %v262, %v281
      %v300 = vmul.f32 %v263, %v281
      %v301 = vmul.f32 %v264, %v281
      %v302 = vmul.f32 %v265, %v281
      %v303 = vmul.f32 %v266, %v281
      %v304 = vmul.f32 %v267, %v281
      %v305 = vmul.f32 %v268, %v281
      %v306 = vmul.f32 %v269, %v281
      %v307 = vmul.f32 %v270, %v281
      %v308 = vmul.f32 %v271, %v281
      %v309 = vmul.f32 %v272, %v281
      %v310 = vmul.f32 %v273, %v281
      %v311 = vmul.f32 %v274, %v281
      %v312 = vmul.f32 %v275, %v281
      %v313 = vmul.f32 %v276, %v281
      %v314 = vadd.f32 %v213, %v282
      %v315 = vadd.f32 %v214, %v283
      %v316 = vadd.f32 %v215, %v284
      %v317 = vadd.f32 %v216, %v285
      %v318 = vadd.f32 %v217, %v286
      %v319 = vadd.f32 %v218, %v287
      %v320 = vadd.f32 %v219, %v288
      %v321 = vadd.f32 %v220, %v289
      %v322 = vadd.f32 %v221, %v290
      %v323 = vadd.f32 %v222, %v291
      %v324 = vadd.f32 %v223, %v292
      %v325 = vadd.f32 %v224, %v293
      %v326 = vadd.f32 %v225, %v294
      %v327 = vadd.f32 %v226, %v295
      %v328 = vadd.f32 %v227, %v296
      %v329 = vadd.f32 %v228, %v297
      %v330 = vadd.f32 %v229, %v298
      %v331 = vadd.f32 %v230, %v299
      %v332 = vadd.f32 %v231, %v300
      %v333 = vadd.f32 %v232, %v301
      %v334 = vadd.f32 %v233, %v302
      %v335 = vadd.f32 %v234, %v303
      %v336 = vadd.f32 %v235, %v304
      %v337 = vadd.f32 %v236, %v305
      %v338 = vadd.f32 %v237, %v306
      %v339 = vadd.f32 %v238, %v307
      %v340 = vadd.f32 %v239, %v308
      %v341 = vadd.f32 %v240, %v309
      %v342 = vadd.f32 %v241, %v310
      %v343 = vadd.f32 %v242, %v311
      %v344 = vadd.f32 %v243, %v312
      %v345 = vadd.f32 %v244, %v313
      %v346 = vld [vmem:[%s138 + $0x2] sm:$0xff]
      %v347 = vld [vmem:[%s138 + $0xa] sm:$0xff]
      %v348 = vld [vmem:[%s138 + $0x1a] sm:$0xff]
      %v349 = vld [vmem:[%s138 + $0x22] sm:$0xff]
      %v350 = vld [vmem:[%s138 + $0x32] sm:$0xff]
      %v351 = vld [vmem:[%s138 + $0x3a] sm:$0xff]
      %v352 = vld [vmem:[%s138 + $0x4a] sm:$0xff]
      %v353 = vld [vmem:[%s138 + $0x52] sm:$0xff]
      %v354 = vld [vmem:[%s138 + $0x62] sm:$0xff]
      %v355 = vld [vmem:[%s138 + $0x6a] sm:$0xff]
      %v356 = vld [vmem:[%s138 + $0x7a] sm:$0xff]
      %v357 = vld [vmem:[%s138 + $0x82] sm:$0xff]
      %v358 = vld [vmem:[%s138 + $0x92] sm:$0xff]
      %v359 = vld [vmem:[%s138 + $0x9a] sm:$0xff]
      %v360 = vld [vmem:[%s138 + $0xaa] sm:$0xff]
      %v361 = vld [vmem:[%s138 + $0xb2] sm:$0xff]
      %v362 = vld [vmem:[%s138 + $0xc2] sm:$0xff]
      %v363 = vld [vmem:[%s138 + $0xca] sm:$0xff]
      %v364 = vld [vmem:[%s138 + $0xda] sm:$0xff]
      %v365 = vld [vmem:[%s138 + $0xe2] sm:$0xff]
      %v366 = vld [vmem:[%s138 + $0xf2] sm:$0xff]
      %v367 = vld [vmem:[%s138 + $0xfa] sm:$0xff]
      %v368 = vld [vmem:[%s138 + $0x10a] sm:$0xff]
      %v369 = vld [vmem:[%s138 + $0x112] sm:$0xff]
      %v370 = vld [vmem:[%s138 + $0x122] sm:$0xff]
      %v371 = vld [vmem:[%s138 + $0x12a] sm:$0xff]
      %v372 = vld [vmem:[%s138 + $0x13a] sm:$0xff]
      %v373 = vld [vmem:[%s138 + $0x142] sm:$0xff]
      %v374 = vld [vmem:[%s138 + $0x152] sm:$0xff]
      %v375 = vld [vmem:[%s138 + $0x15a] sm:$0xff]
      %v376 = vld [vmem:[%s138 + $0x16a] sm:$0xff]
      %v377 = vld [vmem:[%s138 + $0x172] sm:$0xff]
      %v378 = vld [vmem:[%s1 + $0x2] sm:$0x1]
      %v379 = vlaneseq
      %v380 = vshrl.u32 %v379, 7
      %v381 = vsub.s32 0, %v380
      %v382 = vrot.slane %v378, %v381
      %v383 = vmul.f32 %v346, %v382
      %v384 = vmul.f32 %v347, %v382
      %v385 = vmul.f32 %v348, %v382
      %v386 = vmul.f32 %v349, %v382
      %v387 = vmul.f32 %v350, %v382
      %v388 = vmul.f32 %v351, %v382
      %v389 = vmul.f32 %v352, %v382
      %v390 = vmul.f32 %v353, %v382
      %v391 = vmul.f32 %v354, %v382
      %v392 = vmul.f32 %v355, %v382
      %v393 = vmul.f32 %v356, %v382
      %v394 = vmul.f32 %v357, %v382
      %v395 = vmul.f32 %v358, %v382
      %v396 = vmul.f32 %v359, %v382
      %v397 = vmul.f32 %v360, %v382
      %v398 = vmul.f32 %v361, %v382
      %v399 = vmul.f32 %v362, %v382
      %v400 = vmul.f32 %v363, %v382
      %v401 = vmul.f32 %v364, %v382
      %v402 = vmul.f32 %v365, %v382
      %v403 = vmul.f32 %v366, %v382
      %v404 = vmul.f32 %v367, %v382
      %v405 = vmul.f32 %v368, %v382
      %v406 = vmul.f32 %v369, %v382
      %v407 = vmul.f32 %v370, %v382
      %v408 = vmul.f32 %v371, %v382
      %v409 = vmul.f32 %v372, %v382
      %v410 = vmul.f32 %v373, %v382
      %v411 = vmul.f32 %v374, %v382
      %v412 = vmul.f32 %v375, %v382
      %v413 = vmul.f32 %v376, %v382
      %v414 = vmul.f32 %v377, %v382
      %v415 = vadd.f32 %v314, %v383
      %v416 = vadd.f32 %v315, %v384
      %v417 = vadd.f32 %v316, %v385
      %v418 = vadd.f32 %v317, %v386
      %v419 = vadd.f32 %v318, %v387
      %v420 = vadd.f32 %v319, %v388
      %v421 = vadd.f32 %v320, %v389
      %v422 = vadd.f32 %v321, %v390
      %v423 = vadd.f32 %v322, %v391
      %v424 = vadd.f32 %v323, %v392
      %v425 = vadd.f32 %v324, %v393
      %v426 = vadd.f32 %v325, %v394
      %v427 = vadd.f32 %v326, %v395
      %v428 = vadd.f32 %v327, %v396
      %v429 = vadd.f32 %v328, %v397
      %v430 = vadd.f32 %v329, %v398
      %v431 = vadd.f32 %v330, %v399
      %v432 = vadd.f32 %v331, %v400
      %v433 = vadd.f32 %v332, %v401
      %v434 = vadd.f32 %v333, %v402
      %v435 = vadd.f32 %v334, %v403
      %v436 = vadd.f32 %v335, %v404
      %v437 = vadd.f32 %v336, %v405
      %v438 = vadd.f32 %v337, %v406
      %v439 = vadd.f32 %v338, %v407
      %v440 = vadd.f32 %v339, %v408
      %v441 = vadd.f32 %v340, %v409
      %v442 = vadd.f32 %v341, %v410
      %v443 = vadd.f32 %v342, %v411
      %v444 = vadd.f32 %v343, %v412
      %v445 = vadd.f32 %v344, %v413
      %v446 = vadd.f32 %v345, %v414
      %v447 = vld [vmem:[%s138 + $0x3] sm:$0xff]
      %v448 = vld [vmem:[%s138 + $0xb] sm:$0xff]
      %v449 = vld [vmem:[%s138 + $0x1b] sm:$0xff]
      %v450 = vld [vmem:[%s138 + $0x23] sm:$0xff]
      %v451 = vld [vmem:[%s138 + $0x33] sm:$0xff]
      %v452 = vld [vmem:[%s138 + $0x3b] sm:$0xff]
      %v453 = vld [vmem:[%s138 + $0x4b] sm:$0xff]
      %v454 = vld [vmem:[%s138 + $0x53] sm:$0xff]
      %v455 = vld [vmem:[%s138 + $0x63] sm:$0xff]
      %v456 = vld [vmem:[%s138 + $0x6b] sm:$0xff]
      %v457 = vld [vmem:[%s138 + $0x7b] sm:$0xff]
      %v458 = vld [vmem:[%s138 + $0x83] sm:$0xff]
      %v459 = vld [vmem:[%s138 + $0x93] sm:$0xff]
      %v460 = vld [vmem:[%s138 + $0x9b] sm:$0xff]
      %v461 = vld [vmem:[%s138 + $0xab] sm:$0xff]
      %v462 = vld [vmem:[%s138 + $0xb3] sm:$0xff]
      %v463 = vld [vmem:[%s138 + $0xc3] sm:$0xff]
      %v464 = vld [vmem:[%s138 + $0xcb] sm:$0xff]
      %v465 = vld [vmem:[%s138 + $0xdb] sm:$0xff]
      %v466 = vld [vmem:[%s138 + $0xe3] sm:$0xff]
      %v467 = vld [vmem:[%s138 + $0xf3] sm:$0xff]
      %v468 = vld [vmem:[%s138 + $0xfb] sm:$0xff]
      %v469 = vld [vmem:[%s138 + $0x10b] sm:$0xff]
      %v470 = vld [vmem:[%s138 + $0x113] sm:$0xff]
      %v471 = vld [vmem:[%s138 + $0x123] sm:$0xff]
      %v472 = vld [vmem:[%s138 + $0x12b] sm:$0xff]
      %v473 = vld [vmem:[%s138 + $0x13b] sm:$0xff]
      %v474 = vld [vmem:[%s138 + $0x143] sm:$0xff]
      %v475 = vld [vmem:[%s138 + $0x153] sm:$0xff]
      %v476 = vld [vmem:[%s138 + $0x15b] sm:$0xff]
      %v477 = vld [vmem:[%s138 + $0x16b] sm:$0xff]
      %v478 = vld [vmem:[%s138 + $0x173] sm:$0xff]
      %v479 = vld [vmem:[%s1 + $0x3] sm:$0x1]
      %v480 = vlaneseq
      %v481 = vshrl.u32 %v480, 7
      %v482 = vsub.s32 0, %v481
      %v483 = vrot.slane %v479, %v482
      %v484 = vmul.f32 %v447, %v483
      %v485 = vmul.f32 %v448, %v483
      %v486 = vmul.f32 %v449, %v483
      %v487 = vmul.f32 %v450, %v483
      %v488 = vmul.f32 %v451, %v483
      %v489 = vmul.f32 %v452, %v483
      %v490 = vmul.f32 %v453, %v483
      %v491 = vmul.f32 %v454, %v483
      %v492 = vmul.f32 %v455, %v483
      %v493 = vmul.f32 %v456, %v483
      %v494 = vmul.f32 %v457, %v483
      %v495 = vmul.f32 %v458, %v483
      %v496 = vmul.f32 %v459, %v483
      %v497 = vmul.f32 %v460, %v483
      %v498 = vmul.f32 %v461, %v483
      %v499 = vmul.f32 %v462, %v483
      %v500 = vmul.f32 %v463, %v483
      %v501 = vmul.f32 %v464, %v483
      %v502 = vmul.f32 %v465, %v483
      %v503 = vmul.f32 %v466, %v483
      %v504 = vmul.f32 %v467, %v483
      %v505 = vmul.f32 %v468, %v483
      %v506 = vmul.f32 %v469, %v483
      %v507 = vmul.f32 %v470, %v483
      %v508 = vmul.f32 %v471, %v483
      %v509 = vmul.f32 %v472, %v483
      %v510 = vmul.f32 %v473, %v483
      %v511 = vmul.f32 %v474, %v483
      %v512 = vmul.f32 %v475, %v483
      %v513 = vmul.f32 %v476, %v483
      %v514 = vmul.f32 %v477, %v483
      %v515 = vmul.f32 %v478, %v483
      %v516 = vadd.f32 %v415, %v484
      %v517 = vadd.f32 %v416, %v485
      %v518 = vadd.f32 %v417, %v486
      %v519 = vadd.f32 %v418, %v487
      %v520 = vadd.f32 %v419, %v488
      %v521 = vadd.f32 %v420, %v489
      %v522 = vadd.f32 %v421, %v490
      %v523 = vadd.f32 %v422, %v491
      %v524 = vadd.f32 %v423, %v492
      %v525 = vadd.f32 %v424, %v493
      %v526 = vadd.f32 %v425, %v494
      %v527 = vadd.f32 %v426, %v495
      %v528 = vadd.f32 %v427, %v496
      %v529 = vadd.f32 %v428, %v497
      %v530 = vadd.f32 %v429, %v498
      %v531 = vadd.f32 %v430, %v499
      %v532 = vadd.f32 %v431, %v500
      %v533 = vadd.f32 %v432, %v501
      %v534 = vadd.f32 %v433, %v502
      %v535 = vadd.f32 %v434, %v503
      %v536 = vadd.f32 %v435, %v504
      %v537 = vadd.f32 %v436, %v505
      %v538 = vadd.f32 %v437, %v506
      %v539 = vadd.f32 %v438, %v507
      %v540 = vadd.f32 %v439, %v508
      %v541 = vadd.f32 %v440, %v509
      %v542 = vadd.f32 %v441, %v510
      %v543 = vadd.f32 %v442, %v511
      %v544 = vadd.f32 %v443, %v512
      %v545 = vadd.f32 %v444, %v513
      %v546 = vadd.f32 %v445, %v514
      %v547 = vadd.f32 %v446, %v515
      %v548 = vld [vmem:[%s138 + $0x4] sm:$0xff]
      %v549 = vld [vmem:[%s138 + $0xc] sm:$0xff]
      %v550 = vld [vmem:[%s138 + $0x1c] sm:$0xff]
      %v551 = vld [vmem:[%s138 + $0x24] sm:$0xff]
      %v552 = vld [vmem:[%s138 + $0x34] sm:$0xff]
      %v553 = vld [vmem:[%s138 + $0x3c] sm:$0xff]
      %v554 = vld [vmem:[%s138 + $0x4c] sm:$0xff]
      %v555 = vld [vmem:[%s138 + $0x54] sm:$0xff]
      %v556 = vld [vmem:[%s138 + $0x64] sm:$0xff]
      %v557 = vld [vmem:[%s138 + $0x6c] sm:$0xff]
      %v558 = vld [vmem:[%s138 + $0x7c] sm:$0xff]
      %v559 = vld [vmem:[%s138 + $0x84] sm:$0xff]
      %v560 = vld [vmem:[%s138 + $0x94] sm:$0xff]
      %v561 = vld [vmem:[%s138 + $0x9c] sm:$0xff]
      %v562 = vld [vmem:[%s138 + $0xac] sm:$0xff]
      %v563 = vld [vmem:[%s138 + $0xb4] sm:$0xff]
      %v564 = vld [vmem:[%s138 + $0xc4] sm:$0xff]
      %v565 = vld [vmem:[%s138 + $0xcc] sm:$0xff]
      %v566 = vld [vmem:[%s138 + $0xdc] sm:$0xff]
      %v567 = vld [vmem:[%s138 + $0xe4] sm:$0xff]
      %v568 = vld [vmem:[%s138 + $0xf4] sm:$0xff]
      %v569 = vld [vmem:[%s138 + $0xfc] sm:$0xff]
      %v570 = vld [vmem:[%s138 + $0x10c] sm:$0xff]
      %v571 = vld [vmem:[%s138 + $0x114] sm:$0xff]
      %v572 = vld [vmem:[%s138 + $0x124] sm:$0xff]
      %v573 = vld [vmem:[%s138 + $0x12c] sm:$0xff]
      %v574 = vld [vmem:[%s138 + $0x13c] sm:$0xff]
      %v575 = vld [vmem:[%s138 + $0x144] sm:$0xff]
      %v576 = vld [vmem:[%s138 + $0x154] sm:$0xff]
      %v577 = vld [vmem:[%s138 + $0x15c] sm:$0xff]
      %v578 = vld [vmem:[%s138 + $0x16c] sm:$0xff]
      %v579 = vld [vmem:[%s138 + $0x174] sm:$0xff]
      %v580 = vld [vmem:[%s1 + $0x4] sm:$0x1]
      %v581 = vlaneseq
      %v582 = vshrl.u32 %v581, 7
      %v583 = vsub.s32 0, %v582
      %v584 = vrot.slane %v580, %v583
      %v585 = vmul.f32 %v548, %v584
      %v586 = vmul.f32 %v549, %v584
      %v587 = vmul.f32 %v550, %v584
      %v588 = vmul.f32 %v551, %v584
      %v589 = vmul.f32 %v552, %v584
      %v590 = vmul.f32 %v553, %v584
      %v591 = vmul.f32 %v554, %v584
      %v592 = vmul.f32 %v555, %v584
      %v593 = vmul.f32 %v556, %v584
      %v594 = vmul.f32 %v557, %v584
      %v595 = vmul.f32 %v558, %v584
      %v596 = vmul.f32 %v559, %v584
      %v597 = vmul.f32 %v560, %v584
      %v598 = vmul.f32 %v561, %v584
      %v599 = vmul.f32 %v562, %v584
      %v600 = vmul.f32 %v563, %v584
      %v601 = vmul.f32 %v564, %v584
      %v602 = vmul.f32 %v565, %v584
      %v603 = vmul.f32 %v566, %v584
      %v604 = vmul.f32 %v567, %v584
      %v605 = vmul.f32 %v568, %v584
      %v606 = vmul.f32 %v569, %v584
      %v607 = vmul.f32 %v570, %v584
      %v608 = vmul.f32 %v571, %v584
      %v609 = vmul.f32 %v572, %v584
      %v610 = vmul.f32 %v573, %v584
      %v611 = vmul.f32 %v574, %v584
      %v612 = vmul.f32 %v575, %v584
      %v613 = vmul.f32 %v576, %v584
      %v614 = vmul.f32 %v577, %v584
      %v615 = vmul.f32 %v578, %v584
      %v616 = vmul.f32 %v579, %v584
      %v617 = vadd.f32 %v516, %v585
      %v618 = vadd.f32 %v517, %v586
      %v619 = vadd.f32 %v518, %v587
      %v620 = vadd.f32 %v519, %v588
      %v621 = vadd.f32 %v520, %v589
      %v622 = vadd.f32 %v521, %v590
      %v623 = vadd.f32 %v522, %v591
      %v624 = vadd.f32 %v523, %v592
      %v625 = vadd.f32 %v524, %v593
      %v626 = vadd.f32 %v525, %v594
      %v627 = vadd.f32 %v526, %v595
      %v628 = vadd.f32 %v527, %v596
      %v629 = vadd.f32 %v528, %v597
      %v630 = vadd.f32 %v529, %v598
      %v631 = vadd.f32 %v530, %v599
      %v632 = vadd.f32 %v531, %v600
      %v633 = vadd.f32 %v532, %v601
      %v634 = vadd.f32 %v533, %v602
      %v635 = vadd.f32 %v534, %v603
      %v636 = vadd.f32 %v535, %v604
      %v637 = vadd.f32 %v536, %v605
      %v638 = vadd.f32 %v537, %v606
      %v639 = vadd.f32 %v538, %v607
      %v640 = vadd.f32 %v539, %v608
      %v641 = vadd.f32 %v540, %v609
      %v642 = vadd.f32 %v541, %v610
      %v643 = vadd.f32 %v542, %v611
      %v644 = vadd.f32 %v543, %v612
      %v645 = vadd.f32 %v544, %v613
      %v646 = vadd.f32 %v545, %v614
      %v647 = vadd.f32 %v546, %v615
      %v648 = vadd.f32 %v547, %v616
      %s649 = scalar_lea.vmem %s138, 24
      %v650 = vld [vmem:[%s649] sm:$0xff]
      %v651 = vld [vmem:[%s649 + $0x8] sm:$0xff]
      %v652 = vld [vmem:[%s649 + $0x18] sm:$0xff]
      %v653 = vld [vmem:[%s649 + $0x20] sm:$0xff]
      %v654 = vld [vmem:[%s649 + $0x30] sm:$0xff]
      %v655 = vld [vmem:[%s649 + $0x38] sm:$0xff]
      %v656 = vld [vmem:[%s649 + $0x48] sm:$0xff]
      %v657 = vld [vmem:[%s649 + $0x50] sm:$0xff]
      %v658 = vld [vmem:[%s649 + $0x60] sm:$0xff]
      %v659 = vld [vmem:[%s649 + $0x68] sm:$0xff]
      %v660 = vld [vmem:[%s649 + $0x78] sm:$0xff]
      %v661 = vld [vmem:[%s649 + $0x80] sm:$0xff]
      %v662 = vld [vmem:[%s649 + $0x90] sm:$0xff]
      %v663 = vld [vmem:[%s649 + $0x98] sm:$0xff]
      %v664 = vld [vmem:[%s649 + $0xa8] sm:$0xff]
      %v665 = vld [vmem:[%s649 + $0xb0] sm:$0xff]
      %v666 = vld [vmem:[%s649 + $0xc0] sm:$0xff]
      %v667 = vld [vmem:[%s649 + $0xc8] sm:$0xff]
      %v668 = vld [vmem:[%s649 + $0xd8] sm:$0xff]
      %v669 = vld [vmem:[%s649 + $0xe0] sm:$0xff]
      %v670 = vld [vmem:[%s649 + $0xf0] sm:$0xff]
      %v671 = vld [vmem:[%s649 + $0xf8] sm:$0xff]
      %v672 = vld [vmem:[%s649 + $0x108] sm:$0xff]
      %v673 = vld [vmem:[%s649 + $0x110] sm:$0xff]
      %v674 = vld [vmem:[%s649 + $0x120] sm:$0xff]
      %v675 = vld [vmem:[%s649 + $0x128] sm:$0xff]
      %v676 = vld [vmem:[%s649 + $0x138] sm:$0xff]
      %v677 = vld [vmem:[%s649 + $0x140] sm:$0xff]
      %v678 = vld [vmem:[%s649 + $0x150] sm:$0xff]
      %v679 = vld [vmem:[%s649 + $0x158] sm:$0xff]
      %v680 = vld [vmem:[%s649 + $0x168] sm:$0xff]
      %v681 = vld [vmem:[%s649 + $0x170] sm:$0xff]
      %v682 = vld [vmem:[%s1 + $0x5] sm:$0x1]
      %v683 = vlaneseq
      %v684 = vshrl.u32 %v683, 7
      %v685 = vsub.s32 0, %v684
      %v686 = vrot.slane %v682, %v685
      %v687 = vmul.f32 %v650, %v686
      %v688 = vmul.f32 %v651, %v686
      %v689 = vmul.f32 %v652, %v686
      %v690 = vmul.f32 %v653, %v686
      %v691 = vmul.f32 %v654, %v686
      %v692 = vmul.f32 %v655, %v686
      %v693 = vmul.f32 %v656, %v686
      %v694 = vmul.f32 %v657, %v686
      %v695 = vmul.f32 %v658, %v686
      %v696 = vmul.f32 %v659, %v686
      %v697 = vmul.f32 %v660, %v686
      %v698 = vmul.f32 %v661, %v686
      %v699 = vmul.f32 %v662, %v686
      %v700 = vmul.f32 %v663, %v686
      %v701 = vmul.f32 %v664, %v686
      %v702 = vmul.f32 %v665, %v686
      %v703 = vmul.f32 %v666, %v686
      %v704 = vmul.f32 %v667, %v686
      %v705 = vmul.f32 %v668, %v686
      %v706 = vmul.f32 %v669, %v686
      %v707 = vmul.f32 %v670, %v686
      %v708 = vmul.f32 %v671, %v686
      %v709 = vmul.f32 %v672, %v686
      %v710 = vmul.f32 %v673, %v686
      %v711 = vmul.f32 %v674, %v686
      %v712 = vmul.f32 %v675, %v686
      %v713 = vmul.f32 %v676, %v686
      %v714 = vmul.f32 %v677, %v686
      %v715 = vmul.f32 %v678, %v686
      %v716 = vmul.f32 %v679, %v686
      %v717 = vmul.f32 %v680, %v686
      %v718 = vmul.f32 %v681, %v686
      %v719 = vadd.f32 %v617, %v687
      %v720 = vadd.f32 %v618, %v688
      %v721 = vadd.f32 %v619, %v689
      %v722 = vadd.f32 %v620, %v690
      %v723 = vadd.f32 %v621, %v691
      %v724 = vadd.f32 %v622, %v692
      %v725 = vadd.f32 %v623, %v693
      %v726 = vadd.f32 %v624, %v694
      %v727 = vadd.f32 %v625, %v695
      %v728 = vadd.f32 %v626, %v696
      %v729 = vadd.f32 %v627, %v697
      %v730 = vadd.f32 %v628, %v698
      %v731 = vadd.f32 %v629, %v699
      %v732 = vadd.f32 %v630, %v700
      %v733 = vadd.f32 %v631, %v701
      %v734 = vadd.f32 %v632, %v702
      %v735 = vadd.f32 %v633, %v703
      %v736 = vadd.f32 %v634, %v704
      %v737 = vadd.f32 %v635, %v705
      %v738 = vadd.f32 %v636, %v706
      %v739 = vadd.f32 %v637, %v707
      %v740 = vadd.f32 %v638, %v708
      %v741 = vadd.f32 %v639, %v709
      %v742 = vadd.f32 %v640, %v710
      %v743 = vadd.f32 %v641, %v711
      %v744 = vadd.f32 %v642, %v712
      %v745 = vadd.f32 %v643, %v713
      %v746 = vadd.f32 %v644, %v714
      %v747 = vadd.f32 %v645, %v715
      %v748 = vadd.f32 %v646, %v716
      %v749 = vadd.f32 %v647, %v717
      %v750 = vadd.f32 %v648, %v718
      %v751 = vld [vmem:[%s649 + $0x1] sm:$0xff]
      %v752 = vld [vmem:[%s649 + $0x9] sm:$0xff]
      %v753 = vld [vmem:[%s649 + $0x19] sm:$0xff]
      %v754 = vld [vmem:[%s649 + $0x21] sm:$0xff]
      %v755 = vld [vmem:[%s649 + $0x31] sm:$0xff]
      %v756 = vld [vmem:[%s649 + $0x39] sm:$0xff]
      %v757 = vld [vmem:[%s649 + $0x49] sm:$0xff]
      %v758 = vld [vmem:[%s649 + $0x51] sm:$0xff]
      %v759 = vld [vmem:[%s649 + $0x61] sm:$0xff]
      %v760 = vld [vmem:[%s649 + $0x69] sm:$0xff]
      %v761 = vld [vmem:[%s649 + $0x79] sm:$0xff]
      %v762 = vld [vmem:[%s649 + $0x81] sm:$0xff]
      %v763 = vld [vmem:[%s649 + $0x91] sm:$0xff]
      %v764 = vld [vmem:[%s649 + $0x99] sm:$0xff]
      %v765 = vld [vmem:[%s649 + $0xa9] sm:$0xff]
      %v766 = vld [vmem:[%s649 + $0xb1] sm:$0xff]
      %v767 = vld [vmem:[%s649 + $0xc1] sm:$0xff]
      %v768 = vld [vmem:[%s649 + $0xc9] sm:$0xff]
      %v769 = vld [vmem:[%s649 + $0xd9] sm:$0xff]
      %v770 = vld [vmem:[%s649 + $0xe1] sm:$0xff]
      %v771 = vld [vmem:[%s649 + $0xf1] sm:$0xff]
      %v772 = vld [vmem:[%s649 + $0xf9] sm:$0xff]
      %v773 = vld [vmem:[%s649 + $0x109] sm:$0xff]
      %v774 = vld [vmem:[%s649 + $0x111] sm:$0xff]
      %v775 = vld [vmem:[%s649 + $0x121] sm:$0xff]
      %v776 = vld [vmem:[%s649 + $0x129] sm:$0xff]
      %v777 = vld [vmem:[%s649 + $0x139] sm:$0xff]
      %v778 = vld [vmem:[%s649 + $0x141] sm:$0xff]
      %v779 = vld [vmem:[%s649 + $0x151] sm:$0xff]
      %v780 = vld [vmem:[%s649 + $0x159] sm:$0xff]
      %v781 = vld [vmem:[%s649 + $0x169] sm:$0xff]
      %v782 = vld [vmem:[%s649 + $0x171] sm:$0xff]
      %v783 = vld [vmem:[%s1 + $0x6] sm:$0x1]
      %v784 = vlaneseq
      %v785 = vshrl.u32 %v784, 7
      %v786 = vsub.s32 0, %v785
      %v787 = vrot.slane %v783, %v786
      %v788 = vmul.f32 %v751, %v787
      %v789 = vmul.f32 %v752, %v787
      %v790 = vmul.f32 %v753, %v787
      %v791 = vmul.f32 %v754, %v787
      %v792 = vmul.f32 %v755, %v787
      %v793 = vmul.f32 %v756, %v787
      %v794 = vmul.f32 %v757, %v787
      %v795 = vmul.f32 %v758, %v787
      %v796 = vmul.f32 %v759, %v787
      %v797 = vmul.f32 %v760, %v787
      %v798 = vmul.f32 %v761, %v787
      %v799 = vmul.f32 %v762, %v787
      %v800 = vmul.f32 %v763, %v787
      %v801 = vmul.f32 %v764, %v787
      %v802 = vmul.f32 %v765, %v787
      %v803 = vmul.f32 %v766, %v787
      %v804 = vmul.f32 %v767, %v787
      %v805 = vmul.f32 %v768, %v787
      %v806 = vmul.f32 %v769, %v787
      %v807 = vmul.f32 %v770, %v787
      %v808 = vmul.f32 %v771, %v787
      %v809 = vmul.f32 %v772, %v787
      %v810 = vmul.f32 %v773, %v787
      %v811 = vmul.f32 %v774, %v787
      %v812 = vmul.f32 %v775, %v787
      %v813 = vmul.f32 %v776, %v787
      %v814 = vmul.f32 %v777, %v787
      %v815 = vmul.f32 %v778, %v787
      %v816 = vmul.f32 %v779, %v787
      %v817 = vmul.f32 %v780, %v787
      %v818 = vmul.f32 %v781, %v787
      %v819 = vmul.f32 %v782, %v787
      %v820 = vadd.f32 %v719, %v788
      %v821 = vadd.f32 %v720, %v789
      %v822 = vadd.f32 %v721, %v790
      %v823 = vadd.f32 %v722, %v791
      %v824 = vadd.f32 %v723, %v792
      %v825 = vadd.f32 %v724, %v793
      %v826 = vadd.f32 %v725, %v794
      %v827 = vadd.f32 %v726, %v795
      %v828 = vadd.f32 %v727, %v796
      %v829 = vadd.f32 %v728, %v797
      %v830 = vadd.f32 %v729, %v798
      %v831 = vadd.f32 %v730, %v799
      %v832 = vadd.f32 %v731, %v800
      %v833 = vadd.f32 %v732, %v801
      %v834 = vadd.f32 %v733, %v802
      %v835 = vadd.f32 %v734, %v803
      %v836 = vadd.f32 %v735, %v804
      %v837 = vadd.f32 %v736, %v805
      %v838 = vadd.f32 %v737, %v806
      %v839 = vadd.f32 %v738, %v807
      %v840 = vadd.f32 %v739, %v808
      %v841 = vadd.f32 %v740, %v809
      %v842 = vadd.f32 %v741, %v810
      %v843 = vadd.f32 %v742, %v811
      %v844 = vadd.f32 %v743, %v812
      %v845 = vadd.f32 %v744, %v813
      %v846 = vadd.f32 %v745, %v814
      %v847 = vadd.f32 %v746, %v815
      %v848 = vadd.f32 %v747, %v816
      %v849 = vadd.f32 %v748, %v817
      %v850 = vadd.f32 %v749, %v818
      %v851 = vadd.f32 %v750, %v819
      %v852 = vld [vmem:[%s649 + $0x2] sm:$0xff]
      %v853 = vld [vmem:[%s649 + $0xa] sm:$0xff]
      %v854 = vld [vmem:[%s649 + $0x1a] sm:$0xff]
      %v855 = vld [vmem:[%s649 + $0x22] sm:$0xff]
      %v856 = vld [vmem:[%s649 + $0x32] sm:$0xff]
      %v857 = vld [vmem:[%s649 + $0x3a] sm:$0xff]
      %v858 = vld [vmem:[%s649 + $0x4a] sm:$0xff]
      %v859 = vld [vmem:[%s649 + $0x52] sm:$0xff]
      %v860 = vld [vmem:[%s649 + $0x62] sm:$0xff]
      %v861 = vld [vmem:[%s649 + $0x6a] sm:$0xff]
      %v862 = vld [vmem:[%s649 + $0x7a] sm:$0xff]
      %v863 = vld [vmem:[%s649 + $0x82] sm:$0xff]
      %v864 = vld [vmem:[%s649 + $0x92] sm:$0xff]
      %v865 = vld [vmem:[%s649 + $0x9a] sm:$0xff]
      %v866 = vld [vmem:[%s649 + $0xaa] sm:$0xff]
      %v867 = vld [vmem:[%s649 + $0xb2] sm:$0xff]
      %v868 = vld [vmem:[%s649 + $0xc2] sm:$0xff]
      %v869 = vld [vmem:[%s649 + $0xca] sm:$0xff]
      %v870 = vld [vmem:[%s649 + $0xda] sm:$0xff]
      %v871 = vld [vmem:[%s649 + $0xe2] sm:$0xff]
      %v872 = vld [vmem:[%s649 + $0xf2] sm:$0xff]
      %v873 = vld [vmem:[%s649 + $0xfa] sm:$0xff]
      %v874 = vld [vmem:[%s649 + $0x10a] sm:$0xff]
      %v875 = vld [vmem:[%s649 + $0x112] sm:$0xff]
      %v876 = vld [vmem:[%s649 + $0x122] sm:$0xff]
      %v877 = vld [vmem:[%s649 + $0x12a] sm:$0xff]
      %v878 = vld [vmem:[%s649 + $0x13a] sm:$0xff]
      %v879 = vld [vmem:[%s649 + $0x142] sm:$0xff]
      %v880 = vld [vmem:[%s649 + $0x152] sm:$0xff]
      %v881 = vld [vmem:[%s649 + $0x15a] sm:$0xff]
      %v882 = vld [vmem:[%s649 + $0x16a] sm:$0xff]
      %v883 = vld [vmem:[%s649 + $0x172] sm:$0xff]
      %v884 = vld [vmem:[%s1 + $0x7] sm:$0x1]
      %v885 = vlaneseq
      %v886 = vshrl.u32 %v885, 7
      %v887 = vsub.s32 0, %v886
      %v888 = vrot.slane %v884, %v887
      %v889 = vmul.f32 %v852, %v888
      %v890 = vmul.f32 %v853, %v888
      %v891 = vmul.f32 %v854, %v888
      %v892 = vmul.f32 %v855, %v888
      %v893 = vmul.f32 %v856, %v888
      %v894 = vmul.f32 %v857, %v888
      %v895 = vmul.f32 %v858, %v888
      %v896 = vmul.f32 %v859, %v888
      %v897 = vmul.f32 %v860, %v888
      %v898 = vmul.f32 %v861, %v888
      %v899 = vmul.f32 %v862, %v888
      %v900 = vmul.f32 %v863, %v888
      %v901 = vmul.f32 %v864, %v888
      %v902 = vmul.f32 %v865, %v888
      %v903 = vmul.f32 %v866, %v888
      %v904 = vmul.f32 %v867, %v888
      %v905 = vmul.f32 %v868, %v888
      %v906 = vmul.f32 %v869, %v888
      %v907 = vmul.f32 %v870, %v888
      %v908 = vmul.f32 %v871, %v888
      %v909 = vmul.f32 %v872, %v888
      %v910 = vmul.f32 %v873, %v888
      %v911 = vmul.f32 %v874, %v888
      %v912 = vmul.f32 %v875, %v888
      %v913 = vmul.f32 %v876, %v888
      %v914 = vmul.f32 %v877, %v888
      %v915 = vmul.f32 %v878, %v888
      %v916 = vmul.f32 %v879, %v888
      %v917 = vmul.f32 %v880, %v888
      %v918 = vmul.f32 %v881, %v888
      %v919 = vmul.f32 %v882, %v888
      %v920 = vmul.f32 %v883, %v888
      %v921 = vadd.f32 %v820, %v889
      %v922 = vadd.f32 %v821, %v890
      %v923 = vadd.f32 %v822, %v891
      %v924 = vadd.f32 %v823, %v892
      %v925 = vadd.f32 %v824, %v893
      %v926 = vadd.f32 %v825, %v894
      %v927 = vadd.f32 %v826, %v895
      %v928 = vadd.f32 %v827, %v896
      %v929 = vadd.f32 %v828, %v897
      %v930 = vadd.f32 %v829, %v898
      %v931 = vadd.f32 %v830, %v899
      %v932 = vadd.f32 %v831, %v900
      %v933 = vadd.f32 %v832, %v901
      %v934 = vadd.f32 %v833, %v902
      %v935 = vadd.f32 %v834, %v903
      %v936 = vadd.f32 %v835, %v904
      %v937 = vadd.f32 %v836, %v905
      %v938 = vadd.f32 %v837, %v906
      %v939 = vadd.f32 %v838, %v907
      %v940 = vadd.f32 %v839, %v908
      %v941 = vadd.f32 %v840, %v909
      %v942 = vadd.f32 %v841, %v910
      %v943 = vadd.f32 %v842, %v911
      %v944 = vadd.f32 %v843, %v912
      %v945 = vadd.f32 %v844, %v913
      %v946 = vadd.f32 %v845, %v914
      %v947 = vadd.f32 %v846, %v915
      %v948 = vadd.f32 %v847, %v916
      %v949 = vadd.f32 %v848, %v917
      %v950 = vadd.f32 %v849, %v918
      %v951 = vadd.f32 %v850, %v919
      %v952 = vadd.f32 %v851, %v920
      %v953 = vld [vmem:[%s649 + $0x3] sm:$0xff]
      %v954 = vld [vmem:[%s649 + $0xb] sm:$0xff]
      %v955 = vld [vmem:[%s649 + $0x1b] sm:$0xff]
      %v956 = vld [vmem:[%s649 + $0x23] sm:$0xff]
      %v957 = vld [vmem:[%s649 + $0x33] sm:$0xff]
      %v958 = vld [vmem:[%s649 + $0x3b] sm:$0xff]
      %v959 = vld [vmem:[%s649 + $0x4b] sm:$0xff]
      %v960 = vld [vmem:[%s649 + $0x53] sm:$0xff]
      %v961 = vld [vmem:[%s649 + $0x63] sm:$0xff]
      %v962 = vld [vmem:[%s649 + $0x6b] sm:$0xff]
      %v963 = vld [vmem:[%s649 + $0x7b] sm:$0xff]
      %v964 = vld [vmem:[%s649 + $0x83] sm:$0xff]
      %v965 = vld [vmem:[%s649 + $0x93] sm:$0xff]
      %v966 = vld [vmem:[%s649 + $0x9b] sm:$0xff]
      %v967 = vld [vmem:[%s649 + $0xab] sm:$0xff]
      %v968 = vld [vmem:[%s649 + $0xb3] sm:$0xff]
      %v969 = vld [vmem:[%s649 + $0xc3] sm:$0xff]
      %v970 = vld [vmem:[%s649 + $0xcb] sm:$0xff]
      %v971 = vld [vmem:[%s649 + $0xdb] sm:$0xff]
      %v972 = vld [vmem:[%s649 + $0xe3] sm:$0xff]
      %v973 = vld [vmem:[%s649 + $0xf3] sm:$0xff]
      %v974 = vld [vmem:[%s649 + $0xfb] sm:$0xff]
      %v975 = vld [vmem:[%s649 + $0x10b] sm:$0xff]
      %v976 = vld [vmem:[%s649 + $0x113] sm:$0xff]
      %v977 = vld [vmem:[%s649 + $0x123] sm:$0xff]
      %v978 = vld [vmem:[%s649 + $0x12b] sm:$0xff]
      %v979 = vld [vmem:[%s649 + $0x13b] sm:$0xff]
      %v980 = vld [vmem:[%s649 + $0x143] sm:$0xff]
      %v981 = vld [vmem:[%s649 + $0x153] sm:$0xff]
      %v982 = vld [vmem:[%s649 + $0x15b] sm:$0xff]
      %v983 = vld [vmem:[%s649 + $0x16b] sm:$0xff]
      %v984 = vld [vmem:[%s649 + $0x173] sm:$0xff]
      %v985 = vld [vmem:[%s1 + $0x8] sm:$0x1]
      %v986 = vlaneseq
      %v987 = vshrl.u32 %v986, 7
      %v988 = vsub.s32 0, %v987
      %v989 = vrot.slane %v985, %v988
      %v990 = vmul.f32 %v953, %v989
      %v991 = vmul.f32 %v954, %v989
      %v992 = vmul.f32 %v955, %v989
      %v993 = vmul.f32 %v956, %v989
      %v994 = vmul.f32 %v957, %v989
      %v995 = vmul.f32 %v958, %v989
      %v996 = vmul.f32 %v959, %v989
      %v997 = vmul.f32 %v960, %v989
      %v998 = vmul.f32 %v961, %v989
      %v999 = vmul.f32 %v962, %v989
      %v1000 = vmul.f32 %v963, %v989
      %v1001 = vmul.f32 %v964, %v989
      %v1002 = vmul.f32 %v965, %v989
      %v1003 = vmul.f32 %v966, %v989
      %v1004 = vmul.f32 %v967, %v989
      %v1005 = vmul.f32 %v968, %v989
      %v1006 = vmul.f32 %v969, %v989
      %v1007 = vmul.f32 %v970, %v989
      %v1008 = vmul.f32 %v971, %v989
      %v1009 = vmul.f32 %v972, %v989
      %v1010 = vmul.f32 %v973, %v989
      %v1011 = vmul.f32 %v974, %v989
      %v1012 = vmul.f32 %v975, %v989
      %v1013 = vmul.f32 %v976, %v989
      %v1014 = vmul.f32 %v977, %v989
      %v1015 = vmul.f32 %v978, %v989
      %v1016 = vmul.f32 %v979, %v989
      %v1017 = vmul.f32 %v980, %v989
      %v1018 = vmul.f32 %v981, %v989
      %v1019 = vmul.f32 %v982, %v989
      %v1020 = vmul.f32 %v983, %v989
      %v1021 = vmul.f32 %v984, %v989
      %v1022 = vadd.f32 %v921, %v990
      %v1023 = vadd.f32 %v922, %v991
      %v1024 = vadd.f32 %v923, %v992
      %v1025 = vadd.f32 %v924, %v993
      %v1026 = vadd.f32 %v925, %v994
      %v1027 = vadd.f32 %v926, %v995
      %v1028 = vadd.f32 %v927, %v996
      %v1029 = vadd.f32 %v928, %v997
      %v1030 = vadd.f32 %v929, %v998
      %v1031 = vadd.f32 %v930, %v999
      %v1032 = vadd.f32 %v931, %v1000
      %v1033 = vadd.f32 %v932, %v1001
      %v1034 = vadd.f32 %v933, %v1002
      %v1035 = vadd.f32 %v934, %v1003
      %v1036 = vadd.f32 %v935, %v1004
      %v1037 = vadd.f32 %v936, %v1005
      %v1038 = vadd.f32 %v937, %v1006
      %v1039 = vadd.f32 %v938, %v1007
      %v1040 = vadd.f32 %v939, %v1008
      %v1041 = vadd.f32 %v940, %v1009
      %v1042 = vadd.f32 %v941, %v1010
      %v1043 = vadd.f32 %v942, %v1011
      %v1044 = vadd.f32 %v943, %v1012
      %v1045 = vadd.f32 %v944, %v1013
      %v1046 = vadd.f32 %v945, %v1014
      %v1047 = vadd.f32 %v946, %v1015
      %v1048 = vadd.f32 %v947, %v1016
      %v1049 = vadd.f32 %v948, %v1017
      %v1050 = vadd.f32 %v949, %v1018
      %v1051 = vadd.f32 %v950, %v1019
      %v1052 = vadd.f32 %v951, %v1020
      %v1053 = vadd.f32 %v952, %v1021
      %v1054 = vld [vmem:[%s649 + $0x4] sm:$0xff]
      %v1055 = vld [vmem:[%s649 + $0xc] sm:$0xff]
      %v1056 = vld [vmem:[%s649 + $0x1c] sm:$0xff]
      %v1057 = vld [vmem:[%s649 + $0x24] sm:$0xff]
      %v1058 = vld [vmem:[%s649 + $0x34] sm:$0xff]
      %v1059 = vld [vmem:[%s649 + $0x3c] sm:$0xff]
      %v1060 = vld [vmem:[%s649 + $0x4c] sm:$0xff]
      %v1061 = vld [vmem:[%s649 + $0x54] sm:$0xff]
      %v1062 = vld [vmem:[%s649 + $0x64] sm:$0xff]
      %v1063 = vld [vmem:[%s649 + $0x6c] sm:$0xff]
      %v1064 = vld [vmem:[%s649 + $0x7c] sm:$0xff]
      %v1065 = vld [vmem:[%s649 + $0x84] sm:$0xff]
      %v1066 = vld [vmem:[%s649 + $0x94] sm:$0xff]
      %v1067 = vld [vmem:[%s649 + $0x9c] sm:$0xff]
      %v1068 = vld [vmem:[%s649 + $0xac] sm:$0xff]
      %v1069 = vld [vmem:[%s649 + $0xb4] sm:$0xff]
      %v1070 = vld [vmem:[%s649 + $0xc4] sm:$0xff]
      %v1071 = vld [vmem:[%s649 + $0xcc] sm:$0xff]
      %v1072 = vld [vmem:[%s649 + $0xdc] sm:$0xff]
      %v1073 = vld [vmem:[%s649 + $0xe4] sm:$0xff]
      %v1074 = vld [vmem:[%s649 + $0xf4] sm:$0xff]
      %v1075 = vld [vmem:[%s649 + $0xfc] sm:$0xff]
      %v1076 = vld [vmem:[%s649 + $0x10c] sm:$0xff]
      %v1077 = vld [vmem:[%s649 + $0x114] sm:$0xff]
      %v1078 = vld [vmem:[%s649 + $0x124] sm:$0xff]
      %v1079 = vld [vmem:[%s649 + $0x12c] sm:$0xff]
      %v1080 = vld [vmem:[%s649 + $0x13c] sm:$0xff]
      %v1081 = vld [vmem:[%s649 + $0x144] sm:$0xff]
      %v1082 = vld [vmem:[%s649 + $0x154] sm:$0xff]
      %v1083 = vld [vmem:[%s649 + $0x15c] sm:$0xff]
      %v1084 = vld [vmem:[%s649 + $0x16c] sm:$0xff]
      %v1085 = vld [vmem:[%s649 + $0x174] sm:$0xff]
      %v1086 = vld [vmem:[%s1 + $0x9] sm:$0x1]
      %v1087 = vlaneseq
      %v1088 = vshrl.u32 %v1087, 7
      %v1089 = vsub.s32 0, %v1088
      %v1090 = vrot.slane %v1086, %v1089
      %v1091 = vmul.f32 %v1054, %v1090
      %v1092 = vmul.f32 %v1055, %v1090
      %v1093 = vmul.f32 %v1056, %v1090
      %v1094 = vmul.f32 %v1057, %v1090
      %v1095 = vmul.f32 %v1058, %v1090
      %v1096 = vmul.f32 %v1059, %v1090
      %v1097 = vmul.f32 %v1060, %v1090
      %v1098 = vmul.f32 %v1061, %v1090
      %v1099 = vmul.f32 %v1062, %v1090
      %v1100 = vmul.f32 %v1063, %v1090
      %v1101 = vmul.f32 %v1064, %v1090
      %v1102 = vmul.f32 %v1065, %v1090
      %v1103 = vmul.f32 %v1066, %v1090
      %v1104 = vmul.f32 %v1067, %v1090
      %v1105 = vmul.f32 %v1068, %v1090
      %v1106 = vmul.f32 %v1069, %v1090
      %v1107 = vmul.f32 %v1070, %v1090
      %v1108 = vmul.f32 %v1071, %v1090
      %v1109 = vmul.f32 %v1072, %v1090
      %v1110 = vmul.f32 %v1073, %v1090
      %v1111 = vmul.f32 %v1074, %v1090
      %v1112 = vmul.f32 %v1075, %v1090
      %v1113 = vmul.f32 %v1076, %v1090
      %v1114 = vmul.f32 %v1077, %v1090
      %v1115 = vmul.f32 %v1078, %v1090
      %v1116 = vmul.f32 %v1079, %v1090
      %v1117 = vmul.f32 %v1080, %v1090
      %v1118 = vmul.f32 %v1081, %v1090
      %v1119 = vmul.f32 %v1082, %v1090
      %v1120 = vmul.f32 %v1083, %v1090
      %v1121 = vmul.f32 %v1084, %v1090
      %v1122 = vmul.f32 %v1085, %v1090
      %v1123 = vadd.f32 %v1022, %v1091
      %v1124 = vadd.f32 %v1023, %v1092
      %v1125 = vadd.f32 %v1024, %v1093
      %v1126 = vadd.f32 %v1025, %v1094
      %v1127 = vadd.f32 %v1026, %v1095
      %v1128 = vadd.f32 %v1027, %v1096
      %v1129 = vadd.f32 %v1028, %v1097
      %v1130 = vadd.f32 %v1029, %v1098
      %v1131 = vadd.f32 %v1030, %v1099
      %v1132 = vadd.f32 %v1031, %v1100
      %v1133 = vadd.f32 %v1032, %v1101
      %v1134 = vadd.f32 %v1033, %v1102
      %v1135 = vadd.f32 %v1034, %v1103
      %v1136 = vadd.f32 %v1035, %v1104
      %v1137 = vadd.f32 %v1036, %v1105
      %v1138 = vadd.f32 %v1037, %v1106
      %v1139 = vadd.f32 %v1038, %v1107
      %v1140 = vadd.f32 %v1039, %v1108
      %v1141 = vadd.f32 %v1040, %v1109
      %v1142 = vadd.f32 %v1041, %v1110
      %v1143 = vadd.f32 %v1042, %v1111
      %v1144 = vadd.f32 %v1043, %v1112
      %v1145 = vadd.f32 %v1044, %v1113
      %v1146 = vadd.f32 %v1045, %v1114
      %v1147 = vadd.f32 %v1046, %v1115
      %v1148 = vadd.f32 %v1047, %v1116
      %v1149 = vadd.f32 %v1048, %v1117
      %v1150 = vadd.f32 %v1049, %v1118
      %v1151 = vadd.f32 %v1050, %v1119
      %v1152 = vadd.f32 %v1051, %v1120
      %v1153 = vadd.f32 %v1052, %v1121
      %v1154 = vadd.f32 %v1053, %v1122
      %s1155 = scalar_lea.vmem %s138, 48
      %v1156 = vld [vmem:[%s1155] sm:$0xff]
      %v1157 = vld [vmem:[%s1155 + $0x8] sm:$0xff]
      %v1158 = vld [vmem:[%s1155 + $0x18] sm:$0xff]
      %v1159 = vld [vmem:[%s1155 + $0x20] sm:$0xff]
      %v1160 = vld [vmem:[%s1155 + $0x30] sm:$0xff]
      %v1161 = vld [vmem:[%s1155 + $0x38] sm:$0xff]
      %v1162 = vld [vmem:[%s1155 + $0x48] sm:$0xff]
      %v1163 = vld [vmem:[%s1155 + $0x50] sm:$0xff]
      %v1164 = vld [vmem:[%s1155 + $0x60] sm:$0xff]
      %v1165 = vld [vmem:[%s1155 + $0x68] sm:$0xff]
      %v1166 = vld [vmem:[%s1155 + $0x78] sm:$0xff]
      %v1167 = vld [vmem:[%s1155 + $0x80] sm:$0xff]
      %v1168 = vld [vmem:[%s1155 + $0x90] sm:$0xff]
      %v1169 = vld [vmem:[%s1155 + $0x98] sm:$0xff]
      %v1170 = vld [vmem:[%s1155 + $0xa8] sm:$0xff]
      %v1171 = vld [vmem:[%s1155 + $0xb0] sm:$0xff]
      %v1172 = vld [vmem:[%s1155 + $0xc0] sm:$0xff]
      %v1173 = vld [vmem:[%s1155 + $0xc8] sm:$0xff]
      %v1174 = vld [vmem:[%s1155 + $0xd8] sm:$0xff]
      %v1175 = vld [vmem:[%s1155 + $0xe0] sm:$0xff]
      %v1176 = vld [vmem:[%s1155 + $0xf0] sm:$0xff]
      %v1177 = vld [vmem:[%s1155 + $0xf8] sm:$0xff]
      %v1178 = vld [vmem:[%s1155 + $0x108] sm:$0xff]
      %v1179 = vld [vmem:[%s1155 + $0x110] sm:$0xff]
      %v1180 = vld [vmem:[%s1155 + $0x120] sm:$0xff]
      %v1181 = vld [vmem:[%s1155 + $0x128] sm:$0xff]
      %v1182 = vld [vmem:[%s1155 + $0x138] sm:$0xff]
      %v1183 = vld [vmem:[%s1155 + $0x140] sm:$0xff]
      %v1184 = vld [vmem:[%s1155 + $0x150] sm:$0xff]
      %v1185 = vld [vmem:[%s1155 + $0x158] sm:$0xff]
      %v1186 = vld [vmem:[%s1155 + $0x168] sm:$0xff]
      %v1187 = vld [vmem:[%s1155 + $0x170] sm:$0xff]
      %v1188 = vld [vmem:[%s1 + $0xa] sm:$0x1]
      %v1189 = vlaneseq
      %v1190 = vshrl.u32 %v1189, 7
      %v1191 = vsub.s32 0, %v1190
      %v1192 = vrot.slane %v1188, %v1191
      %v1193 = vmul.f32 %v1156, %v1192
      %v1194 = vmul.f32 %v1157, %v1192
      %v1195 = vmul.f32 %v1158, %v1192
      %v1196 = vmul.f32 %v1159, %v1192
      %v1197 = vmul.f32 %v1160, %v1192
      %v1198 = vmul.f32 %v1161, %v1192
      %v1199 = vmul.f32 %v1162, %v1192
      %v1200 = vmul.f32 %v1163, %v1192
      %v1201 = vmul.f32 %v1164, %v1192
      %v1202 = vmul.f32 %v1165, %v1192
      %v1203 = vmul.f32 %v1166, %v1192
      %v1204 = vmul.f32 %v1167, %v1192
      %v1205 = vmul.f32 %v1168, %v1192
      %v1206 = vmul.f32 %v1169, %v1192
      %v1207 = vmul.f32 %v1170, %v1192
      %v1208 = vmul.f32 %v1171, %v1192
      %v1209 = vmul.f32 %v1172, %v1192
      %v1210 = vmul.f32 %v1173, %v1192
      %v1211 = vmul.f32 %v1174, %v1192
      %v1212 = vmul.f32 %v1175, %v1192
      %v1213 = vmul.f32 %v1176, %v1192
      %v1214 = vmul.f32 %v1177, %v1192
      %v1215 = vmul.f32 %v1178, %v1192
      %v1216 = vmul.f32 %v1179, %v1192
      %v1217 = vmul.f32 %v1180, %v1192
      %v1218 = vmul.f32 %v1181, %v1192
      %v1219 = vmul.f32 %v1182, %v1192
      %v1220 = vmul.f32 %v1183, %v1192
      %v1221 = vmul.f32 %v1184, %v1192
      %v1222 = vmul.f32 %v1185, %v1192
      %v1223 = vmul.f32 %v1186, %v1192
      %v1224 = vmul.f32 %v1187, %v1192
      %v1225 = vadd.f32 %v1123, %v1193
      %v1226 = vadd.f32 %v1124, %v1194
      %v1227 = vadd.f32 %v1125, %v1195
      %v1228 = vadd.f32 %v1126, %v1196
      %v1229 = vadd.f32 %v1127, %v1197
      %v1230 = vadd.f32 %v1128, %v1198
      %v1231 = vadd.f32 %v1129, %v1199
      %v1232 = vadd.f32 %v1130, %v1200
      %v1233 = vadd.f32 %v1131, %v1201
      %v1234 = vadd.f32 %v1132, %v1202
      %v1235 = vadd.f32 %v1133, %v1203
      %v1236 = vadd.f32 %v1134, %v1204
      %v1237 = vadd.f32 %v1135, %v1205
      %v1238 = vadd.f32 %v1136, %v1206
      %v1239 = vadd.f32 %v1137, %v1207
      %v1240 = vadd.f32 %v1138, %v1208
      %v1241 = vadd.f32 %v1139, %v1209
      %v1242 = vadd.f32 %v1140, %v1210
      %v1243 = vadd.f32 %v1141, %v1211
      %v1244 = vadd.f32 %v1142, %v1212
      %v1245 = vadd.f32 %v1143, %v1213
      %v1246 = vadd.f32 %v1144, %v1214
      %v1247 = vadd.f32 %v1145, %v1215
      %v1248 = vadd.f32 %v1146, %v1216
      %v1249 = vadd.f32 %v1147, %v1217
      %v1250 = vadd.f32 %v1148, %v1218
      %v1251 = vadd.f32 %v1149, %v1219
      %v1252 = vadd.f32 %v1150, %v1220
      %v1253 = vadd.f32 %v1151, %v1221
      %v1254 = vadd.f32 %v1152, %v1222
      %v1255 = vadd.f32 %v1153, %v1223
      %v1256 = vadd.f32 %v1154, %v1224
      %v1257 = vld [vmem:[%s1155 + $0x1] sm:$0xff]
      %v1258 = vld [vmem:[%s1155 + $0x9] sm:$0xff]
      %v1259 = vld [vmem:[%s1155 + $0x19] sm:$0xff]
      %v1260 = vld [vmem:[%s1155 + $0x21] sm:$0xff]
      %v1261 = vld [vmem:[%s1155 + $0x31] sm:$0xff]
      %v1262 = vld [vmem:[%s1155 + $0x39] sm:$0xff]
      %v1263 = vld [vmem:[%s1155 + $0x49] sm:$0xff]
      %v1264 = vld [vmem:[%s1155 + $0x51] sm:$0xff]
      %v1265 = vld [vmem:[%s1155 + $0x61] sm:$0xff]
      %v1266 = vld [vmem:[%s1155 + $0x69] sm:$0xff]
      %v1267 = vld [vmem:[%s1155 + $0x79] sm:$0xff]
      %v1268 = vld [vmem:[%s1155 + $0x81] sm:$0xff]
      %v1269 = vld [vmem:[%s1155 + $0x91] sm:$0xff]
      %v1270 = vld [vmem:[%s1155 + $0x99] sm:$0xff]
      %v1271 = vld [vmem:[%s1155 + $0xa9] sm:$0xff]
      %v1272 = vld [vmem:[%s1155 + $0xb1] sm:$0xff]
      %v1273 = vld [vmem:[%s1155 + $0xc1] sm:$0xff]
      %v1274 = vld [vmem:[%s1155 + $0xc9] sm:$0xff]
      %v1275 = vld [vmem:[%s1155 + $0xd9] sm:$0xff]
      %v1276 = vld [vmem:[%s1155 + $0xe1] sm:$0xff]
      %v1277 = vld [vmem:[%s1155 + $0xf1] sm:$0xff]
      %v1278 = vld [vmem:[%s1155 + $0xf9] sm:$0xff]
      %v1279 = vld [vmem:[%s1155 + $0x109] sm:$0xff]
      %v1280 = vld [vmem:[%s1155 + $0x111] sm:$0xff]
      %v1281 = vld [vmem:[%s1155 + $0x121] sm:$0xff]
      %v1282 = vld [vmem:[%s1155 + $0x129] sm:$0xff]
      %v1283 = vld [vmem:[%s1155 + $0x139] sm:$0xff]
      %v1284 = vld [vmem:[%s1155 + $0x141] sm:$0xff]
      %v1285 = vld [vmem:[%s1155 + $0x151] sm:$0xff]
      %v1286 = vld [vmem:[%s1155 + $0x159] sm:$0xff]
      %v1287 = vld [vmem:[%s1155 + $0x169] sm:$0xff]
      %v1288 = vld [vmem:[%s1155 + $0x171] sm:$0xff]
      %v1289 = vld [vmem:[%s1 + $0xb] sm:$0x1]
      %v1290 = vlaneseq
      %v1291 = vshrl.u32 %v1290, 7
      %v1292 = vsub.s32 0, %v1291
      %v1293 = vrot.slane %v1289, %v1292
      %v1294 = vmul.f32 %v1257, %v1293
      %v1295 = vmul.f32 %v1258, %v1293
      %v1296 = vmul.f32 %v1259, %v1293
      %v1297 = vmul.f32 %v1260, %v1293
      %v1298 = vmul.f32 %v1261, %v1293
      %v1299 = vmul.f32 %v1262, %v1293
      %v1300 = vmul.f32 %v1263, %v1293
      %v1301 = vmul.f32 %v1264, %v1293
      %v1302 = vmul.f32 %v1265, %v1293
      %v1303 = vmul.f32 %v1266, %v1293
      %v1304 = vmul.f32 %v1267, %v1293
      %v1305 = vmul.f32 %v1268, %v1293
      %v1306 = vmul.f32 %v1269, %v1293
      %v1307 = vmul.f32 %v1270, %v1293
      %v1308 = vmul.f32 %v1271, %v1293
      %v1309 = vmul.f32 %v1272, %v1293
      %v1310 = vmul.f32 %v1273, %v1293
      %v1311 = vmul.f32 %v1274, %v1293
      %v1312 = vmul.f32 %v1275, %v1293
      %v1313 = vmul.f32 %v1276, %v1293
      %v1314 = vmul.f32 %v1277, %v1293
      %v1315 = vmul.f32 %v1278, %v1293
      %v1316 = vmul.f32 %v1279, %v1293
      %v1317 = vmul.f32 %v1280, %v1293
      %v1318 = vmul.f32 %v1281, %v1293
      %v1319 = vmul.f32 %v1282, %v1293
      %v1320 = vmul.f32 %v1283, %v1293
      %v1321 = vmul.f32 %v1284, %v1293
      %v1322 = vmul.f32 %v1285, %v1293
      %v1323 = vmul.f32 %v1286, %v1293
      %v1324 = vmul.f32 %v1287, %v1293
      %v1325 = vmul.f32 %v1288, %v1293
      %v1326 = vadd.f32 %v1225, %v1294
      %v1327 = vadd.f32 %v1226, %v1295
      %v1328 = vadd.f32 %v1227, %v1296
      %v1329 = vadd.f32 %v1228, %v1297
      %v1330 = vadd.f32 %v1229, %v1298
      %v1331 = vadd.f32 %v1230, %v1299
      %v1332 = vadd.f32 %v1231, %v1300
      %v1333 = vadd.f32 %v1232, %v1301
      %v1334 = vadd.f32 %v1233, %v1302
      %v1335 = vadd.f32 %v1234, %v1303
      %v1336 = vadd.f32 %v1235, %v1304
      %v1337 = vadd.f32 %v1236, %v1305
      %v1338 = vadd.f32 %v1237, %v1306
      %v1339 = vadd.f32 %v1238, %v1307
      %v1340 = vadd.f32 %v1239, %v1308
      %v1341 = vadd.f32 %v1240, %v1309
      %v1342 = vadd.f32 %v1241, %v1310
      %v1343 = vadd.f32 %v1242, %v1311
      %v1344 = vadd.f32 %v1243, %v1312
      %v1345 = vadd.f32 %v1244, %v1313
      %v1346 = vadd.f32 %v1245, %v1314
      %v1347 = vadd.f32 %v1246, %v1315
      %v1348 = vadd.f32 %v1247, %v1316
      %v1349 = vadd.f32 %v1248, %v1317
      %v1350 = vadd.f32 %v1249, %v1318
      %v1351 = vadd.f32 %v1250, %v1319
      %v1352 = vadd.f32 %v1251, %v1320
      %v1353 = vadd.f32 %v1252, %v1321
      %v1354 = vadd.f32 %v1253, %v1322
      %v1355 = vadd.f32 %v1254, %v1323
      %v1356 = vadd.f32 %v1255, %v1324
      %v1357 = vadd.f32 %v1256, %v1325
      %v1358 = vld [vmem:[%s1155 + $0x2] sm:$0xff]
      %v1359 = vld [vmem:[%s1155 + $0xa] sm:$0xff]
      %v1360 = vld [vmem:[%s1155 + $0x1a] sm:$0xff]
      %v1361 = vld [vmem:[%s1155 + $0x22] sm:$0xff]
      %v1362 = vld [vmem:[%s1155 + $0x32] sm:$0xff]
      %v1363 = vld [vmem:[%s1155 + $0x3a] sm:$0xff]
      %v1364 = vld [vmem:[%s1155 + $0x4a] sm:$0xff]
      %v1365 = vld [vmem:[%s1155 + $0x52] sm:$0xff]
      %v1366 = vld [vmem:[%s1155 + $0x62] sm:$0xff]
      %v1367 = vld [vmem:[%s1155 + $0x6a] sm:$0xff]
      %v1368 = vld [vmem:[%s1155 + $0x7a] sm:$0xff]
      %v1369 = vld [vmem:[%s1155 + $0x82] sm:$0xff]
      %v1370 = vld [vmem:[%s1155 + $0x92] sm:$0xff]
      %v1371 = vld [vmem:[%s1155 + $0x9a] sm:$0xff]
      %v1372 = vld [vmem:[%s1155 + $0xaa] sm:$0xff]
      %v1373 = vld [vmem:[%s1155 + $0xb2] sm:$0xff]
      %v1374 = vld [vmem:[%s1155 + $0xc2] sm:$0xff]
      %v1375 = vld [vmem:[%s1155 + $0xca] sm:$0xff]
      %v1376 = vld [vmem:[%s1155 + $0xda] sm:$0xff]
      %v1377 = vld [vmem:[%s1155 + $0xe2] sm:$0xff]
      %v1378 = vld [vmem:[%s1155 + $0xf2] sm:$0xff]
      %v1379 = vld [vmem:[%s1155 + $0xfa] sm:$0xff]
      %v1380 = vld [vmem:[%s1155 + $0x10a] sm:$0xff]
      %v1381 = vld [vmem:[%s1155 + $0x112] sm:$0xff]
      %v1382 = vld [vmem:[%s1155 + $0x122] sm:$0xff]
      %v1383 = vld [vmem:[%s1155 + $0x12a] sm:$0xff]
      %v1384 = vld [vmem:[%s1155 + $0x13a] sm:$0xff]
      %v1385 = vld [vmem:[%s1155 + $0x142] sm:$0xff]
      %v1386 = vld [vmem:[%s1155 + $0x152] sm:$0xff]
      %v1387 = vld [vmem:[%s1155 + $0x15a] sm:$0xff]
      %v1388 = vld [vmem:[%s1155 + $0x16a] sm:$0xff]
      %v1389 = vld [vmem:[%s1155 + $0x172] sm:$0xff]
      %v1390 = vld [vmem:[%s1 + $0xc] sm:$0x1]
      %v1391 = vlaneseq
      %v1392 = vshrl.u32 %v1391, 7
      %v1393 = vsub.s32 0, %v1392
      %v1394 = vrot.slane %v1390, %v1393
      %v1395 = vmul.f32 %v1358, %v1394
      %v1396 = vmul.f32 %v1359, %v1394
      %v1397 = vmul.f32 %v1360, %v1394
      %v1398 = vmul.f32 %v1361, %v1394
      %v1399 = vmul.f32 %v1362, %v1394
      %v1400 = vmul.f32 %v1363, %v1394
      %v1401 = vmul.f32 %v1364, %v1394
      %v1402 = vmul.f32 %v1365, %v1394
      %v1403 = vmul.f32 %v1366, %v1394
      %v1404 = vmul.f32 %v1367, %v1394
      %v1405 = vmul.f32 %v1368, %v1394
      %v1406 = vmul.f32 %v1369, %v1394
      %v1407 = vmul.f32 %v1370, %v1394
      %v1408 = vmul.f32 %v1371, %v1394
      %v1409 = vmul.f32 %v1372, %v1394
      %v1410 = vmul.f32 %v1373, %v1394
      %v1411 = vmul.f32 %v1374, %v1394
      %v1412 = vmul.f32 %v1375, %v1394
      %v1413 = vmul.f32 %v1376, %v1394
      %v1414 = vmul.f32 %v1377, %v1394
      %v1415 = vmul.f32 %v1378, %v1394
      %v1416 = vmul.f32 %v1379, %v1394
      %v1417 = vmul.f32 %v1380, %v1394
      %v1418 = vmul.f32 %v1381, %v1394
      %v1419 = vmul.f32 %v1382, %v1394
      %v1420 = vmul.f32 %v1383, %v1394
      %v1421 = vmul.f32 %v1384, %v1394
      %v1422 = vmul.f32 %v1385, %v1394
      %v1423 = vmul.f32 %v1386, %v1394
      %v1424 = vmul.f32 %v1387, %v1394
      %v1425 = vmul.f32 %v1388, %v1394
      %v1426 = vmul.f32 %v1389, %v1394
      %v1427 = vadd.f32 %v1326, %v1395
      %v1428 = vadd.f32 %v1327, %v1396
      %v1429 = vadd.f32 %v1328, %v1397
      %v1430 = vadd.f32 %v1329, %v1398
      %v1431 = vadd.f32 %v1330, %v1399
      %v1432 = vadd.f32 %v1331, %v1400
      %v1433 = vadd.f32 %v1332, %v1401
      %v1434 = vadd.f32 %v1333, %v1402
      %v1435 = vadd.f32 %v1334, %v1403
      %v1436 = vadd.f32 %v1335, %v1404
      %v1437 = vadd.f32 %v1336, %v1405
      %v1438 = vadd.f32 %v1337, %v1406
      %v1439 = vadd.f32 %v1338, %v1407
      %v1440 = vadd.f32 %v1339, %v1408
      %v1441 = vadd.f32 %v1340, %v1409
      %v1442 = vadd.f32 %v1341, %v1410
      %v1443 = vadd.f32 %v1342, %v1411
      %v1444 = vadd.f32 %v1343, %v1412
      %v1445 = vadd.f32 %v1344, %v1413
      %v1446 = vadd.f32 %v1345, %v1414
      %v1447 = vadd.f32 %v1346, %v1415
      %v1448 = vadd.f32 %v1347, %v1416
      %v1449 = vadd.f32 %v1348, %v1417
      %v1450 = vadd.f32 %v1349, %v1418
      %v1451 = vadd.f32 %v1350, %v1419
      %v1452 = vadd.f32 %v1351, %v1420
      %v1453 = vadd.f32 %v1352, %v1421
      %v1454 = vadd.f32 %v1353, %v1422
      %v1455 = vadd.f32 %v1354, %v1423
      %v1456 = vadd.f32 %v1355, %v1424
      %v1457 = vadd.f32 %v1356, %v1425
      %v1458 = vadd.f32 %v1357, %v1426
      %v1459 = vld [vmem:[%s1155 + $0x3] sm:$0xff]
      %v1460 = vld [vmem:[%s1155 + $0xb] sm:$0xff]
      %v1461 = vld [vmem:[%s1155 + $0x1b] sm:$0xff]
      %v1462 = vld [vmem:[%s1155 + $0x23] sm:$0xff]
      %v1463 = vld [vmem:[%s1155 + $0x33] sm:$0xff]
      %v1464 = vld [vmem:[%s1155 + $0x3b] sm:$0xff]
      %v1465 = vld [vmem:[%s1155 + $0x4b] sm:$0xff]
      %v1466 = vld [vmem:[%s1155 + $0x53] sm:$0xff]
      %v1467 = vld [vmem:[%s1155 + $0x63] sm:$0xff]
      %v1468 = vld [vmem:[%s1155 + $0x6b] sm:$0xff]
      %v1469 = vld [vmem:[%s1155 + $0x7b] sm:$0xff]
      %v1470 = vld [vmem:[%s1155 + $0x83] sm:$0xff]
      %v1471 = vld [vmem:[%s1155 + $0x93] sm:$0xff]
      %v1472 = vld [vmem:[%s1155 + $0x9b] sm:$0xff]
      %v1473 = vld [vmem:[%s1155 + $0xab] sm:$0xff]
      %v1474 = vld [vmem:[%s1155 + $0xb3] sm:$0xff]
      %v1475 = vld [vmem:[%s1155 + $0xc3] sm:$0xff]
      %v1476 = vld [vmem:[%s1155 + $0xcb] sm:$0xff]
      %v1477 = vld [vmem:[%s1155 + $0xdb] sm:$0xff]
      %v1478 = vld [vmem:[%s1155 + $0xe3] sm:$0xff]
      %v1479 = vld [vmem:[%s1155 + $0xf3] sm:$0xff]
      %v1480 = vld [vmem:[%s1155 + $0xfb] sm:$0xff]
      %v1481 = vld [vmem:[%s1155 + $0x10b] sm:$0xff]
      %v1482 = vld [vmem:[%s1155 + $0x113] sm:$0xff]
      %v1483 = vld [vmem:[%s1155 + $0x123] sm:$0xff]
      %v1484 = vld [vmem:[%s1155 + $0x12b] sm:$0xff]
      %v1485 = vld [vmem:[%s1155 + $0x13b] sm:$0xff]
      %v1486 = vld [vmem:[%s1155 + $0x143] sm:$0xff]
      %v1487 = vld [vmem:[%s1155 + $0x153] sm:$0xff]
      %v1488 = vld [vmem:[%s1155 + $0x15b] sm:$0xff]
      %v1489 = vld [vmem:[%s1155 + $0x16b] sm:$0xff]
      %v1490 = vld [vmem:[%s1155 + $0x173] sm:$0xff]
      %v1491 = vld [vmem:[%s1 + $0xd] sm:$0x1]
      %v1492 = vlaneseq
      %v1493 = vshrl.u32 %v1492, 7
      %v1494 = vsub.s32 0, %v1493
      %v1495 = vrot.slane %v1491, %v1494
      %v1496 = vmul.f32 %v1459, %v1495
      %v1497 = vmul.f32 %v1460, %v1495
      %v1498 = vmul.f32 %v1461, %v1495
      %v1499 = vmul.f32 %v1462, %v1495
      %v1500 = vmul.f32 %v1463, %v1495
      %v1501 = vmul.f32 %v1464, %v1495
      %v1502 = vmul.f32 %v1465, %v1495
      %v1503 = vmul.f32 %v1466, %v1495
      %v1504 = vmul.f32 %v1467, %v1495
      %v1505 = vmul.f32 %v1468, %v1495
      %v1506 = vmul.f32 %v1469, %v1495
      %v1507 = vmul.f32 %v1470, %v1495
      %v1508 = vmul.f32 %v1471, %v1495
      %v1509 = vmul.f32 %v1472, %v1495
      %v1510 = vmul.f32 %v1473, %v1495
      %v1511 = vmul.f32 %v1474, %v1495
      %v1512 = vmul.f32 %v1475, %v1495
      %v1513 = vmul.f32 %v1476, %v1495
      %v1514 = vmul.f32 %v1477, %v1495
      %v1515 = vmul.f32 %v1478, %v1495
      %v1516 = vmul.f32 %v1479, %v1495
      %v1517 = vmul.f32 %v1480, %v1495
      %v1518 = vmul.f32 %v1481, %v1495
      %v1519 = vmul.f32 %v1482, %v1495
      %v1520 = vmul.f32 %v1483, %v1495
      %v1521 = vmul.f32 %v1484, %v1495
      %v1522 = vmul.f32 %v1485, %v1495
      %v1523 = vmul.f32 %v1486, %v1495
      %v1524 = vmul.f32 %v1487, %v1495
      %v1525 = vmul.f32 %v1488, %v1495
      %v1526 = vmul.f32 %v1489, %v1495
      %v1527 = vmul.f32 %v1490, %v1495
      %v1528 = vadd.f32 %v1427, %v1496
      %v1529 = vadd.f32 %v1428, %v1497
      %v1530 = vadd.f32 %v1429, %v1498
      %v1531 = vadd.f32 %v1430, %v1499
      %v1532 = vadd.f32 %v1431, %v1500
      %v1533 = vadd.f32 %v1432, %v1501
      %v1534 = vadd.f32 %v1433, %v1502
      %v1535 = vadd.f32 %v1434, %v1503
      %v1536 = vadd.f32 %v1435, %v1504
      %v1537 = vadd.f32 %v1436, %v1505
      %v1538 = vadd.f32 %v1437, %v1506
      %v1539 = vadd.f32 %v1438, %v1507
      %v1540 = vadd.f32 %v1439, %v1508
      %v1541 = vadd.f32 %v1440, %v1509
      %v1542 = vadd.f32 %v1441, %v1510
      %v1543 = vadd.f32 %v1442, %v1511
      %v1544 = vadd.f32 %v1443, %v1512
      %v1545 = vadd.f32 %v1444, %v1513
      %v1546 = vadd.f32 %v1445, %v1514
      %v1547 = vadd.f32 %v1446, %v1515
      %v1548 = vadd.f32 %v1447, %v1516
      %v1549 = vadd.f32 %v1448, %v1517
      %v1550 = vadd.f32 %v1449, %v1518
      %v1551 = vadd.f32 %v1450, %v1519
      %v1552 = vadd.f32 %v1451, %v1520
      %v1553 = vadd.f32 %v1452, %v1521
      %v1554 = vadd.f32 %v1453, %v1522
      %v1555 = vadd.f32 %v1454, %v1523
      %v1556 = vadd.f32 %v1455, %v1524
      %v1557 = vadd.f32 %v1456, %v1525
      %v1558 = vadd.f32 %v1457, %v1526
      %v1559 = vadd.f32 %v1458, %v1527
      %v1560 = vld [vmem:[%s1155 + $0x4] sm:$0xff]
      %v1561 = vld [vmem:[%s1155 + $0xc] sm:$0xff]
      %v1562 = vld [vmem:[%s1155 + $0x1c] sm:$0xff]
      %v1563 = vld [vmem:[%s1155 + $0x24] sm:$0xff]
      %v1564 = vld [vmem:[%s1155 + $0x34] sm:$0xff]
      %v1565 = vld [vmem:[%s1155 + $0x3c] sm:$0xff]
      %v1566 = vld [vmem:[%s1155 + $0x4c] sm:$0xff]
      %v1567 = vld [vmem:[%s1155 + $0x54] sm:$0xff]
      %v1568 = vld [vmem:[%s1155 + $0x64] sm:$0xff]
      %v1569 = vld [vmem:[%s1155 + $0x6c] sm:$0xff]
      %v1570 = vld [vmem:[%s1155 + $0x7c] sm:$0xff]
      %v1571 = vld [vmem:[%s1155 + $0x84] sm:$0xff]
      %v1572 = vld [vmem:[%s1155 + $0x94] sm:$0xff]
      %v1573 = vld [vmem:[%s1155 + $0x9c] sm:$0xff]
      %v1574 = vld [vmem:[%s1155 + $0xac] sm:$0xff]
      %v1575 = vld [vmem:[%s1155 + $0xb4] sm:$0xff]
      %v1576 = vld [vmem:[%s1155 + $0xc4] sm:$0xff]
      %v1577 = vld [vmem:[%s1155 + $0xcc] sm:$0xff]
      %v1578 = vld [vmem:[%s1155 + $0xdc] sm:$0xff]
      %v1579 = vld [vmem:[%s1155 + $0xe4] sm:$0xff]
      %v1580 = vld [vmem:[%s1155 + $0xf4] sm:$0xff]
      %v1581 = vld [vmem:[%s1155 + $0xfc] sm:$0xff]
      %v1582 = vld [vmem:[%s1155 + $0x10c] sm:$0xff]
      %v1583 = vld [vmem:[%s1155 + $0x114] sm:$0xff]
      %v1584 = vld [vmem:[%s1155 + $0x124] sm:$0xff]
      %v1585 = vld [vmem:[%s1155 + $0x12c] sm:$0xff]
      %v1586 = vld [vmem:[%s1155 + $0x13c] sm:$0xff]
      %v1587 = vld [vmem:[%s1155 + $0x144] sm:$0xff]
      %v1588 = vld [vmem:[%s1155 + $0x154] sm:$0xff]
      %v1589 = vld [vmem:[%s1155 + $0x15c] sm:$0xff]
      %v1590 = vld [vmem:[%s1155 + $0x16c] sm:$0xff]
      %v1591 = vld [vmem:[%s1155 + $0x174] sm:$0xff]
      %v1592 = vld [vmem:[%s1 + $0xe] sm:$0x1]
      %v1593 = vlaneseq
      %v1594 = vshrl.u32 %v1593, 7
      %v1595 = vsub.s32 0, %v1594
      %v1596 = vrot.slane %v1592, %v1595
      %v1597 = vmul.f32 %v1560, %v1596
      %v1598 = vmul.f32 %v1561, %v1596
      %v1599 = vmul.f32 %v1562, %v1596
      %v1600 = vmul.f32 %v1563, %v1596
      %v1601 = vmul.f32 %v1564, %v1596
      %v1602 = vmul.f32 %v1565, %v1596
      %v1603 = vmul.f32 %v1566, %v1596
      %v1604 = vmul.f32 %v1567, %v1596
      %v1605 = vmul.f32 %v1568, %v1596
      %v1606 = vmul.f32 %v1569, %v1596
      %v1607 = vmul.f32 %v1570, %v1596
      %v1608 = vmul.f32 %v1571, %v1596
      %v1609 = vmul.f32 %v1572, %v1596
      %v1610 = vmul.f32 %v1573, %v1596
      %v1611 = vmul.f32 %v1574, %v1596
      %v1612 = vmul.f32 %v1575, %v1596
      %v1613 = vmul.f32 %v1576, %v1596
      %v1614 = vmul.f32 %v1577, %v1596
      %v1615 = vmul.f32 %v1578, %v1596
      %v1616 = vmul.f32 %v1579, %v1596
      %v1617 = vmul.f32 %v1580, %v1596
      %v1618 = vmul.f32 %v1581, %v1596
      %v1619 = vmul.f32 %v1582, %v1596
      %v1620 = vmul.f32 %v1583, %v1596
      %v1621 = vmul.f32 %v1584, %v1596
      %v1622 = vmul.f32 %v1585, %v1596
      %v1623 = vmul.f32 %v1586, %v1596
      %v1624 = vmul.f32 %v1587, %v1596
      %v1625 = vmul.f32 %v1588, %v1596
      %v1626 = vmul.f32 %v1589, %v1596
      %v1627 = vmul.f32 %v1590, %v1596
      %v1628 = vmul.f32 %v1591, %v1596
      %v1629 = vadd.f32 %v1528, %v1597
      %v1630 = vadd.f32 %v1529, %v1598
      %v1631 = vadd.f32 %v1530, %v1599
      %v1632 = vadd.f32 %v1531, %v1600
      %v1633 = vadd.f32 %v1532, %v1601
      %v1634 = vadd.f32 %v1533, %v1602
      %v1635 = vadd.f32 %v1534, %v1603
      %v1636 = vadd.f32 %v1535, %v1604
      %v1637 = vadd.f32 %v1536, %v1605
      %v1638 = vadd.f32 %v1537, %v1606
      %v1639 = vadd.f32 %v1538, %v1607
      %v1640 = vadd.f32 %v1539, %v1608
      %v1641 = vadd.f32 %v1540, %v1609
      %v1642 = vadd.f32 %v1541, %v1610
      %v1643 = vadd.f32 %v1542, %v1611
      %v1644 = vadd.f32 %v1543, %v1612
      %v1645 = vadd.f32 %v1544, %v1613
      %v1646 = vadd.f32 %v1545, %v1614
      %v1647 = vadd.f32 %v1546, %v1615
      %v1648 = vadd.f32 %v1547, %v1616
      %v1649 = vadd.f32 %v1548, %v1617
      %v1650 = vadd.f32 %v1549, %v1618
      %v1651 = vadd.f32 %v1550, %v1619
      %v1652 = vadd.f32 %v1551, %v1620
      %v1653 = vadd.f32 %v1552, %v1621
      %v1654 = vadd.f32 %v1553, %v1622
      %v1655 = vadd.f32 %v1554, %v1623
      %v1656 = vadd.f32 %v1555, %v1624
      %v1657 = vadd.f32 %v1556, %v1625
      %v1658 = vadd.f32 %v1557, %v1626
      %v1659 = vadd.f32 %v1558, %v1627
      %v1660 = vadd.f32 %v1559, %v1628
      %s1661 = scalar_lea.vmem %s138, 72
      %v1662 = vld [vmem:[%s1661] sm:$0xff]
      %v1663 = vld [vmem:[%s1661 + $0x8] sm:$0xff]
      %v1664 = vld [vmem:[%s1661 + $0x18] sm:$0xff]
      %v1665 = vld [vmem:[%s1661 + $0x20] sm:$0xff]
      %v1666 = vld [vmem:[%s1661 + $0x30] sm:$0xff]
      %v1667 = vld [vmem:[%s1661 + $0x38] sm:$0xff]
      %v1668 = vld [vmem:[%s1661 + $0x48] sm:$0xff]
      %v1669 = vld [vmem:[%s1661 + $0x50] sm:$0xff]
      %v1670 = vld [vmem:[%s1661 + $0x60] sm:$0xff]
      %v1671 = vld [vmem:[%s1661 + $0x68] sm:$0xff]
      %v1672 = vld [vmem:[%s1661 + $0x78] sm:$0xff]
      %v1673 = vld [vmem:[%s1661 + $0x80] sm:$0xff]
      %v1674 = vld [vmem:[%s1661 + $0x90] sm:$0xff]
      %v1675 = vld [vmem:[%s1661 + $0x98] sm:$0xff]
      %v1676 = vld [vmem:[%s1661 + $0xa8] sm:$0xff]
      %v1677 = vld [vmem:[%s1661 + $0xb0] sm:$0xff]
      %v1678 = vld [vmem:[%s1661 + $0xc0] sm:$0xff]
      %v1679 = vld [vmem:[%s1661 + $0xc8] sm:$0xff]
      %v1680 = vld [vmem:[%s1661 + $0xd8] sm:$0xff]
      %v1681 = vld [vmem:[%s1661 + $0xe0] sm:$0xff]
      %v1682 = vld [vmem:[%s1661 + $0xf0] sm:$0xff]
      %v1683 = vld [vmem:[%s1661 + $0xf8] sm:$0xff]
      %v1684 = vld [vmem:[%s1661 + $0x108] sm:$0xff]
      %v1685 = vld [vmem:[%s1661 + $0x110] sm:$0xff]
      %v1686 = vld [vmem:[%s1661 + $0x120] sm:$0xff]
      %v1687 = vld [vmem:[%s1661 + $0x128] sm:$0xff]
      %v1688 = vld [vmem:[%s1661 + $0x138] sm:$0xff]
      %v1689 = vld [vmem:[%s1661 + $0x140] sm:$0xff]
      %v1690 = vld [vmem:[%s1661 + $0x150] sm:$0xff]
      %v1691 = vld [vmem:[%s1661 + $0x158] sm:$0xff]
      %v1692 = vld [vmem:[%s1661 + $0x168] sm:$0xff]
      %v1693 = vld [vmem:[%s1661 + $0x170] sm:$0xff]
      %v1694 = vld [vmem:[%s1 + $0xf] sm:$0x1]
      %v1695 = vlaneseq
      %v1696 = vshrl.u32 %v1695, 7
      %v1697 = vsub.s32 0, %v1696
      %v1698 = vrot.slane %v1694, %v1697
      %v1699 = vmul.f32 %v1662, %v1698
      %v1700 = vmul.f32 %v1663, %v1698
      %v1701 = vmul.f32 %v1664, %v1698
      %v1702 = vmul.f32 %v1665, %v1698
      %v1703 = vmul.f32 %v1666, %v1698
      %v1704 = vmul.f32 %v1667, %v1698
      %v1705 = vmul.f32 %v1668, %v1698
      %v1706 = vmul.f32 %v1669, %v1698
      %v1707 = vmul.f32 %v1670, %v1698
      %v1708 = vmul.f32 %v1671, %v1698
      %v1709 = vmul.f32 %v1672, %v1698
      %v1710 = vmul.f32 %v1673, %v1698
      %v1711 = vmul.f32 %v1674, %v1698
      %v1712 = vmul.f32 %v1675, %v1698
      %v1713 = vmul.f32 %v1676, %v1698
      %v1714 = vmul.f32 %v1677, %v1698
      %v1715 = vmul.f32 %v1678, %v1698
      %v1716 = vmul.f32 %v1679, %v1698
      %v1717 = vmul.f32 %v1680, %v1698
      %v1718 = vmul.f32 %v1681, %v1698
      %v1719 = vmul.f32 %v1682, %v1698
      %v1720 = vmul.f32 %v1683, %v1698
      %v1721 = vmul.f32 %v1684, %v1698
      %v1722 = vmul.f32 %v1685, %v1698
      %v1723 = vmul.f32 %v1686, %v1698
      %v1724 = vmul.f32 %v1687, %v1698
      %v1725 = vmul.f32 %v1688, %v1698
      %v1726 = vmul.f32 %v1689, %v1698
      %v1727 = vmul.f32 %v1690, %v1698
      %v1728 = vmul.f32 %v1691, %v1698
      %v1729 = vmul.f32 %v1692, %v1698
      %v1730 = vmul.f32 %v1693, %v1698
      %v1731 = vadd.f32 %v1629, %v1699
      %v1732 = vadd.f32 %v1630, %v1700
      %v1733 = vadd.f32 %v1631, %v1701
      %v1734 = vadd.f32 %v1632, %v1702
      %v1735 = vadd.f32 %v1633, %v1703
      %v1736 = vadd.f32 %v1634, %v1704
      %v1737 = vadd.f32 %v1635, %v1705
      %v1738 = vadd.f32 %v1636, %v1706
      %v1739 = vadd.f32 %v1637, %v1707
      %v1740 = vadd.f32 %v1638, %v1708
      %v1741 = vadd.f32 %v1639, %v1709
      %v1742 = vadd.f32 %v1640, %v1710
      %v1743 = vadd.f32 %v1641, %v1711
      %v1744 = vadd.f32 %v1642, %v1712
      %v1745 = vadd.f32 %v1643, %v1713
      %v1746 = vadd.f32 %v1644, %v1714
      %v1747 = vadd.f32 %v1645, %v1715
      %v1748 = vadd.f32 %v1646, %v1716
      %v1749 = vadd.f32 %v1647, %v1717
      %v1750 = vadd.f32 %v1648, %v1718
      %v1751 = vadd.f32 %v1649, %v1719
      %v1752 = vadd.f32 %v1650, %v1720
      %v1753 = vadd.f32 %v1651, %v1721
      %v1754 = vadd.f32 %v1652, %v1722
      %v1755 = vadd.f32 %v1653, %v1723
      %v1756 = vadd.f32 %v1654, %v1724
      %v1757 = vadd.f32 %v1655, %v1725
      %v1758 = vadd.f32 %v1656, %v1726
      %v1759 = vadd.f32 %v1657, %v1727
      %v1760 = vadd.f32 %v1658, %v1728
      %v1761 = vadd.f32 %v1659, %v1729
      %v1762 = vadd.f32 %v1660, %v1730
      %v1763 = vld [vmem:[%s1661 + $0x1] sm:$0xff]
      %v1764 = vld [vmem:[%s1661 + $0x9] sm:$0xff]
      %v1765 = vld [vmem:[%s1661 + $0x19] sm:$0xff]
      %v1766 = vld [vmem:[%s1661 + $0x21] sm:$0xff]
      %v1767 = vld [vmem:[%s1661 + $0x31] sm:$0xff]
      %v1768 = vld [vmem:[%s1661 + $0x39] sm:$0xff]
      %v1769 = vld [vmem:[%s1661 + $0x49] sm:$0xff]
      %v1770 = vld [vmem:[%s1661 + $0x51] sm:$0xff]
      %v1771 = vld [vmem:[%s1661 + $0x61] sm:$0xff]
      %v1772 = vld [vmem:[%s1661 + $0x69] sm:$0xff]
      %v1773 = vld [vmem:[%s1661 + $0x79] sm:$0xff]
      %v1774 = vld [vmem:[%s1661 + $0x81] sm:$0xff]
      %v1775 = vld [vmem:[%s1661 + $0x91] sm:$0xff]
      %v1776 = vld [vmem:[%s1661 + $0x99] sm:$0xff]
      %v1777 = vld [vmem:[%s1661 + $0xa9] sm:$0xff]
      %v1778 = vld [vmem:[%s1661 + $0xb1] sm:$0xff]
      %v1779 = vld [vmem:[%s1661 + $0xc1] sm:$0xff]
      %v1780 = vld [vmem:[%s1661 + $0xc9] sm:$0xff]
      %v1781 = vld [vmem:[%s1661 + $0xd9] sm:$0xff]
      %v1782 = vld [vmem:[%s1661 + $0xe1] sm:$0xff]
      %v1783 = vld [vmem:[%s1661 + $0xf1] sm:$0xff]
      %v1784 = vld [vmem:[%s1661 + $0xf9] sm:$0xff]
      %v1785 = vld [vmem:[%s1661 + $0x109] sm:$0xff]
      %v1786 = vld [vmem:[%s1661 + $0x111] sm:$0xff]
      %v1787 = vld [vmem:[%s1661 + $0x121] sm:$0xff]
      %v1788 = vld [vmem:[%s1661 + $0x129] sm:$0xff]
      %v1789 = vld [vmem:[%s1661 + $0x139] sm:$0xff]
      %v1790 = vld [vmem:[%s1661 + $0x141] sm:$0xff]
      %v1791 = vld [vmem:[%s1661 + $0x151] sm:$0xff]
      %v1792 = vld [vmem:[%s1661 + $0x159] sm:$0xff]
      %v1793 = vld [vmem:[%s1661 + $0x169] sm:$0xff]
      %v1794 = vld [vmem:[%s1661 + $0x171] sm:$0xff]
      %v1795 = vld [vmem:[%s1 + $0x10] sm:$0x1]
      %v1796 = vlaneseq
      %v1797 = vshrl.u32 %v1796, 7
      %v1798 = vsub.s32 0, %v1797
      %v1799 = vrot.slane %v1795, %v1798
      %v1800 = vmul.f32 %v1763, %v1799
      %v1801 = vmul.f32 %v1764, %v1799
      %v1802 = vmul.f32 %v1765, %v1799
      %v1803 = vmul.f32 %v1766, %v1799
      %v1804 = vmul.f32 %v1767, %v1799
      %v1805 = vmul.f32 %v1768, %v1799
      %v1806 = vmul.f32 %v1769, %v1799
      %v1807 = vmul.f32 %v1770, %v1799
      %v1808 = vmul.f32 %v1771, %v1799
      %v1809 = vmul.f32 %v1772, %v1799
      %v1810 = vmul.f32 %v1773, %v1799
      %v1811 = vmul.f32 %v1774, %v1799
      %v1812 = vmul.f32 %v1775, %v1799
      %v1813 = vmul.f32 %v1776, %v1799
      %v1814 = vmul.f32 %v1777, %v1799
      %v1815 = vmul.f32 %v1778, %v1799
      %v1816 = vmul.f32 %v1779, %v1799
      %v1817 = vmul.f32 %v1780, %v1799
      %v1818 = vmul.f32 %v1781, %v1799
      %v1819 = vmul.f32 %v1782, %v1799
      %v1820 = vmul.f32 %v1783, %v1799
      %v1821 = vmul.f32 %v1784, %v1799
      %v1822 = vmul.f32 %v1785, %v1799
      %v1823 = vmul.f32 %v1786, %v1799
      %v1824 = vmul.f32 %v1787, %v1799
      %v1825 = vmul.f32 %v1788, %v1799
      %v1826 = vmul.f32 %v1789, %v1799
      %v1827 = vmul.f32 %v1790, %v1799
      %v1828 = vmul.f32 %v1791, %v1799
      %v1829 = vmul.f32 %v1792, %v1799
      %v1830 = vmul.f32 %v1793, %v1799
      %v1831 = vmul.f32 %v1794, %v1799
      %v1832 = vadd.f32 %v1731, %v1800
      %v1833 = vadd.f32 %v1732, %v1801
      %v1834 = vadd.f32 %v1733, %v1802
      %v1835 = vadd.f32 %v1734, %v1803
      %v1836 = vadd.f32 %v1735, %v1804
      %v1837 = vadd.f32 %v1736, %v1805
      %v1838 = vadd.f32 %v1737, %v1806
      %v1839 = vadd.f32 %v1738, %v1807
      %v1840 = vadd.f32 %v1739, %v1808
      %v1841 = vadd.f32 %v1740, %v1809
      %v1842 = vadd.f32 %v1741, %v1810
      %v1843 = vadd.f32 %v1742, %v1811
      %v1844 = vadd.f32 %v1743, %v1812
      %v1845 = vadd.f32 %v1744, %v1813
      %v1846 = vadd.f32 %v1745, %v1814
      %v1847 = vadd.f32 %v1746, %v1815
      %v1848 = vadd.f32 %v1747, %v1816
      %v1849 = vadd.f32 %v1748, %v1817
      %v1850 = vadd.f32 %v1749, %v1818
      %v1851 = vadd.f32 %v1750, %v1819
      %v1852 = vadd.f32 %v1751, %v1820
      %v1853 = vadd.f32 %v1752, %v1821
      %v1854 = vadd.f32 %v1753, %v1822
      %v1855 = vadd.f32 %v1754, %v1823
      %v1856 = vadd.f32 %v1755, %v1824
      %v1857 = vadd.f32 %v1756, %v1825
      %v1858 = vadd.f32 %v1757, %v1826
      %v1859 = vadd.f32 %v1758, %v1827
      %v1860 = vadd.f32 %v1759, %v1828
      %v1861 = vadd.f32 %v1760, %v1829
      %v1862 = vadd.f32 %v1761, %v1830
      %v1863 = vadd.f32 %v1762, %v1831
      %v1864 = vld [vmem:[%s1661 + $0x2] sm:$0xff]
      %v1865 = vld [vmem:[%s1661 + $0xa] sm:$0xff]
      %v1866 = vld [vmem:[%s1661 + $0x1a] sm:$0xff]
      %v1867 = vld [vmem:[%s1661 + $0x22] sm:$0xff]
      %v1868 = vld [vmem:[%s1661 + $0x32] sm:$0xff]
      %v1869 = vld [vmem:[%s1661 + $0x3a] sm:$0xff]
      %v1870 = vld [vmem:[%s1661 + $0x4a] sm:$0xff]
      %v1871 = vld [vmem:[%s1661 + $0x52] sm:$0xff]
      %v1872 = vld [vmem:[%s1661 + $0x62] sm:$0xff]
      %v1873 = vld [vmem:[%s1661 + $0x6a] sm:$0xff]
      %v1874 = vld [vmem:[%s1661 + $0x7a] sm:$0xff]
      %v1875 = vld [vmem:[%s1661 + $0x82] sm:$0xff]
      %v1876 = vld [vmem:[%s1661 + $0x92] sm:$0xff]
      %v1877 = vld [vmem:[%s1661 + $0x9a] sm:$0xff]
      %v1878 = vld [vmem:[%s1661 + $0xaa] sm:$0xff]
      %v1879 = vld [vmem:[%s1661 + $0xb2] sm:$0xff]
      %v1880 = vld [vmem:[%s1661 + $0xc2] sm:$0xff]
      %v1881 = vld [vmem:[%s1661 + $0xca] sm:$0xff]
      %v1882 = vld [vmem:[%s1661 + $0xda] sm:$0xff]
      %v1883 = vld [vmem:[%s1661 + $0xe2] sm:$0xff]
      %v1884 = vld [vmem:[%s1661 + $0xf2] sm:$0xff]
      %v1885 = vld [vmem:[%s1661 + $0xfa] sm:$0xff]
      %v1886 = vld [vmem:[%s1661 + $0x10a] sm:$0xff]
      %v1887 = vld [vmem:[%s1661 + $0x112] sm:$0xff]
      %v1888 = vld [vmem:[%s1661 + $0x122] sm:$0xff]
      %v1889 = vld [vmem:[%s1661 + $0x12a] sm:$0xff]
      %v1890 = vld [vmem:[%s1661 + $0x13a] sm:$0xff]
      %v1891 = vld [vmem:[%s1661 + $0x142] sm:$0xff]
      %v1892 = vld [vmem:[%s1661 + $0x152] sm:$0xff]
      %v1893 = vld [vmem:[%s1661 + $0x15a] sm:$0xff]
      %v1894 = vld [vmem:[%s1661 + $0x16a] sm:$0xff]
      %v1895 = vld [vmem:[%s1661 + $0x172] sm:$0xff]
      %v1896 = vld [vmem:[%s1 + $0x11] sm:$0x1]
      %v1897 = vlaneseq
      %v1898 = vshrl.u32 %v1897, 7
      %v1899 = vsub.s32 0, %v1898
      %v1900 = vrot.slane %v1896, %v1899
      %v1901 = vmul.f32 %v1864, %v1900
      %v1902 = vmul.f32 %v1865, %v1900
      %v1903 = vmul.f32 %v1866, %v1900
      %v1904 = vmul.f32 %v1867, %v1900
      %v1905 = vmul.f32 %v1868, %v1900
      %v1906 = vmul.f32 %v1869, %v1900
      %v1907 = vmul.f32 %v1870, %v1900
      %v1908 = vmul.f32 %v1871, %v1900
      %v1909 = vmul.f32 %v1872, %v1900
      %v1910 = vmul.f32 %v1873, %v1900
      %v1911 = vmul.f32 %v1874, %v1900
      %v1912 = vmul.f32 %v1875, %v1900
      %v1913 = vmul.f32 %v1876, %v1900
      %v1914 = vmul.f32 %v1877, %v1900
      %v1915 = vmul.f32 %v1878, %v1900
      %v1916 = vmul.f32 %v1879, %v1900
      %v1917 = vmul.f32 %v1880, %v1900
      %v1918 = vmul.f32 %v1881, %v1900
      %v1919 = vmul.f32 %v1882, %v1900
      %v1920 = vmul.f32 %v1883, %v1900
      %v1921 = vmul.f32 %v1884, %v1900
      %v1922 = vmul.f32 %v1885, %v1900
      %v1923 = vmul.f32 %v1886, %v1900
      %v1924 = vmul.f32 %v1887, %v1900
      %v1925 = vmul.f32 %v1888, %v1900
      %v1926 = vmul.f32 %v1889, %v1900
      %v1927 = vmul.f32 %v1890, %v1900
      %v1928 = vmul.f32 %v1891, %v1900
      %v1929 = vmul.f32 %v1892, %v1900
      %v1930 = vmul.f32 %v1893, %v1900
      %v1931 = vmul.f32 %v1894, %v1900
      %v1932 = vmul.f32 %v1895, %v1900
      %v1933 = vadd.f32 %v1832, %v1901
      %v1934 = vadd.f32 %v1833, %v1902
      %v1935 = vadd.f32 %v1834, %v1903
      %v1936 = vadd.f32 %v1835, %v1904
      %v1937 = vadd.f32 %v1836, %v1905
      %v1938 = vadd.f32 %v1837, %v1906
      %v1939 = vadd.f32 %v1838, %v1907
      %v1940 = vadd.f32 %v1839, %v1908
      %v1941 = vadd.f32 %v1840, %v1909
      %v1942 = vadd.f32 %v1841, %v1910
      %v1943 = vadd.f32 %v1842, %v1911
      %v1944 = vadd.f32 %v1843, %v1912
      %v1945 = vadd.f32 %v1844, %v1913
      %v1946 = vadd.f32 %v1845, %v1914
      %v1947 = vadd.f32 %v1846, %v1915
      %v1948 = vadd.f32 %v1847, %v1916
      %v1949 = vadd.f32 %v1848, %v1917
      %v1950 = vadd.f32 %v1849, %v1918
      %v1951 = vadd.f32 %v1850, %v1919
      %v1952 = vadd.f32 %v1851, %v1920
      %v1953 = vadd.f32 %v1852, %v1921
      %v1954 = vadd.f32 %v1853, %v1922
      %v1955 = vadd.f32 %v1854, %v1923
      %v1956 = vadd.f32 %v1855, %v1924
      %v1957 = vadd.f32 %v1856, %v1925
      %v1958 = vadd.f32 %v1857, %v1926
      %v1959 = vadd.f32 %v1858, %v1927
      %v1960 = vadd.f32 %v1859, %v1928
      %v1961 = vadd.f32 %v1860, %v1929
      %v1962 = vadd.f32 %v1861, %v1930
      %v1963 = vadd.f32 %v1862, %v1931
      %v1964 = vadd.f32 %v1863, %v1932
      %v1965 = vld [vmem:[%s1661 + $0x3] sm:$0xff]
      %v1966 = vld [vmem:[%s1661 + $0xb] sm:$0xff]
      %v1967 = vld [vmem:[%s1661 + $0x1b] sm:$0xff]
      %v1968 = vld [vmem:[%s1661 + $0x23] sm:$0xff]
      %v1969 = vld [vmem:[%s1661 + $0x33] sm:$0xff]
      %v1970 = vld [vmem:[%s1661 + $0x3b] sm:$0xff]
      %v1971 = vld [vmem:[%s1661 + $0x4b] sm:$0xff]
      %v1972 = vld [vmem:[%s1661 + $0x53] sm:$0xff]
      %v1973 = vld [vmem:[%s1661 + $0x63] sm:$0xff]
      %v1974 = vld [vmem:[%s1661 + $0x6b] sm:$0xff]
      %v1975 = vld [vmem:[%s1661 + $0x7b] sm:$0xff]
      %v1976 = vld [vmem:[%s1661 + $0x83] sm:$0xff]
      %v1977 = vld [vmem:[%s1661 + $0x93] sm:$0xff]
      %v1978 = vld [vmem:[%s1661 + $0x9b] sm:$0xff]
      %v1979 = vld [vmem:[%s1661 + $0xab] sm:$0xff]
      %v1980 = vld [vmem:[%s1661 + $0xb3] sm:$0xff]
      %v1981 = vld [vmem:[%s1661 + $0xc3] sm:$0xff]
      %v1982 = vld [vmem:[%s1661 + $0xcb] sm:$0xff]
      %v1983 = vld [vmem:[%s1661 + $0xdb] sm:$0xff]
      %v1984 = vld [vmem:[%s1661 + $0xe3] sm:$0xff]
      %v1985 = vld [vmem:[%s1661 + $0xf3] sm:$0xff]
      %v1986 = vld [vmem:[%s1661 + $0xfb] sm:$0xff]
      %v1987 = vld [vmem:[%s1661 + $0x10b] sm:$0xff]
      %v1988 = vld [vmem:[%s1661 + $0x113] sm:$0xff]
      %v1989 = vld [vmem:[%s1661 + $0x123] sm:$0xff]
      %v1990 = vld [vmem:[%s1661 + $0x12b] sm:$0xff]
      %v1991 = vld [vmem:[%s1661 + $0x13b] sm:$0xff]
      %v1992 = vld [vmem:[%s1661 + $0x143] sm:$0xff]
      %v1993 = vld [vmem:[%s1661 + $0x153] sm:$0xff]
      %v1994 = vld [vmem:[%s1661 + $0x15b] sm:$0xff]
      %v1995 = vld [vmem:[%s1661 + $0x16b] sm:$0xff]
      %v1996 = vld [vmem:[%s1661 + $0x173] sm:$0xff]
      %v1997 = vld [vmem:[%s1 + $0x12] sm:$0x1]
      %v1998 = vlaneseq
      %v1999 = vshrl.u32 %v1998, 7
      %v2000 = vsub.s32 0, %v1999
      %v2001 = vrot.slane %v1997, %v2000
      %v2002 = vmul.f32 %v1965, %v2001
      %v2003 = vmul.f32 %v1966, %v2001
      %v2004 = vmul.f32 %v1967, %v2001
      %v2005 = vmul.f32 %v1968, %v2001
      %v2006 = vmul.f32 %v1969, %v2001
      %v2007 = vmul.f32 %v1970, %v2001
      %v2008 = vmul.f32 %v1971, %v2001
      %v2009 = vmul.f32 %v1972, %v2001
      %v2010 = vmul.f32 %v1973, %v2001
      %v2011 = vmul.f32 %v1974, %v2001
      %v2012 = vmul.f32 %v1975, %v2001
      %v2013 = vmul.f32 %v1976, %v2001
      %v2014 = vmul.f32 %v1977, %v2001
      %v2015 = vmul.f32 %v1978, %v2001
      %v2016 = vmul.f32 %v1979, %v2001
      %v2017 = vmul.f32 %v1980, %v2001
      %v2018 = vmul.f32 %v1981, %v2001
      %v2019 = vmul.f32 %v1982, %v2001
      %v2020 = vmul.f32 %v1983, %v2001
      %v2021 = vmul.f32 %v1984, %v2001
      %v2022 = vmul.f32 %v1985, %v2001
      %v2023 = vmul.f32 %v1986, %v2001
      %v2024 = vmul.f32 %v1987, %v2001
      %v2025 = vmul.f32 %v1988, %v2001
      %v2026 = vmul.f32 %v1989, %v2001
      %v2027 = vmul.f32 %v1990, %v2001
      %v2028 = vmul.f32 %v1991, %v2001
      %v2029 = vmul.f32 %v1992, %v2001
      %v2030 = vmul.f32 %v1993, %v2001
      %v2031 = vmul.f32 %v1994, %v2001
      %v2032 = vmul.f32 %v1995, %v2001
      %v2033 = vmul.f32 %v1996, %v2001
      %v2034 = vadd.f32 %v1933, %v2002
      %v2035 = vadd.f32 %v1934, %v2003
      %v2036 = vadd.f32 %v1935, %v2004
      %v2037 = vadd.f32 %v1936, %v2005
      %v2038 = vadd.f32 %v1937, %v2006
      %v2039 = vadd.f32 %v1938, %v2007
      %v2040 = vadd.f32 %v1939, %v2008
      %v2041 = vadd.f32 %v1940, %v2009
      %v2042 = vadd.f32 %v1941, %v2010
      %v2043 = vadd.f32 %v1942, %v2011
      %v2044 = vadd.f32 %v1943, %v2012
      %v2045 = vadd.f32 %v1944, %v2013
      %v2046 = vadd.f32 %v1945, %v2014
      %v2047 = vadd.f32 %v1946, %v2015
      %v2048 = vadd.f32 %v1947, %v2016
      %v2049 = vadd.f32 %v1948, %v2017
      %v2050 = vadd.f32 %v1949, %v2018
      %v2051 = vadd.f32 %v1950, %v2019
      %v2052 = vadd.f32 %v1951, %v2020
      %v2053 = vadd.f32 %v1952, %v2021
      %v2054 = vadd.f32 %v1953, %v2022
      %v2055 = vadd.f32 %v1954, %v2023
      %v2056 = vadd.f32 %v1955, %v2024
      %v2057 = vadd.f32 %v1956, %v2025
      %v2058 = vadd.f32 %v1957, %v2026
      %v2059 = vadd.f32 %v1958, %v2027
      %v2060 = vadd.f32 %v1959, %v2028
      %v2061 = vadd.f32 %v1960, %v2029
      %v2062 = vadd.f32 %v1961, %v2030
      %v2063 = vadd.f32 %v1962, %v2031
      %v2064 = vadd.f32 %v1963, %v2032
      %v2065 = vadd.f32 %v1964, %v2033
      %v2066 = vld [vmem:[%s1661 + $0x4] sm:$0xff]
      %v2067 = vld [vmem:[%s1661 + $0xc] sm:$0xff]
      %v2068 = vld [vmem:[%s1661 + $0x1c] sm:$0xff]
      %v2069 = vld [vmem:[%s1661 + $0x24] sm:$0xff]
      %v2070 = vld [vmem:[%s1661 + $0x34] sm:$0xff]
      %v2071 = vld [vmem:[%s1661 + $0x3c] sm:$0xff]
      %v2072 = vld [vmem:[%s1661 + $0x4c] sm:$0xff]
      %v2073 = vld [vmem:[%s1661 + $0x54] sm:$0xff]
      %v2074 = vld [vmem:[%s1661 + $0x64] sm:$0xff]
      %v2075 = vld [vmem:[%s1661 + $0x6c] sm:$0xff]
      %v2076 = vld [vmem:[%s1661 + $0x7c] sm:$0xff]
      %v2077 = vld [vmem:[%s1661 + $0x84] sm:$0xff]
      %v2078 = vld [vmem:[%s1661 + $0x94] sm:$0xff]
      %v2079 = vld [vmem:[%s1661 + $0x9c] sm:$0xff]
      %v2080 = vld [vmem:[%s1661 + $0xac] sm:$0xff]
      %v2081 = vld [vmem:[%s1661 + $0xb4] sm:$0xff]
      %v2082 = vld [vmem:[%s1661 + $0xc4] sm:$0xff]
      %v2083 = vld [vmem:[%s1661 + $0xcc] sm:$0xff]
      %v2084 = vld [vmem:[%s1661 + $0xdc] sm:$0xff]
      %v2085 = vld [vmem:[%s1661 + $0xe4] sm:$0xff]
      %v2086 = vld [vmem:[%s1661 + $0xf4] sm:$0xff]
      %v2087 = vld [vmem:[%s1661 + $0xfc] sm:$0xff]
      %v2088 = vld [vmem:[%s1661 + $0x10c] sm:$0xff]
      %v2089 = vld [vmem:[%s1661 + $0x114] sm:$0xff]
      %v2090 = vld [vmem:[%s1661 + $0x124] sm:$0xff]
      %v2091 = vld [vmem:[%s1661 + $0x12c] sm:$0xff]
      %v2092 = vld [vmem:[%s1661 + $0x13c] sm:$0xff]
      %v2093 = vld [vmem:[%s1661 + $0x144] sm:$0xff]
      %v2094 = vld [vmem:[%s1661 + $0x154] sm:$0xff]
      %v2095 = vld [vmem:[%s1661 + $0x15c] sm:$0xff]
      %v2096 = vld [vmem:[%s1661 + $0x16c] sm:$0xff]
      %v2097 = vld [vmem:[%s1661 + $0x174] sm:$0xff]
      %v2098 = vld [vmem:[%s1 + $0x13] sm:$0x1]
      %v2099 = vlaneseq
      %v2100 = vshrl.u32 %v2099, 7
      %v2101 = vsub.s32 0, %v2100
      %v2102 = vrot.slane %v2098, %v2101
      %v2103 = vmul.f32 %v2066, %v2102
      %v2104 = vmul.f32 %v2067, %v2102
      %v2105 = vmul.f32 %v2068, %v2102
      %v2106 = vmul.f32 %v2069, %v2102
      %v2107 = vmul.f32 %v2070, %v2102
      %v2108 = vmul.f32 %v2071, %v2102
      %v2109 = vmul.f32 %v2072, %v2102
      %v2110 = vmul.f32 %v2073, %v2102
      %v2111 = vmul.f32 %v2074, %v2102
      %v2112 = vmul.f32 %v2075, %v2102
      %v2113 = vmul.f32 %v2076, %v2102
      %v2114 = vmul.f32 %v2077, %v2102
      %v2115 = vmul.f32 %v2078, %v2102
      %v2116 = vmul.f32 %v2079, %v2102
      %v2117 = vmul.f32 %v2080, %v2102
      %v2118 = vmul.f32 %v2081, %v2102
      %v2119 = vmul.f32 %v2082, %v2102
      %v2120 = vmul.f32 %v2083, %v2102
      %v2121 = vmul.f32 %v2084, %v2102
      %v2122 = vmul.f32 %v2085, %v2102
      %v2123 = vmul.f32 %v2086, %v2102
      %v2124 = vmul.f32 %v2087, %v2102
      %v2125 = vmul.f32 %v2088, %v2102
      %v2126 = vmul.f32 %v2089, %v2102
      %v2127 = vmul.f32 %v2090, %v2102
      %v2128 = vmul.f32 %v2091, %v2102
      %v2129 = vmul.f32 %v2092, %v2102
      %v2130 = vmul.f32 %v2093, %v2102
      %v2131 = vmul.f32 %v2094, %v2102
      %v2132 = vmul.f32 %v2095, %v2102
      %v2133 = vmul.f32 %v2096, %v2102
      %v2134 = vmul.f32 %v2097, %v2102
      %v2135 = vadd.f32 %v2034, %v2103
      %v2136 = vadd.f32 %v2035, %v2104
      %v2137 = vadd.f32 %v2036, %v2105
      %v2138 = vadd.f32 %v2037, %v2106
      %v2139 = vadd.f32 %v2038, %v2107
      %v2140 = vadd.f32 %v2039, %v2108
      %v2141 = vadd.f32 %v2040, %v2109
      %v2142 = vadd.f32 %v2041, %v2110
      %v2143 = vadd.f32 %v2042, %v2111
      %v2144 = vadd.f32 %v2043, %v2112
      %v2145 = vadd.f32 %v2044, %v2113
      %v2146 = vadd.f32 %v2045, %v2114
      %v2147 = vadd.f32 %v2046, %v2115
      %v2148 = vadd.f32 %v2047, %v2116
      %v2149 = vadd.f32 %v2048, %v2117
      %v2150 = vadd.f32 %v2049, %v2118
      %v2151 = vadd.f32 %v2050, %v2119
      %v2152 = vadd.f32 %v2051, %v2120
      %v2153 = vadd.f32 %v2052, %v2121
      %v2154 = vadd.f32 %v2053, %v2122
      %v2155 = vadd.f32 %v2054, %v2123
      %v2156 = vadd.f32 %v2055, %v2124
      %v2157 = vadd.f32 %v2056, %v2125
      %v2158 = vadd.f32 %v2057, %v2126
      %v2159 = vadd.f32 %v2058, %v2127
      %v2160 = vadd.f32 %v2059, %v2128
      %v2161 = vadd.f32 %v2060, %v2129
      %v2162 = vadd.f32 %v2061, %v2130
      %v2163 = vadd.f32 %v2062, %v2131
      %v2164 = vadd.f32 %v2063, %v2132
      %v2165 = vadd.f32 %v2064, %v2133
      %v2166 = vadd.f32 %v2065, %v2134
      %s2167 = scalar_lea.vmem %s138, 96
      %v2168 = vld [vmem:[%s2167] sm:$0xff]
      %v2169 = vld [vmem:[%s2167 + $0x8] sm:$0xff]
      %v2170 = vld [vmem:[%s2167 + $0x18] sm:$0xff]
      %v2171 = vld [vmem:[%s2167 + $0x20] sm:$0xff]
      %v2172 = vld [vmem:[%s2167 + $0x30] sm:$0xff]
      %v2173 = vld [vmem:[%s2167 + $0x38] sm:$0xff]
      %v2174 = vld [vmem:[%s2167 + $0x48] sm:$0xff]
      %v2175 = vld [vmem:[%s2167 + $0x50] sm:$0xff]
      %v2176 = vld [vmem:[%s2167 + $0x60] sm:$0xff]
      %v2177 = vld [vmem:[%s2167 + $0x68] sm:$0xff]
      %v2178 = vld [vmem:[%s2167 + $0x78] sm:$0xff]
      %v2179 = vld [vmem:[%s2167 + $0x80] sm:$0xff]
      %v2180 = vld [vmem:[%s2167 + $0x90] sm:$0xff]
      %v2181 = vld [vmem:[%s2167 + $0x98] sm:$0xff]
      %v2182 = vld [vmem:[%s2167 + $0xa8] sm:$0xff]
      %v2183 = vld [vmem:[%s2167 + $0xb0] sm:$0xff]
      %v2184 = vld [vmem:[%s2167 + $0xc0] sm:$0xff]
      %v2185 = vld [vmem:[%s2167 + $0xc8] sm:$0xff]
      %v2186 = vld [vmem:[%s2167 + $0xd8] sm:$0xff]
      %v2187 = vld [vmem:[%s2167 + $0xe0] sm:$0xff]
      %v2188 = vld [vmem:[%s2167 + $0xf0] sm:$0xff]
      %v2189 = vld [vmem:[%s2167 + $0xf8] sm:$0xff]
      %v2190 = vld [vmem:[%s2167 + $0x108] sm:$0xff]
      %v2191 = vld [vmem:[%s2167 + $0x110] sm:$0xff]
      %v2192 = vld [vmem:[%s2167 + $0x120] sm:$0xff]
      %v2193 = vld [vmem:[%s2167 + $0x128] sm:$0xff]
      %v2194 = vld [vmem:[%s2167 + $0x138] sm:$0xff]
      %v2195 = vld [vmem:[%s2167 + $0x140] sm:$0xff]
      %v2196 = vld [vmem:[%s2167 + $0x150] sm:$0xff]
      %v2197 = vld [vmem:[%s2167 + $0x158] sm:$0xff]
      %v2198 = vld [vmem:[%s2167 + $0x168] sm:$0xff]
      %v2199 = vld [vmem:[%s2167 + $0x170] sm:$0xff]
      %v2200 = vld [vmem:[%s1 + $0x14] sm:$0x1]
      %v2201 = vlaneseq
      %v2202 = vshrl.u32 %v2201, 7
      %v2203 = vsub.s32 0, %v2202
      %v2204 = vrot.slane %v2200, %v2203
      %v2205 = vmul.f32 %v2168, %v2204
      %v2206 = vmul.f32 %v2169, %v2204
      %v2207 = vmul.f32 %v2170, %v2204
      %v2208 = vmul.f32 %v2171, %v2204
      %v2209 = vmul.f32 %v2172, %v2204
      %v2210 = vmul.f32 %v2173, %v2204
      %v2211 = vmul.f32 %v2174, %v2204
      %v2212 = vmul.f32 %v2175, %v2204
      %v2213 = vmul.f32 %v2176, %v2204
      %v2214 = vmul.f32 %v2177, %v2204
      %v2215 = vmul.f32 %v2178, %v2204
      %v2216 = vmul.f32 %v2179, %v2204
      %v2217 = vmul.f32 %v2180, %v2204
      %v2218 = vmul.f32 %v2181, %v2204
      %v2219 = vmul.f32 %v2182, %v2204
      %v2220 = vmul.f32 %v2183, %v2204
      %v2221 = vmul.f32 %v2184, %v2204
      %v2222 = vmul.f32 %v2185, %v2204
      %v2223 = vmul.f32 %v2186, %v2204
      %v2224 = vmul.f32 %v2187, %v2204
      %v2225 = vmul.f32 %v2188, %v2204
      %v2226 = vmul.f32 %v2189, %v2204
      %v2227 = vmul.f32 %v2190, %v2204
      %v2228 = vmul.f32 %v2191, %v2204
      %v2229 = vmul.f32 %v2192, %v2204
      %v2230 = vmul.f32 %v2193, %v2204
      %v2231 = vmul.f32 %v2194, %v2204
      %v2232 = vmul.f32 %v2195, %v2204
      %v2233 = vmul.f32 %v2196, %v2204
      %v2234 = vmul.f32 %v2197, %v2204
      %v2235 = vmul.f32 %v2198, %v2204
      %v2236 = vmul.f32 %v2199, %v2204
      %v2237 = vadd.f32 %v2135, %v2205
      %v2238 = vadd.f32 %v2136, %v2206
      %v2239 = vadd.f32 %v2137, %v2207
      %v2240 = vadd.f32 %v2138, %v2208
      %v2241 = vadd.f32 %v2139, %v2209
      %v2242 = vadd.f32 %v2140, %v2210
      %v2243 = vadd.f32 %v2141, %v2211
      %v2244 = vadd.f32 %v2142, %v2212
      %v2245 = vadd.f32 %v2143, %v2213
      %v2246 = vadd.f32 %v2144, %v2214
      %v2247 = vadd.f32 %v2145, %v2215
      %v2248 = vadd.f32 %v2146, %v2216
      %v2249 = vadd.f32 %v2147, %v2217
      %v2250 = vadd.f32 %v2148, %v2218
      %v2251 = vadd.f32 %v2149, %v2219
      %v2252 = vadd.f32 %v2150, %v2220
      %v2253 = vadd.f32 %v2151, %v2221
      %v2254 = vadd.f32 %v2152, %v2222
      %v2255 = vadd.f32 %v2153, %v2223
      %v2256 = vadd.f32 %v2154, %v2224
      %v2257 = vadd.f32 %v2155, %v2225
      %v2258 = vadd.f32 %v2156, %v2226
      %v2259 = vadd.f32 %v2157, %v2227
      %v2260 = vadd.f32 %v2158, %v2228
      %v2261 = vadd.f32 %v2159, %v2229
      %v2262 = vadd.f32 %v2160, %v2230
      %v2263 = vadd.f32 %v2161, %v2231
      %v2264 = vadd.f32 %v2162, %v2232
      %v2265 = vadd.f32 %v2163, %v2233
      %v2266 = vadd.f32 %v2164, %v2234
      %v2267 = vadd.f32 %v2165, %v2235
      %v2268 = vadd.f32 %v2166, %v2236
      %v2269 = vld [vmem:[%s2167 + $0x1] sm:$0xff]
      %v2270 = vld [vmem:[%s2167 + $0x9] sm:$0xff]
      %v2271 = vld [vmem:[%s2167 + $0x19] sm:$0xff]
      %v2272 = vld [vmem:[%s2167 + $0x21] sm:$0xff]
      %v2273 = vld [vmem:[%s2167 + $0x31] sm:$0xff]
      %v2274 = vld [vmem:[%s2167 + $0x39] sm:$0xff]
      %v2275 = vld [vmem:[%s2167 + $0x49] sm:$0xff]
      %v2276 = vld [vmem:[%s2167 + $0x51] sm:$0xff]
      %v2277 = vld [vmem:[%s2167 + $0x61] sm:$0xff]
      %v2278 = vld [vmem:[%s2167 + $0x69] sm:$0xff]
      %v2279 = vld [vmem:[%s2167 + $0x79] sm:$0xff]
      %v2280 = vld [vmem:[%s2167 + $0x81] sm:$0xff]
      %v2281 = vld [vmem:[%s2167 + $0x91] sm:$0xff]
      %v2282 = vld [vmem:[%s2167 + $0x99] sm:$0xff]
      %v2283 = vld [vmem:[%s2167 + $0xa9] sm:$0xff]
      %v2284 = vld [vmem:[%s2167 + $0xb1] sm:$0xff]
      %v2285 = vld [vmem:[%s2167 + $0xc1] sm:$0xff]
      %v2286 = vld [vmem:[%s2167 + $0xc9] sm:$0xff]
      %v2287 = vld [vmem:[%s2167 + $0xd9] sm:$0xff]
      %v2288 = vld [vmem:[%s2167 + $0xe1] sm:$0xff]
      %v2289 = vld [vmem:[%s2167 + $0xf1] sm:$0xff]
      %v2290 = vld [vmem:[%s2167 + $0xf9] sm:$0xff]
      %v2291 = vld [vmem:[%s2167 + $0x109] sm:$0xff]
      %v2292 = vld [vmem:[%s2167 + $0x111] sm:$0xff]
      %v2293 = vld [vmem:[%s2167 + $0x121] sm:$0xff]
      %v2294 = vld [vmem:[%s2167 + $0x129] sm:$0xff]
      %v2295 = vld [vmem:[%s2167 + $0x139] sm:$0xff]
      %v2296 = vld [vmem:[%s2167 + $0x141] sm:$0xff]
      %v2297 = vld [vmem:[%s2167 + $0x151] sm:$0xff]
      %v2298 = vld [vmem:[%s2167 + $0x159] sm:$0xff]
      %v2299 = vld [vmem:[%s2167 + $0x169] sm:$0xff]
      %v2300 = vld [vmem:[%s2167 + $0x171] sm:$0xff]
      %v2301 = vld [vmem:[%s1 + $0x15] sm:$0x1]
      %v2302 = vlaneseq
      %v2303 = vshrl.u32 %v2302, 7
      %v2304 = vsub.s32 0, %v2303
      %v2305 = vrot.slane %v2301, %v2304
      %v2306 = vmul.f32 %v2269, %v2305
      %v2307 = vmul.f32 %v2270, %v2305
      %v2308 = vmul.f32 %v2271, %v2305
      %v2309 = vmul.f32 %v2272, %v2305
      %v2310 = vmul.f32 %v2273, %v2305
      %v2311 = vmul.f32 %v2274, %v2305
      %v2312 = vmul.f32 %v2275, %v2305
      %v2313 = vmul.f32 %v2276, %v2305
      %v2314 = vmul.f32 %v2277, %v2305
      %v2315 = vmul.f32 %v2278, %v2305
      %v2316 = vmul.f32 %v2279, %v2305
      %v2317 = vmul.f32 %v2280, %v2305
      %v2318 = vmul.f32 %v2281, %v2305
      %v2319 = vmul.f32 %v2282, %v2305
      %v2320 = vmul.f32 %v2283, %v2305
      %v2321 = vmul.f32 %v2284, %v2305
      %v2322 = vmul.f32 %v2285, %v2305
      %v2323 = vmul.f32 %v2286, %v2305
      %v2324 = vmul.f32 %v2287, %v2305
      %v2325 = vmul.f32 %v2288, %v2305
      %v2326 = vmul.f32 %v2289, %v2305
      %v2327 = vmul.f32 %v2290, %v2305
      %v2328 = vmul.f32 %v2291, %v2305
      %v2329 = vmul.f32 %v2292, %v2305
      %v2330 = vmul.f32 %v2293, %v2305
      %v2331 = vmul.f32 %v2294, %v2305
      %v2332 = vmul.f32 %v2295, %v2305
      %v2333 = vmul.f32 %v2296, %v2305
      %v2334 = vmul.f32 %v2297, %v2305
      %v2335 = vmul.f32 %v2298, %v2305
      %v2336 = vmul.f32 %v2299, %v2305
      %v2337 = vmul.f32 %v2300, %v2305
      %v2338 = vadd.f32 %v2237, %v2306
      %v2339 = vadd.f32 %v2238, %v2307
      %v2340 = vadd.f32 %v2239, %v2308
      %v2341 = vadd.f32 %v2240, %v2309
      %v2342 = vadd.f32 %v2241, %v2310
      %v2343 = vadd.f32 %v2242, %v2311
      %v2344 = vadd.f32 %v2243, %v2312
      %v2345 = vadd.f32 %v2244, %v2313
      %v2346 = vadd.f32 %v2245, %v2314
      %v2347 = vadd.f32 %v2246, %v2315
      %v2348 = vadd.f32 %v2247, %v2316
      %v2349 = vadd.f32 %v2248, %v2317
      %v2350 = vadd.f32 %v2249, %v2318
      %v2351 = vadd.f32 %v2250, %v2319
      %v2352 = vadd.f32 %v2251, %v2320
      %v2353 = vadd.f32 %v2252, %v2321
      %v2354 = vadd.f32 %v2253, %v2322
      %v2355 = vadd.f32 %v2254, %v2323
      %v2356 = vadd.f32 %v2255, %v2324
      %v2357 = vadd.f32 %v2256, %v2325
      %v2358 = vadd.f32 %v2257, %v2326
      %v2359 = vadd.f32 %v2258, %v2327
      %v2360 = vadd.f32 %v2259, %v2328
      %v2361 = vadd.f32 %v2260, %v2329
      %v2362 = vadd.f32 %v2261, %v2330
      %v2363 = vadd.f32 %v2262, %v2331
      %v2364 = vadd.f32 %v2263, %v2332
      %v2365 = vadd.f32 %v2264, %v2333
      %v2366 = vadd.f32 %v2265, %v2334
      %v2367 = vadd.f32 %v2266, %v2335
      %v2368 = vadd.f32 %v2267, %v2336
      %v2369 = vadd.f32 %v2268, %v2337
      %v2370 = vld [vmem:[%s2167 + $0x2] sm:$0xff]
      %v2371 = vld [vmem:[%s2167 + $0xa] sm:$0xff]
      %v2372 = vld [vmem:[%s2167 + $0x1a] sm:$0xff]
      %v2373 = vld [vmem:[%s2167 + $0x22] sm:$0xff]
      %v2374 = vld [vmem:[%s2167 + $0x32] sm:$0xff]
      %v2375 = vld [vmem:[%s2167 + $0x3a] sm:$0xff]
      %v2376 = vld [vmem:[%s2167 + $0x4a] sm:$0xff]
      %v2377 = vld [vmem:[%s2167 + $0x52] sm:$0xff]
      %v2378 = vld [vmem:[%s2167 + $0x62] sm:$0xff]
      %v2379 = vld [vmem:[%s2167 + $0x6a] sm:$0xff]
      %v2380 = vld [vmem:[%s2167 + $0x7a] sm:$0xff]
      %v2381 = vld [vmem:[%s2167 + $0x82] sm:$0xff]
      %v2382 = vld [vmem:[%s2167 + $0x92] sm:$0xff]
      %v2383 = vld [vmem:[%s2167 + $0x9a] sm:$0xff]
      %v2384 = vld [vmem:[%s2167 + $0xaa] sm:$0xff]
      %v2385 = vld [vmem:[%s2167 + $0xb2] sm:$0xff]
      %v2386 = vld [vmem:[%s2167 + $0xc2] sm:$0xff]
      %v2387 = vld [vmem:[%s2167 + $0xca] sm:$0xff]
      %v2388 = vld [vmem:[%s2167 + $0xda] sm:$0xff]
      %v2389 = vld [vmem:[%s2167 + $0xe2] sm:$0xff]
      %v2390 = vld [vmem:[%s2167 + $0xf2] sm:$0xff]
      %v2391 = vld [vmem:[%s2167 + $0xfa] sm:$0xff]
      %v2392 = vld [vmem:[%s2167 + $0x10a] sm:$0xff]
      %v2393 = vld [vmem:[%s2167 + $0x112] sm:$0xff]
      %v2394 = vld [vmem:[%s2167 + $0x122] sm:$0xff]
      %v2395 = vld [vmem:[%s2167 + $0x12a] sm:$0xff]
      %v2396 = vld [vmem:[%s2167 + $0x13a] sm:$0xff]
      %v2397 = vld [vmem:[%s2167 + $0x142] sm:$0xff]
      %v2398 = vld [vmem:[%s2167 + $0x152] sm:$0xff]
      %v2399 = vld [vmem:[%s2167 + $0x15a] sm:$0xff]
      %v2400 = vld [vmem:[%s2167 + $0x16a] sm:$0xff]
      %v2401 = vld [vmem:[%s2167 + $0x172] sm:$0xff]
      %v2402 = vld [vmem:[%s1 + $0x16] sm:$0x1]
      %v2403 = vlaneseq
      %v2404 = vshrl.u32 %v2403, 7
      %v2405 = vsub.s32 0, %v2404
      %v2406 = vrot.slane %v2402, %v2405
      %v2407 = vmul.f32 %v2370, %v2406
      %v2408 = vmul.f32 %v2371, %v2406
      %v2409 = vmul.f32 %v2372, %v2406
      %v2410 = vmul.f32 %v2373, %v2406
      %v2411 = vmul.f32 %v2374, %v2406
      %v2412 = vmul.f32 %v2375, %v2406
      %v2413 = vmul.f32 %v2376, %v2406
      %v2414 = vmul.f32 %v2377, %v2406
      %v2415 = vmul.f32 %v2378, %v2406
      %v2416 = vmul.f32 %v2379, %v2406
      %v2417 = vmul.f32 %v2380, %v2406
      %v2418 = vmul.f32 %v2381, %v2406
      %v2419 = vmul.f32 %v2382, %v2406
      %v2420 = vmul.f32 %v2383, %v2406
      %v2421 = vmul.f32 %v2384, %v2406
      %v2422 = vmul.f32 %v2385, %v2406
      %v2423 = vmul.f32 %v2386, %v2406
      %v2424 = vmul.f32 %v2387, %v2406
      %v2425 = vmul.f32 %v2388, %v2406
      %v2426 = vmul.f32 %v2389, %v2406
      %v2427 = vmul.f32 %v2390, %v2406
      %v2428 = vmul.f32 %v2391, %v2406
      %v2429 = vmul.f32 %v2392, %v2406
      %v2430 = vmul.f32 %v2393, %v2406
      %v2431 = vmul.f32 %v2394, %v2406
      %v2432 = vmul.f32 %v2395, %v2406
      %v2433 = vmul.f32 %v2396, %v2406
      %v2434 = vmul.f32 %v2397, %v2406
      %v2435 = vmul.f32 %v2398, %v2406
      %v2436 = vmul.f32 %v2399, %v2406
      %v2437 = vmul.f32 %v2400, %v2406
      %v2438 = vmul.f32 %v2401, %v2406
      %v2439 = vadd.f32 %v2338, %v2407
      %v2440 = vadd.f32 %v2339, %v2408
      %v2441 = vadd.f32 %v2340, %v2409
      %v2442 = vadd.f32 %v2341, %v2410
      %v2443 = vadd.f32 %v2342, %v2411
      %v2444 = vadd.f32 %v2343, %v2412
      %v2445 = vadd.f32 %v2344, %v2413
      %v2446 = vadd.f32 %v2345, %v2414
      %v2447 = vadd.f32 %v2346, %v2415
      %v2448 = vadd.f32 %v2347, %v2416
      %v2449 = vadd.f32 %v2348, %v2417
      %v2450 = vadd.f32 %v2349, %v2418
      %v2451 = vadd.f32 %v2350, %v2419
      %v2452 = vadd.f32 %v2351, %v2420
      %v2453 = vadd.f32 %v2352, %v2421
      %v2454 = vadd.f32 %v2353, %v2422
      %v2455 = vadd.f32 %v2354, %v2423
      %v2456 = vadd.f32 %v2355, %v2424
      %v2457 = vadd.f32 %v2356, %v2425
      %v2458 = vadd.f32 %v2357, %v2426
      %v2459 = vadd.f32 %v2358, %v2427
      %v2460 = vadd.f32 %v2359, %v2428
      %v2461 = vadd.f32 %v2360, %v2429
      %v2462 = vadd.f32 %v2361, %v2430
      %v2463 = vadd.f32 %v2362, %v2431
      %v2464 = vadd.f32 %v2363, %v2432
      %v2465 = vadd.f32 %v2364, %v2433
      %v2466 = vadd.f32 %v2365, %v2434
      %v2467 = vadd.f32 %v2366, %v2435
      %v2468 = vadd.f32 %v2367, %v2436
      %v2469 = vadd.f32 %v2368, %v2437
      %v2470 = vadd.f32 %v2369, %v2438
      %v2471 = vld [vmem:[%s2167 + $0x3] sm:$0xff]
      %v2472 = vld [vmem:[%s2167 + $0xb] sm:$0xff]
      %v2473 = vld [vmem:[%s2167 + $0x1b] sm:$0xff]
      %v2474 = vld [vmem:[%s2167 + $0x23] sm:$0xff]
      %v2475 = vld [vmem:[%s2167 + $0x33] sm:$0xff]
      %v2476 = vld [vmem:[%s2167 + $0x3b] sm:$0xff]
      %v2477 = vld [vmem:[%s2167 + $0x4b] sm:$0xff]
      %v2478 = vld [vmem:[%s2167 + $0x53] sm:$0xff]
      %v2479 = vld [vmem:[%s2167 + $0x63] sm:$0xff]
      %v2480 = vld [vmem:[%s2167 + $0x6b] sm:$0xff]
      %v2481 = vld [vmem:[%s2167 + $0x7b] sm:$0xff]
      %v2482 = vld [vmem:[%s2167 + $0x83] sm:$0xff]
      %v2483 = vld [vmem:[%s2167 + $0x93] sm:$0xff]
      %v2484 = vld [vmem:[%s2167 + $0x9b] sm:$0xff]
      %v2485 = vld [vmem:[%s2167 + $0xab] sm:$0xff]
      %v2486 = vld [vmem:[%s2167 + $0xb3] sm:$0xff]
      %v2487 = vld [vmem:[%s2167 + $0xc3] sm:$0xff]
      %v2488 = vld [vmem:[%s2167 + $0xcb] sm:$0xff]
      %v2489 = vld [vmem:[%s2167 + $0xdb] sm:$0xff]
      %v2490 = vld [vmem:[%s2167 + $0xe3] sm:$0xff]
      %v2491 = vld [vmem:[%s2167 + $0xf3] sm:$0xff]
      %v2492 = vld [vmem:[%s2167 + $0xfb] sm:$0xff]
      %v2493 = vld [vmem:[%s2167 + $0x10b] sm:$0xff]
      %v2494 = vld [vmem:[%s2167 + $0x113] sm:$0xff]
      %v2495 = vld [vmem:[%s2167 + $0x123] sm:$0xff]
      %v2496 = vld [vmem:[%s2167 + $0x12b] sm:$0xff]
      %v2497 = vld [vmem:[%s2167 + $0x13b] sm:$0xff]
      %v2498 = vld [vmem:[%s2167 + $0x143] sm:$0xff]
      %v2499 = vld [vmem:[%s2167 + $0x153] sm:$0xff]
      %v2500 = vld [vmem:[%s2167 + $0x15b] sm:$0xff]
      %v2501 = vld [vmem:[%s2167 + $0x16b] sm:$0xff]
      %v2502 = vld [vmem:[%s2167 + $0x173] sm:$0xff]
      %v2503 = vld [vmem:[%s1 + $0x17] sm:$0x1]
      %v2504 = vlaneseq
      %v2505 = vshrl.u32 %v2504, 7
      %v2506 = vsub.s32 0, %v2505
      %v2507 = vrot.slane %v2503, %v2506
      %v2508 = vmul.f32 %v2471, %v2507
      %v2509 = vmul.f32 %v2472, %v2507
      %v2510 = vmul.f32 %v2473, %v2507
      %v2511 = vmul.f32 %v2474, %v2507
      %v2512 = vmul.f32 %v2475, %v2507
      %v2513 = vmul.f32 %v2476, %v2507
      %v2514 = vmul.f32 %v2477, %v2507
      %v2515 = vmul.f32 %v2478, %v2507
      %v2516 = vmul.f32 %v2479, %v2507
      %v2517 = vmul.f32 %v2480, %v2507
      %v2518 = vmul.f32 %v2481, %v2507
      %v2519 = vmul.f32 %v2482, %v2507
      %v2520 = vmul.f32 %v2483, %v2507
      %v2521 = vmul.f32 %v2484, %v2507
      %v2522 = vmul.f32 %v2485, %v2507
      %v2523 = vmul.f32 %v2486, %v2507
      %v2524 = vmul.f32 %v2487, %v2507
      %v2525 = vmul.f32 %v2488, %v2507
      %v2526 = vmul.f32 %v2489, %v2507
      %v2527 = vmul.f32 %v2490, %v2507
      %v2528 = vmul.f32 %v2491, %v2507
      %v2529 = vmul.f32 %v2492, %v2507
      %v2530 = vmul.f32 %v2493, %v2507
      %v2531 = vmul.f32 %v2494, %v2507
      %v2532 = vmul.f32 %v2495, %v2507
      %v2533 = vmul.f32 %v2496, %v2507
      %v2534 = vmul.f32 %v2497, %v2507
      %v2535 = vmul.f32 %v2498, %v2507
      %v2536 = vmul.f32 %v2499, %v2507
      %v2537 = vmul.f32 %v2500, %v2507
      %v2538 = vmul.f32 %v2501, %v2507
      %v2539 = vmul.f32 %v2502, %v2507
      %v2540 = vadd.f32 %v2439, %v2508
      %v2541 = vadd.f32 %v2440, %v2509
      %v2542 = vadd.f32 %v2441, %v2510
      %v2543 = vadd.f32 %v2442, %v2511
      %v2544 = vadd.f32 %v2443, %v2512
      %v2545 = vadd.f32 %v2444, %v2513
      %v2546 = vadd.f32 %v2445, %v2514
      %v2547 = vadd.f32 %v2446, %v2515
      %v2548 = vadd.f32 %v2447, %v2516
      %v2549 = vadd.f32 %v2448, %v2517
      %v2550 = vadd.f32 %v2449, %v2518
      %v2551 = vadd.f32 %v2450, %v2519
      %v2552 = vadd.f32 %v2451, %v2520
      %v2553 = vadd.f32 %v2452, %v2521
      %v2554 = vadd.f32 %v2453, %v2522
      %v2555 = vadd.f32 %v2454, %v2523
      %v2556 = vadd.f32 %v2455, %v2524
      %v2557 = vadd.f32 %v2456, %v2525
      %v2558 = vadd.f32 %v2457, %v2526
      %v2559 = vadd.f32 %v2458, %v2527
      %v2560 = vadd.f32 %v2459, %v2528
      %v2561 = vadd.f32 %v2460, %v2529
      %v2562 = vadd.f32 %v2461, %v2530
      %v2563 = vadd.f32 %v2462, %v2531
      %v2564 = vadd.f32 %v2463, %v2532
      %v2565 = vadd.f32 %v2464, %v2533
      %v2566 = vadd.f32 %v2465, %v2534
      %v2567 = vadd.f32 %v2466, %v2535
      %v2568 = vadd.f32 %v2467, %v2536
      %v2569 = vadd.f32 %v2468, %v2537
      %v2570 = vadd.f32 %v2469, %v2538
      %v2571 = vadd.f32 %v2470, %v2539
      %v2572 = vld [vmem:[%s2167 + $0x4] sm:$0xff]
      %v2573 = vld [vmem:[%s2167 + $0xc] sm:$0xff]
      %v2574 = vld [vmem:[%s2167 + $0x1c] sm:$0xff]
      %v2575 = vld [vmem:[%s2167 + $0x24] sm:$0xff]
      %v2576 = vld [vmem:[%s2167 + $0x34] sm:$0xff]
      %v2577 = vld [vmem:[%s2167 + $0x3c] sm:$0xff]
      %v2578 = vld [vmem:[%s2167 + $0x4c] sm:$0xff]
      %v2579 = vld [vmem:[%s2167 + $0x54] sm:$0xff]
      %v2580 = vld [vmem:[%s2167 + $0x64] sm:$0xff]
      %v2581 = vld [vmem:[%s2167 + $0x6c] sm:$0xff]
      %v2582 = vld [vmem:[%s2167 + $0x7c] sm:$0xff]
      %v2583 = vld [vmem:[%s2167 + $0x84] sm:$0xff]
      %v2584 = vld [vmem:[%s2167 + $0x94] sm:$0xff]
      %v2585 = vld [vmem:[%s2167 + $0x9c] sm:$0xff]
      %v2586 = vld [vmem:[%s2167 + $0xac] sm:$0xff]
      %v2587 = vld [vmem:[%s2167 + $0xb4] sm:$0xff]
      %v2588 = vld [vmem:[%s2167 + $0xc4] sm:$0xff]
      %v2589 = vld [vmem:[%s2167 + $0xcc] sm:$0xff]
      %v2590 = vld [vmem:[%s2167 + $0xdc] sm:$0xff]
      %v2591 = vld [vmem:[%s2167 + $0xe4] sm:$0xff]
      %v2592 = vld [vmem:[%s2167 + $0xf4] sm:$0xff]
      %v2593 = vld [vmem:[%s2167 + $0xfc] sm:$0xff]
      %v2594 = vld [vmem:[%s2167 + $0x10c] sm:$0xff]
      %v2595 = vld [vmem:[%s2167 + $0x114] sm:$0xff]
      %v2596 = vld [vmem:[%s2167 + $0x124] sm:$0xff]
      %v2597 = vld [vmem:[%s2167 + $0x12c] sm:$0xff]
      %v2598 = vld [vmem:[%s2167 + $0x13c] sm:$0xff]
      %v2599 = vld [vmem:[%s2167 + $0x144] sm:$0xff]
      %v2600 = vld [vmem:[%s2167 + $0x154] sm:$0xff]
      %v2601 = vld [vmem:[%s2167 + $0x15c] sm:$0xff]
      %v2602 = vld [vmem:[%s2167 + $0x16c] sm:$0xff]
      %v2603 = vld [vmem:[%s2167 + $0x174] sm:$0xff]
      %v2604 = vld [vmem:[%s1 + $0x18] sm:$0x1]
      %v2605 = vlaneseq
      %v2606 = vshrl.u32 %v2605, 7
      %v2607 = vsub.s32 0, %v2606
      %v2608 = vrot.slane %v2604, %v2607
      %v2609 = vmul.f32 %v2572, %v2608
      %v2610 = vmul.f32 %v2573, %v2608
      %v2611 = vmul.f32 %v2574, %v2608
      %v2612 = vmul.f32 %v2575, %v2608
      %v2613 = vmul.f32 %v2576, %v2608
      %v2614 = vmul.f32 %v2577, %v2608
      %v2615 = vmul.f32 %v2578, %v2608
      %v2616 = vmul.f32 %v2579, %v2608
      %v2617 = vmul.f32 %v2580, %v2608
      %v2618 = vmul.f32 %v2581, %v2608
      %v2619 = vmul.f32 %v2582, %v2608
      %v2620 = vmul.f32 %v2583, %v2608
      %v2621 = vmul.f32 %v2584, %v2608
      %v2622 = vmul.f32 %v2585, %v2608
      %v2623 = vmul.f32 %v2586, %v2608
      %v2624 = vmul.f32 %v2587, %v2608
      %v2625 = vmul.f32 %v2588, %v2608
      %v2626 = vmul.f32 %v2589, %v2608
      %v2627 = vmul.f32 %v2590, %v2608
      %v2628 = vmul.f32 %v2591, %v2608
      %v2629 = vmul.f32 %v2592, %v2608
      %v2630 = vmul.f32 %v2593, %v2608
      %v2631 = vmul.f32 %v2594, %v2608
      %v2632 = vmul.f32 %v2595, %v2608
      %v2633 = vmul.f32 %v2596, %v2608
      %v2634 = vmul.f32 %v2597, %v2608
      %v2635 = vmul.f32 %v2598, %v2608
      %v2636 = vmul.f32 %v2599, %v2608
      %v2637 = vmul.f32 %v2600, %v2608
      %v2638 = vmul.f32 %v2601, %v2608
      %v2639 = vmul.f32 %v2602, %v2608
      %v2640 = vmul.f32 %v2603, %v2608
      %v2641 = vadd.f32 %v2540, %v2609
      %v2642 = vadd.f32 %v2541, %v2610
      %v2643 = vadd.f32 %v2542, %v2611
      %v2644 = vadd.f32 %v2543, %v2612
      %v2645 = vadd.f32 %v2544, %v2613
      %v2646 = vadd.f32 %v2545, %v2614
      %v2647 = vadd.f32 %v2546, %v2615
      %v2648 = vadd.f32 %v2547, %v2616
      %v2649 = vadd.f32 %v2548, %v2617
      %v2650 = vadd.f32 %v2549, %v2618
      %v2651 = vadd.f32 %v2550, %v2619
      %v2652 = vadd.f32 %v2551, %v2620
      %v2653 = vadd.f32 %v2552, %v2621
      %v2654 = vadd.f32 %v2553, %v2622
      %v2655 = vadd.f32 %v2554, %v2623
      %v2656 = vadd.f32 %v2555, %v2624
      %v2657 = vadd.f32 %v2556, %v2625
      %v2658 = vadd.f32 %v2557, %v2626
      %v2659 = vadd.f32 %v2558, %v2627
      %v2660 = vadd.f32 %v2559, %v2628
      %v2661 = vadd.f32 %v2560, %v2629
      %v2662 = vadd.f32 %v2561, %v2630
      %v2663 = vadd.f32 %v2562, %v2631
      %v2664 = vadd.f32 %v2563, %v2632
      %v2665 = vadd.f32 %v2564, %v2633
      %v2666 = vadd.f32 %v2565, %v2634
      %v2667 = vadd.f32 %v2566, %v2635
      %v2668 = vadd.f32 %v2567, %v2636
      %v2669 = vadd.f32 %v2568, %v2637
      %v2670 = vadd.f32 %v2569, %v2638
      %v2671 = vadd.f32 %v2570, %v2639
      %v2672 = vadd.f32 %v2571, %v2640
      %vm2673 = vcmask 31744
      %2674 = vst.msk [vmem:[%s143] sm:$0xff] %vm2673, %v2641
      %2675 = vst.msk [vmem:[%s143 + $0x8] sm:$0xff] %vm2673, %v2642
      %2676 = vst.msk [vmem:[%s143 + $0x10] sm:$0xff] %vm2673, %v2643
      %2677 = vst.msk [vmem:[%s143 + $0x18] sm:$0xff] %vm2673, %v2644
      %2678 = vst.msk [vmem:[%s143 + $0x20] sm:$0xff] %vm2673, %v2645
      %2679 = vst.msk [vmem:[%s143 + $0x28] sm:$0xff] %vm2673, %v2646
      %2680 = vst.msk [vmem:[%s143 + $0x30] sm:$0xff] %vm2673, %v2647
      %2681 = vst.msk [vmem:[%s143 + $0x38] sm:$0xff] %vm2673, %v2648
      %2682 = vst.msk [vmem:[%s143 + $0x40] sm:$0xff] %vm2673, %v2649
      %2683 = vst.msk [vmem:[%s143 + $0x48] sm:$0xff] %vm2673, %v2650
      %2684 = vst.msk [vmem:[%s143 + $0x50] sm:$0xff] %vm2673, %v2651
      %2685 = vst.msk [vmem:[%s143 + $0x58] sm:$0xff] %vm2673, %v2652
      %2686 = vst.msk [vmem:[%s143 + $0x60] sm:$0xff] %vm2673, %v2653
      %2687 = vst.msk [vmem:[%s143 + $0x68] sm:$0xff] %vm2673, %v2654
      %2688 = vst.msk [vmem:[%s143 + $0x70] sm:$0xff] %vm2673, %v2655
      %2689 = vst.msk [vmem:[%s143 + $0x78] sm:$0xff] %vm2673, %v2656
      %2690 = vst.msk [vmem:[%s143 + $0x80] sm:$0xff] %vm2673, %v2657
      %2691 = vst.msk [vmem:[%s143 + $0x88] sm:$0xff] %vm2673, %v2658
      %2692 = vst.msk [vmem:[%s143 + $0x90] sm:$0xff] %vm2673, %v2659
      %2693 = vst.msk [vmem:[%s143 + $0x98] sm:$0xff] %vm2673, %v2660
      %2694 = vst.msk [vmem:[%s143 + $0xa0] sm:$0xff] %vm2673, %v2661
      %2695 = vst.msk [vmem:[%s143 + $0xa8] sm:$0xff] %vm2673, %v2662
      %2696 = vst.msk [vmem:[%s143 + $0xb0] sm:$0xff] %vm2673, %v2663
      %2697 = vst.msk [vmem:[%s143 + $0xb8] sm:$0xff] %vm2673, %v2664
      %2698 = vst.msk [vmem:[%s143 + $0xc0] sm:$0xff] %vm2673, %v2665
      %2699 = vst.msk [vmem:[%s143 + $0xc8] sm:$0xff] %vm2673, %v2666
      %2700 = vst.msk [vmem:[%s143 + $0xd0] sm:$0xff] %vm2673, %v2667
      %2701 = vst.msk [vmem:[%s143 + $0xd8] sm:$0xff] %vm2673, %v2668
      %2702 = vst.msk [vmem:[%s143 + $0xe0] sm:$0xff] %vm2673, %v2669
      %2703 = vst.msk [vmem:[%s143 + $0xe8] sm:$0xff] %vm2673, %v2670
      %2704 = vst.msk [vmem:[%s143 + $0xf0] sm:$0xff] %vm2673, %v2671
      %2705 = vst.msk [vmem:[%s143 + $0xf8] sm:$0xff] %vm2673, %v2672
      %p2706 = scmp.lt.s32.totalorder %s13, 1
      %s2707 = scalar_select %p2706, %s13, 1
      %s2708 = smul.addr %s2707, 32
      %s2709 = smul.addr %s2708, 8
      %s2710 = scalar_lea.vmem %s2, %s2709
      // Predicated region
      $region29: #{a_call__.1} parent=27 // pred_check
        %p2711 = pneg %p78
      $region30: #{a_call__.1} parent=27 // pred_check_branch
        %2713 = sbr.rel (%p2711) target = $region32
      $region31: #{a_call__.1} parent=27 // pred_region
        _
      $region32: #{a_call__.1} parent=27 // pred_fallthru
        _
    $region28: #{a_call__.1} parent=5 // pred_fallthru
      _
    %p2714 = scmp.le.s32.totalorder 2, %s8
    // Predicated region
    $region33: #{a_call__.1} parent=5 // pred_check
      %p2715 = pneg %p2714
    $region34: #{a_call__.1} parent=5 // pred_check_branch
      %2717 = sbr.rel (%p2715) target = $region36
    $region35: #{a_call__.1} parent=5 // pred_region
      %s2718 = ssub.s32 %s8, 2
      // Predicated region
      $region37: #{a_call__.1} parent=35 // pred_check
        %p2719 = pneg %p84
      $region38: #{a_call__.1} parent=35 // pred_check_branch
        %2721 = sbr.rel (%p2719) target = $region40
      $region39: #{a_call__.1} parent=35 // pred_region
        %p2722 = scmp.lt.s32.totalorder %s14, 1
        %s2723 = scalar_select %p2722, %s14, 1
        %s2724 = smul.addr %s2723, 32
        %s2725 = smul.addr %s2724, 8
        %s2726 = scalar_lea.vmem %s2, %s2725
      $region40: #{a_call__.1} parent=35 // pred_fallthru
        _
    $region36: #{a_call__.1} parent=5 // pred_fallthru
      _
  $region6: #{a_call__.1} parent=0 // loop_footer
    %s12 = sadd.s32 1, %s8
  $region7: #{a_call__.1} parent=0 // loop_footer_branch
    %7 = sbr.rel target = $region3
  $region8: #{a_call__.1} parent=0 // loop_exit
    _

</llo_original>
